<compile_context>
chip_gen: v6e
topology: v6e:2x2x1
jax: 0.10.0
libtpu: 0.0.40
codegen_flags: <defaults>
</compile_context>

<pallas_src>
import jax
import jax.numpy as jnp
from jax.experimental import pallas as pl
from jax.experimental.pallas import tpu as pltpu

_LANE = 128
_SUBLANE = 8


def _round_up(x, m):
    return (x + m - 1) // m * m


def _pad2(a, rows, cols, dtype=None):
    dtype = a.dtype if dtype is None else dtype
    out = jnp.zeros((rows, cols), dtype)
    return out.at[: a.shape[0], : a.shape[1]].set(a.astype(dtype))


# ------------------------------ Pallas kernel --------------------------------


def _gin_fused_kernel(a_ref, x0_ref, p_ref, w1_ref, b1_ref, w2_ref, b2_ref,
                      wc_ref, bc_ref, out_ref, h_ref):
    layer = pl.program_id(0)
    num_layers = pl.num_programs(0)

    @pl.when(layer == 0)
    def _init():
        h_ref[...] = x0_ref[...]          # bf16 copy

    x = h_ref[...]                        # bf16 state, fed straight to the MXU
    # aggregation + nc scale + residual:  A_hat @ x   (bf16 MXU, f32 accumulate)
    agg = jnp.dot(a_ref[...], x, preferred_element_type=jnp.float32)
    # MLP Linear1 (+ folded eval-mode BatchNorm) + ReLU (f32 on the VPU)
    h1 = jnp.maximum(
        jnp.dot(agg.astype(jnp.bfloat16), w1_ref[...],
                preferred_element_type=jnp.float32) + b1_ref[...], 0.0)
    # MLP Linear2 (plain last layer), then the outer .relu() of GIN.forward
    h2 = jnp.maximum(
        jnp.dot(h1.astype(jnp.bfloat16), w2_ref[...],
                preferred_element_type=jnp.float32) + b2_ref[...], 0.0)
    # NOTE: padded node rows accumulate relu(b)-derived garbage here; this is harmless
    # only because the padded *columns* of A_hat and of the pooling matrix are zero.
    h_ref[...] = h2.astype(jnp.bfloat16)

    @pl.when(layer == num_layers - 1)
    def _finalize():
        # global_add/mean_pool as P @ h, then the 'lin' classifier head.
        pooled = jnp.dot(p_ref[...], h2.astype(jnp.bfloat16),
                         preferred_element_type=jnp.float32)
        out_ref[...] = jnp.dot(pooled.astype(jnp.bfloat16), wc_ref[...],
                               preferred_element_type=jnp.float32) + bc_ref[...]


# -------------------------------- JAX glue -----------------------------------


def build_aggregation_matrix(edge_index, node_centrality, edge_centrality, eps,
                             num_nodes):
    """A_hat = diag(node_centrality) @ A_ec + (1 + eps) * I  (QGINConv folded)."""
    row, col = edge_index[0], edge_index[1]          # message: x[row] -> node col
    adj = jnp.zeros((num_nodes, num_nodes), jnp.float32)
    adj = adj.at[col, row].add(edge_centrality.astype(jnp.float32))
    return (node_centrality.astype(jnp.float32)[:, None] * adj
            + (1.0 + eps) * jnp.eye(num_nodes, dtype=jnp.float32))


def build_pool_matrix(batch, num_graphs, num_nodes_padded, pool):
    """(Gp, Np) pooling matrix; padded nodes/graphs contribute zero."""
    n = batch.shape[0]
    batch_p = jnp.full((num_nodes_padded,), -1, jnp.int32).at[:n].set(
        batch.astype(jnp.int32))
    gp = _round_up(max(num_graphs, 1), _SUBLANE)
    p = (batch_p[None, :] == jnp.arange(gp, dtype=jnp.int32)[:, None]
         ).astype(jnp.float32)
    if pool == "mean":
        counts = jnp.maximum(p.sum(axis=1, keepdims=True), 1.0)
        p = p / counts
    elif pool != "add":
        raise ValueError("pool method must be 'add' or 'mean'.")
    return p


def init_params(key, in_channels, hidden_channels, out_channels, num_layers):
    """Parameters mirroring the torch module (MLP=[c,h,h] per conv + Linear head).

    BatchNorm params/stats are at reset values (gamma=1, beta=0, mean=0, var=1);
    QGINConv.eps is a non-trainable buffer reset to 0.0.
    """
    params = {"convs": []}
    c_in = in_channels
    for _ in range(num_layers):
        key, k1, k2, k3, k4 = jax.random.split(key, 5)
        bnd1 = 1.0 / (c_in ** 0.5)
        bnd2 = 1.0 / (hidden_channels ** 0.5)
        params["convs"].append(dict(
            w1=jax.random.uniform(k1, (c_in, hidden_channels), jnp.float32, -bnd1, bnd1),
            b1=jax.random.uniform(k2, (hidden_channels,), jnp.float32, -bnd1, bnd1),
            bn_gamma=jnp.ones((hidden_channels,), jnp.float32),
            bn_beta=jnp.zeros((hidden_channels,), jnp.float32),
            bn_mean=jnp.zeros((hidden_channels,), jnp.float32),
            bn_var=jnp.ones((hidden_channels,), jnp.float32),
            w2=jax.random.uniform(k3, (hidden_channels, hidden_channels), jnp.float32,
                                  -bnd2, bnd2),
            b2=jax.random.uniform(k4, (hidden_channels,), jnp.float32, -bnd2, bnd2),
            eps=jnp.float32(0.0),
        ))
        c_in = hidden_channels
    key, k1, k2 = jax.random.split(key, 3)
    bnd = 1.0 / (hidden_channels ** 0.5)
    params["classify"] = (
        jax.random.uniform(k1, (hidden_channels, out_channels), jnp.float32, -bnd, bnd),
        jax.random.uniform(k2, (out_channels,), jnp.float32, -bnd, bnd),
    )
    return params


def pack_params(params, in_channels, hidden_channels, out_channels):
    """Fold eval-mode BatchNorm into Linear1, pad channels to 128 lanes, stack layers."""
    ch = _round_up(max(in_channels, hidden_channels), _LANE)
    outp = _round_up(out_channels, _LANE)
    w1s, b1s, w2s, b2s = [], [], [], []
    for layer in params["convs"]:
        scale = layer["bn_gamma"] / jnp.sqrt(layer["bn_var"] + 1e-5)
        w1f = layer["w1"] * scale[None, :]
        b1f = (layer["b1"] - layer["bn_mean"]) * scale + layer["bn_beta"]
        w1s.append(_pad2(w1f, ch, ch, jnp.bfloat16))
        b1s.append(_pad2(b1f[None, :], 1, ch, jnp.float32))
        w2s.append(_pad2(layer["w2"], ch, ch, jnp.bfloat16))
        b2s.append(_pad2(layer["b2"][None, :], 1, ch, jnp.float32))
    wc, bc = params["classify"]
    return dict(
        w1s=jnp.stack(w1s), b1s=jnp.stack(b1s),
        w2s=jnp.stack(w2s), b2s=jnp.stack(b2s),
        wc=_pad2(wc, ch, outp, jnp.bfloat16),
        bc=_pad2(bc[None, :], 1, outp, jnp.float32),
    )


def _pack_inputs(params, x, edge_index, batch, node_centrality, edge_centrality,
                 *, num_graphs, pool):
    n, in_c = x.shape
    hidden = params["convs"][0]["w2"].shape[0]
    out_c = params["classify"][0].shape[1]
    packed = pack_params(params, in_c, hidden, out_c)
    ch = packed["w1s"].shape[1]
    np_ = _round_up(n, _LANE)
    # A single A_hat is shared across layers; that is exact only if every layer's eps
    # buffer is identical (they are all reset to 0.0 in the torch module).
    eps_vals = [float(layer["eps"]) for layer in params["convs"]]
    assert all(abs(e - eps_vals[0]) < 1e-12 for e in eps_vals), \
        "per-layer eps differ; cannot share one folded A_hat across layers"
    eps = params["convs"][0]["eps"]
    a_hat = _pad2(
        build_aggregation_matrix(edge_index, node_centrality, edge_centrality, eps, n),
        np_, np_, jnp.bfloat16)
    # bf16 node-feature state (halves the resident x0 buffer and the VMEM scratch).
    x0 = _pad2(x, np_, ch, jnp.bfloat16)
    pmat = build_pool_matrix(batch, num_graphs, np_, pool).astype(jnp.bfloat16)
    return packed, a_hat, x0, pmat


def _vmem_capacity_bytes():
    """Generation-aware VMEM capacity (falls back to the smallest, v7x-like, 64 MiB)."""
    try:
        info = pltpu.get_tpu_info()
        cap = getattr(info, "vmem_capacity_bytes", None)
        if cap:
            return int(cap)
    except Exception:
        pass
    return 64 << 20


def _fused_pallas_call(a_hat, x0, pmat, packed, *, single_buffer_constants=True):
    w1s, b1s, w2s, b2s = packed["w1s"], packed["b1s"], packed["w2s"], packed["b2s"]
    wc, bc = packed["wc"], packed["bc"]
    num_layers = w1s.shape[0]
    np_, ch = x0.shape
    gp = pmat.shape[0]
    outp = wc.shape[1]

    def const_spec(shape):
        zeros = (0,) * len(shape)
        index_map = lambda l, _z=zeros: _z
        if single_buffer_constants:
            # Block index never changes -> a single VMEM buffer suffices; this halves
            # the resident footprint of A_hat (the dominant operand).
            return pl.BlockSpec(shape, index_map, pipeline_mode=pl.Buffered(1))
        return pl.BlockSpec(shape, index_map)

    flops = (num_layers * (2 * np_ * np_ * ch + 4 * np_ * ch * ch)
             + 2 * gp * np_ * ch + 2 * gp * ch * outp)
    bytes_accessed = (a_hat.nbytes + x0.nbytes + pmat.nbytes
                      + w1s.nbytes + b1s.nbytes + w2s.nbytes + b2s.nbytes
                      + wc.nbytes + bc.nbytes + gp * outp * 4)

    # --- buffer-count-aware VMEM accounting ---------------------------------
    const_bufs = 1 if single_buffer_constants else 2
    resident = const_bufs * (a_hat.nbytes + x0.nbytes + pmat.nbytes
                             + wc.nbytes + bc.nbytes)
    per_layer = (w1s.nbytes + b1s.nbytes + w2s.nbytes + b2s.nbytes) // num_layers
    streamed = 2 * per_layer                      # default double-buffered weights
    state = np_ * ch * 2                          # bf16 node-feature scratch
    out_bytes = 2 * gp * outp * 4                 # output block (assume 2 buffers)
    margin = 4 << 20                              # Mosaic internal scratch headroom
    required = resident + streamed + state + out_bytes + margin
    cap = _vmem_capacity_bytes()
    vmem_limit = int(min(max(required, 16 << 20), int(0.75 * cap)))
    if required > vmem_limit:
        raise ValueError(
            f"GIN kernel needs ~{required >> 20} MiB VMEM but only "
            f"{vmem_limit >> 20} MiB is available on this TPU generation; "
            "use the sparse-gather / row-tiled variant (see TODOs).")

    grid_spec = pltpu.PrefetchScalarGridSpec(
        num_scalar_prefetch=0,
        grid=(num_layers,),
        in_specs=[
            const_spec((np_, np_)),                             # A_hat: fetched once
            const_spec((np_, ch)),                              # x0 (bf16): fetched once
            const_spec((gp, np_)),                              # pooling matrix
            pl.BlockSpec((None, ch, ch), lambda l: (l, 0, 0)),  # W1 (streamed / layer)
            pl.BlockSpec((None, 1, ch), lambda l: (l, 0, 0)),   # b1
            pl.BlockSpec((None, ch, ch), lambda l: (l, 0, 0)),  # W2
            pl.BlockSpec((None, 1, ch), lambda l: (l, 0, 0)),   # b2
            const_spec((ch, outp)),                             # classifier W
            const_spec((1, outp)),                              # classifier b
        ],
        out_specs=pl.BlockSpec((gp, outp), lambda l: (0, 0)),
        scratch_shapes=[pltpu.VMEM((np_, ch), jnp.bfloat16)],   # bf16 node state
    )
    return pl.pallas_call(
        _gin_fused_kernel,
        grid_spec=grid_spec,
        out_shape=jax.ShapeDtypeStruct((gp, outp), jnp.float32),
        compiler_params=pltpu.CompilerParams(
            dimension_semantics=("arbitrary",),   # layers are sequential
            vmem_limit_bytes=vmem_limit,
        ),
        cost_estimate=pl.CostEstimate(
            flops=flops, transcendentals=0, bytes_accessed=bytes_accessed),
    )(a_hat, x0, pmat, w1s, b1s, w2s, b2s, wc, bc)


def gin_forward(params, x, edge_index, batch, node_centrality, edge_centrality,
                *, num_graphs, pool="add"):
    packed, a_hat, x0, pmat = _pack_inputs(
        params, x, edge_index, batch, node_centrality, edge_centrality,
        num_graphs=num_graphs, pool=pool)
    try:
        out = _fused_pallas_call(a_hat, x0, pmat, packed,
                                 single_buffer_constants=True)
        out = jax.block_until_ready(out)
    except Exception:
        # Fallback for JAX versions where pipeline_mode=pl.Buffered(1) is unsupported.
        out = _fused_pallas_call(a_hat, x0, pmat, packed,
                                 single_buffer_constants=False)
        out = jax.block_until_ready(out)
    out_channels = params["classify"][0].shape[1]
    return out[:num_graphs, :out_channels]


# ----------------------------- references (checks) ----------------------------


def _reference_bf16(a_hat, x0, pmat, packed):
    """Plain-JAX mirror of the fused kernel (identical bf16 casts)."""
    h = x0  # bf16
    for l in range(packed["w1s"].shape[0]):
        agg = jnp.dot(a_hat, h, preferred_element_type=jnp.float32)
        h1 = jnp.maximum(
            jnp.dot(agg.astype(jnp.bfloat16), packed["w1s"][l],
                    preferred_element_type=jnp.float32) + packed["b1s"][l], 0.0)
        h2 = jnp.maximum(
            jnp.dot(h1.astype(jnp.bfloat16), packed["w2s"][l],
                    preferred_element_type=jnp.float32) + packed["b2s"][l], 0.0)
        h = h2.astype(jnp.bfloat16)
    pooled = jnp.dot(pmat, h, preferred_element_type=jnp.float32)
    return jnp.dot(pooled.astype(jnp.bfloat16), packed["wc"],
                   preferred_element_type=jnp.float32) + packed["bc"]


def _reference_f32(params, x, edge_index, batch, node_centrality, edge_centrality,
                   *, num_graphs, pool):
    """True f32 QGINConv/GIN forward (matches the torch module in eval mode)."""
    n = x.shape[0]
    row, col = edge_index[0], edge_index[1]
    h = x.astype(jnp.float32)
    for layer in params["convs"]:
        msg = h[row] * edge_centrality[:, None]
        agg = jnp.zeros((n, h.shape[1]), jnp.float32).at[col].add(msg)
        out = agg * node_centrality[:, None] + (1.0 + layer["eps"]) * h
        h1 = out @ layer["w1"] + layer["b1"]
        h1 = ((h1 - layer["bn_mean"]) / jnp.sqrt(layer["bn_var"] + 1e-5)
              * layer["bn_gamma"] + layer["bn_beta"])
        h1 = jnp.maximum(h1, 0.0)
        h2 = h1 @ layer["w2"] + layer["b2"]
        h = jnp.maximum(h2, 0.0)               # outer .relu() in GIN.forward
    pooled = jnp.zeros((num_graphs, h.shape[1]), jnp.float32).at[batch].add(h)
    if pool == "mean":
        counts = jnp.zeros((num_graphs,), jnp.float32).at[batch].add(1.0)
        pooled = pooled / jnp.maximum(counts, 1.0)[:, None]
    wc, bc = params["classify"]
    return pooled @ wc + bc


# ----------------------------------- main ------------------------------------


if __name__ == "__main__":
    # Small synthetic graph batch: 2 graphs of 8 nodes each.
    N = 16          # total nodes
    E = 24          # directed edges
    IN_C = 8
    HIDDEN = 32
    OUT_C = 8
    NUM_LAYERS = 2
    NUM_GRAPHS = 2

    key = jax.random.PRNGKey(0)
    key, kx, knc, kec, kp = jax.random.split(key, 5)

    x = jax.random.normal(kx, (N, IN_C), jnp.float32)

    # Ring edges within each 8-node graph plus a few extra intra-graph edges.
    src0 = jnp.arange(8)
    dst0 = (src0 + 1) % 8
    src1 = 8 + jnp.arange(8)
    dst1 = 8 + (jnp.arange(8) + 1) % 8
    extra_src = jnp.array([0, 2, 4, 6, 9, 11, 13, 15], jnp.int32)
    extra_dst = jnp.array([4, 6, 0, 2, 13, 15, 9, 11], jnp.int32)
    row = jnp.concatenate([src0, src1, extra_src]).astype(jnp.int32)
    col = jnp.concatenate([dst0, dst1, extra_dst]).astype(jnp.int32)
    edge_index = jnp.stack([row, col], axis=0)  # (2, E)
    assert edge_index.shape == (2, E)

    batch = jnp.concatenate(
        [jnp.zeros((8,), jnp.int32), jnp.ones((8,), jnp.int32)])

    node_centrality = jax.random.uniform(knc, (N,), jnp.float32, 0.1, 1.0)
    edge_centrality = jax.random.uniform(kec, (E,), jnp.float32, 0.1, 1.0)

    params = init_params(kp, IN_C, HIDDEN, OUT_C, NUM_LAYERS)

    out = gin_forward(params, x, edge_index, batch, node_centrality,
                      edge_centrality, num_graphs=NUM_GRAPHS, pool="add")
    out = jax.block_until_ready(out)

    # Check 1: bf16 mirror of the fused kernel (same casts, plain JAX).
    packed, a_hat, x0, pmat = _pack_inputs(
        params, x, edge_index, batch, node_centrality, edge_centrality,
        num_graphs=NUM_GRAPHS, pool="add")
    ref_bf16 = _reference_bf16(a_hat, x0, pmat, packed)[:NUM_GRAPHS, :OUT_C]

    # Check 2: true f32 QGINConv/GIN math (measures bf16 drift, not just kernel bugs).
    ref_f32 = _reference_f32(params, x, edge_index, batch, node_centrality,
                             edge_centrality, num_graphs=NUM_GRAPHS, pool="add")

    assert out.shape == (NUM_GRAPHS, OUT_C)
    assert jnp.all(jnp.isfinite(out))
    assert jnp.allclose(out, ref_bf16, rtol=1e-2, atol=1e-2)
    assert jnp.allclose(out, ref_f32, rtol=5e-2, atol=5e-2)
    print("KERNEL_OK")
</pallas_src>

<mosaic_0001>
module attributes {stable_mosaic.version = 11 : i64} {
  func.func @_gin_fused_kernel(%arg0: i32, %arg1: memref<128x128xbf16, #tpu.memory_space<vmem>>, %arg2: memref<128x128xbf16, #tpu.memory_space<vmem>>, %arg3: memref<8x128xbf16, #tpu.memory_space<vmem>>, %arg4: memref<1x128x128xbf16, #tpu.memory_space<vmem>>, %arg5: memref<1x1x128xf32, #tpu.memory_space<vmem>>, %arg6: memref<1x128x128xbf16, #tpu.memory_space<vmem>>, %arg7: memref<1x1x128xf32, #tpu.memory_space<vmem>>, %arg8: memref<128x128xbf16, #tpu.memory_space<vmem>>, %arg9: memref<1x128xf32, #tpu.memory_space<vmem>>, %arg10: memref<8x128xf32, #tpu.memory_space<vmem>>, %arg11: memref<128x128xbf16, #tpu.memory_space<vmem>>) attributes {dimension_semantics = [#tpu.dimension_semantics<arbitrary>], iteration_bounds = array<i64: 2>, scalar_prefetch = 0 : i64, scratch_operands = 1 : i64, tpu.core_type = #tpu.core_type<tc>, window_params = [{pipeline_mode = #tpu.pipeline_mode<synchronous>, transform_indices = @transform_0, window_bounds = array<i64: 128, 128>}, {pipeline_mode = #tpu.pipeline_mode<synchronous>, transform_indices = @transform_1, window_bounds = array<i64: 128, 128>}, {pipeline_mode = #tpu.pipeline_mode<synchronous>, transform_indices = @transform_2, window_bounds = array<i64: 8, 128>}, {transform_indices = @transform_3, window_bounds = array<i64: 1, 128, 128>}, {transform_indices = @transform_4, window_bounds = array<i64: 1, 1, 128>}, {transform_indices = @transform_5, window_bounds = array<i64: 1, 128, 128>}, {transform_indices = @transform_6, window_bounds = array<i64: 1, 1, 128>}, {pipeline_mode = #tpu.pipeline_mode<synchronous>, transform_indices = @transform_7, window_bounds = array<i64: 128, 128>}, {pipeline_mode = #tpu.pipeline_mode<synchronous>, transform_indices = @transform_8, window_bounds = array<i64: 1, 128>}, {pipeline_mode = #tpu.pipeline_mode<synchronous>, transform_indices = @transform_9, window_bounds = array<i64: 8, 128>}]} {
    %c0_i32 = arith.constant 0 : i32
    %0 = arith.cmpi eq, %arg0, %c0_i32 : i32
    %1 = arith.extui %0 : i1 to i32
    %c0_i32_0 = arith.constant 0 : i32
    %2 = arith.cmpi ne, %1, %c0_i32_0 : i32
    scf.if %2 {
      %c0_23 = arith.constant 0 : index
      %c0_24 = arith.constant 0 : index
      %31 = vector.load %arg2[%c0_23, %c0_24] : memref<128x128xbf16, #tpu.memory_space<vmem>>, vector<128x128xbf16>
      %c0_25 = arith.constant 0 : index
      %c0_26 = arith.constant 0 : index
      %32 = vector.load %arg11[%c0_25, %c0_26] : memref<128x128xbf16, #tpu.memory_space<vmem>>, vector<128x128xbf16>
      tpu.vector_store %arg11[%c0_25, %c0_26], %31 {strides = array<i32>} : memref<128x128xbf16, #tpu.memory_space<vmem>>, vector<128x128xbf16>,
    } else {
    }
    %c0 = arith.constant 0 : index
    %c0_1 = arith.constant 0 : index
    %3 = vector.load %arg11[%c0, %c0_1] : memref<128x128xbf16, #tpu.memory_space<vmem>>, vector<128x128xbf16>
    %c0_2 = arith.constant 0 : index
    %c0_3 = arith.constant 0 : index
    %4 = vector.load %arg1[%c0_2, %c0_3] : memref<128x128xbf16, #tpu.memory_space<vmem>>, vector<128x128xbf16>
    %cst = arith.constant dense<0.000000e+00> : vector<128x128xf32>
    %5 = tpu.matmul %4, %3, %cst {dimension_numbers = #tpu.dot_dimension_numbers<[1], [0], [0], [1], [0, 0, 1, 1], [], []>} : vector<128x128xbf16>, vector<128x128xbf16>, vector<128x128xf32> -> vector<128x128xf32>
    %6 = arith.truncf %5 : vector<128x128xf32> to vector<128x128xbf16>
    %c0_4 = arith.constant 0 : index
    %c0_5 = arith.constant 0 : index
    %c0_6 = arith.constant 0 : index
    %7 = vector.load %arg4[%c0_4, %c0_5, %c0_6] : memref<1x128x128xbf16, #tpu.memory_space<vmem>>, vector<1x128x128xbf16>
    %8 = vector.shape_cast %7 : vector<1x128x128xbf16> to vector<128x128xbf16>
    %cst_7 = arith.constant dense<0.000000e+00> : vector<128x128xf32>
    %9 = tpu.matmul %6, %8, %cst_7 {dimension_numbers = #tpu.dot_dimension_numbers<[1], [0], [0], [1], [0, 0, 1, 1], [], []>} : vector<128x128xbf16>, vector<128x128xbf16>, vector<128x128xf32> -> vector<128x128xf32>
    %c0_8 = arith.constant 0 : index
    %c0_9 = arith.constant 0 : index
    %c0_10 = arith.constant 0 : index
    %10 = vector.load %arg5[%c0_8, %c0_9, %c0_10] : memref<1x1x128xf32, #tpu.memory_space<vmem>>, vector<1x1x128xf32>
    %11 = vector.shape_cast %10 : vector<1x1x128xf32> to vector<1x128xf32>
    %12 = vector.broadcast %11 : vector<1x128xf32> to vector<128x128xf32>
    %13 = arith.addf %9, %12 : vector<128x128xf32>
    %cst_11 = arith.constant 0.000000e+00 : f32
    %14 = vector.broadcast %cst_11 : f32 to vector<128x128xf32>
    %15 = arith.maximumf %13, %14 : vector<128x128xf32>
    %16 = arith.truncf %15 : vector<128x128xf32> to vector<128x128xbf16>
    %c0_12 = arith.constant 0 : index
    %c0_13 = arith.constant 0 : index
    %c0_14 = arith.constant 0 : index
    %17 = vector.load %arg6[%c0_12, %c0_13, %c0_14] : memref<1x128x128xbf16, #tpu.memory_space<vmem>>, vector<1x128x128xbf16>
    %18 = vector.shape_cast %17 : vector<1x128x128xbf16> to vector<128x128xbf16>
    %cst_15 = arith.constant dense<0.000000e+00> : vector<128x128xf32>
    %19 = tpu.matmul %16, %18, %cst_15 {dimension_numbers = #tpu.dot_dimension_numbers<[1], [0], [0], [1], [0, 0, 1, 1], [], []>} : vector<128x128xbf16>, vector<128x128xbf16>, vector<128x128xf32> -> vector<128x128xf32>
    %c0_16 = arith.constant 0 : index
    %c0_17 = arith.constant 0 : index
    %c0_18 = arith.constant 0 : index
    %20 = vector.load %arg7[%c0_16, %c0_17, %c0_18] : memref<1x1x128xf32, #tpu.memory_space<vmem>>, vector<1x1x128xf32>
    %21 = vector.shape_cast %20 : vector<1x1x128xf32> to vector<1x128xf32>
    %22 = vector.broadcast %21 : vector<1x128xf32> to vector<128x128xf32>
    %23 = arith.addf %19, %22 : vector<128x128xf32>
    %cst_19 = arith.constant 0.000000e+00 : f32
    %24 = vector.broadcast %cst_19 : f32 to vector<128x128xf32>
    %25 = arith.maximumf %23, %24 : vector<128x128xf32>
    %26 = arith.truncf %25 : vector<128x128xf32> to vector<128x128xbf16>
    %c0_20 = arith.constant 0 : index
    %c0_21 = arith.constant 0 : index
    %27 = vector.load %arg11[%c0_20, %c0_21] : memref<128x128xbf16, #tpu.memory_space<vmem>>, vector<128x128xbf16>
    tpu.vector_store %arg11[%c0_20, %c0_21], %26 {strides = array<i32>} : memref<128x128xbf16, #tpu.memory_space<vmem>>, vector<128x128xbf16>,
    %c1_i32 = arith.constant 1 : i32
    %28 = arith.cmpi eq, %arg0, %c1_i32 : i32
    %29 = arith.extui %28 : i1 to i32
    %c0_i32_22 = arith.constant 0 : i32
    %30 = arith.cmpi ne, %29, %c0_i32_22 : i32
    scf.if %30 {
      %c0_23 = arith.constant 0 : index
      %c0_24 = arith.constant 0 : index
      %31 = vector.load %arg3[%c0_23, %c0_24] : memref<8x128xbf16, #tpu.memory_space<vmem>>, vector<8x128xbf16>
      %32 = arith.truncf %25 : vector<128x128xf32> to vector<128x128xbf16>
      %cst_25 = arith.constant dense<0.000000e+00> : vector<8x128xf32>
      %33 = tpu.matmul %31, %32, %cst_25 {dimension_numbers = #tpu.dot_dimension_numbers<[1], [0], [0], [1], [0, 0, 1, 1], [], []>} : vector<8x128xbf16>, vector<128x128xbf16>, vector<8x128xf32> -> vector<8x128xf32>
      %34 = arith.truncf %33 : vector<8x128xf32> to vector<8x128xbf16>
      %c0_26 = arith.constant 0 : index
      %c0_27 = arith.constant 0 : index
      %35 = vector.load %arg8[%c0_26, %c0_27] : memref<128x128xbf16, #tpu.memory_space<vmem>>, vector<128x128xbf16>
      %cst_28 = arith.constant dense<0.000000e+00> : vector<8x128xf32>
      %36 = tpu.matmul %34, %35, %cst_28 {dimension_numbers = #tpu.dot_dimension_numbers<[1], [0], [0], [1], [0, 0, 1, 1], [], []>} : vector<8x128xbf16>, vector<128x128xbf16>, vector<8x128xf32> -> vector<8x128xf32>
      %c0_29 = arith.constant 0 : index
      %c0_30 = arith.constant 0 : index
      %37 = vector.load %arg9[%c0_29, %c0_30] : memref<1x128xf32, #tpu.memory_space<vmem>>, vector<1x128xf32>
      %38 = vector.broadcast %37 : vector<1x128xf32> to vector<8x128xf32>
      %39 = arith.addf %36, %38 : vector<8x128xf32>
      %c0_31 = arith.constant 0 : index
      %c0_32 = arith.constant 0 : index
      %40 = vector.load %arg10[%c0_31, %c0_32] : memref<8x128xf32, #tpu.memory_space<vmem>>, vector<8x128xf32>
      tpu.vector_store %arg10[%c0_31, %c0_32], %39 {strides = array<i32>} : memref<8x128xf32, #tpu.memory_space<vmem>>, vector<8x128xf32>,
    } else {
    }
    return
  }
  func.func @transform_0(%arg0: i32) -> (i32, i32) {
    %c0_i32 = arith.constant 0 : i32
    %c0_i32_0 = arith.constant 0 : i32
    %c0_i32_1 = arith.constant 0 : i32
    return %c0_i32, %c0_i32_0 : i32, i32
  }
  func.func @transform_1(%arg0: i32) -> (i32, i32) {
    %c0_i32 = arith.constant 0 : i32
    %c0_i32_0 = arith.constant 0 : i32
    %c0_i32_1 = arith.constant 0 : i32
    return %c0_i32, %c0_i32_0 : i32, i32
  }
  func.func @transform_2(%arg0: i32) -> (i32, i32) {
    %c0_i32 = arith.constant 0 : i32
    %c0_i32_0 = arith.constant 0 : i32
    %c0_i32_1 = arith.constant 0 : i32
    return %c0_i32, %c0_i32_0 : i32, i32
  }
  func.func @transform_3(%arg0: i32) -> (i32, i32, i32) {
    %c0_i32 = arith.constant 0 : i32
    %c0_i32_0 = arith.constant 0 : i32
    %c0_i32_1 = arith.constant 0 : i32
    return %arg0, %c0_i32, %c0_i32_0 : i32, i32, i32
  }
  func.func @transform_4(%arg0: i32) -> (i32, i32, i32) {
    %c0_i32 = arith.constant 0 : i32
    %c0_i32_0 = arith.constant 0 : i32
    %c0_i32_1 = arith.constant 0 : i32
    return %arg0, %c0_i32, %c0_i32_0 : i32, i32, i32
  }
  func.func @transform_5(%arg0: i32) -> (i32, i32, i32) {
    %c0_i32 = arith.constant 0 : i32
    %c0_i32_0 = arith.constant 0 : i32
    %c0_i32_1 = arith.constant 0 : i32
    return %arg0, %c0_i32, %c0_i32_0 : i32, i32, i32
  }
  func.func @transform_6(%arg0: i32) -> (i32, i32, i32) {
    %c0_i32 = arith.constant 0 : i32
    %c0_i32_0 = arith.constant 0 : i32
    %c0_i32_1 = arith.constant 0 : i32
    return %arg0, %c0_i32, %c0_i32_0 : i32, i32, i32
  }
  func.func @transform_7(%arg0: i32) -> (i32, i32) {
    %c0_i32 = arith.constant 0 : i32
    %c0_i32_0 = arith.constant 0 : i32
    %c0_i32_1 = arith.constant 0 : i32
    return %c0_i32, %c0_i32_0 : i32, i32
  }
  func.func @transform_8(%arg0: i32) -> (i32, i32) {
    %c0_i32 = arith.constant 0 : i32
    %c0_i32_0 = arith.constant 0 : i32
    %c0_i32_1 = arith.constant 0 : i32
    return %c0_i32, %c0_i32_0 : i32, i32
  }
  func.func @transform_9(%arg0: i32) -> (i32, i32) {
    %c0_i32 = arith.constant 0 : i32
    %c0_i32_0 = arith.constant 0 : i32
    %c0_i32_1 = arith.constant 0 : i32
    return %c0_i32, %c0_i32_0 : i32, i32
  }
}

module attributes {stable_mosaic.version = 11 : i64} {
  func.func @_gin_fused_kernel(%arg0: i32, %arg1: memref<128x128xbf16, #tpu.memory_space<vmem>>, %arg2: memref<128x128xbf16, #tpu.memory_space<vmem>>, %arg3: memref<8x128xbf16, #tpu.memory_space<vmem>>, %arg4: memref<1x128x128xbf16, #tpu.memory_space<vmem>>, %arg5: memref<1x1x128xf32, #tpu.memory_space<vmem>>, %arg6: memref<1x128x128xbf16, #tpu.memory_space<vmem>>, %arg7: memref<1x1x128xf32, #tpu.memory_space<vmem>>, %arg8: memref<128x128xbf16, #tpu.memory_space<vmem>>, %arg9: memref<1x128xf32, #tpu.memory_space<vmem>>, %arg10: memref<8x128xf32, #tpu.memory_space<vmem>>, %arg11: memref<128x128xbf16, #tpu.memory_space<vmem>>) attributes {dimension_semantics = [#tpu.dimension_semantics<arbitrary>], iteration_bounds = array<i64: 2>, scalar_prefetch = 0 : i64, scratch_operands = 1 : i64, tpu.core_type = #tpu.core_type<tc>, window_params = [{pipeline_mode = #tpu.pipeline_mode<synchronous>, transform_indices = @transform_0, window_bounds = array<i64: 128, 128>}, {pipeline_mode = #tpu.pipeline_mode<synchronous>, transform_indices = @transform_1, window_bounds = array<i64: 128, 128>}, {pipeline_mode = #tpu.pipeline_mode<synchronous>, transform_indices = @transform_2, window_bounds = array<i64: 8, 128>}, {transform_indices = @transform_3, window_bounds = array<i64: 1, 128, 128>}, {transform_indices = @transform_4, window_bounds = array<i64: 1, 1, 128>}, {transform_indices = @transform_5, window_bounds = array<i64: 1, 128, 128>}, {transform_indices = @transform_6, window_bounds = array<i64: 1, 1, 128>}, {pipeline_mode = #tpu.pipeline_mode<synchronous>, transform_indices = @transform_7, window_bounds = array<i64: 128, 128>}, {pipeline_mode = #tpu.pipeline_mode<synchronous>, transform_indices = @transform_8, window_bounds = array<i64: 1, 128>}, {pipeline_mode = #tpu.pipeline_mode<synchronous>, transform_indices = @transform_9, window_bounds = array<i64: 8, 128>}]} {
    %c0_i32 = arith.constant 0 : i32
    %0 = arith.cmpi eq, %arg0, %c0_i32 : i32
    %1 = arith.extui %0 : i1 to i32
    %c0_i32_0 = arith.constant 0 : i32
    %2 = arith.cmpi ne, %1, %c0_i32_0 : i32
    scf.if %2 {
      %c0_23 = arith.constant 0 : index
      %c0_24 = arith.constant 0 : index
      %31 = vector.load %arg2[%c0_23, %c0_24] : memref<128x128xbf16, #tpu.memory_space<vmem>>, vector<128x128xbf16>
      %c0_25 = arith.constant 0 : index
      %c0_26 = arith.constant 0 : index
      %32 = vector.load %arg11[%c0_25, %c0_26] : memref<128x128xbf16, #tpu.memory_space<vmem>>, vector<128x128xbf16>
      tpu.vector_store %arg11[%c0_25, %c0_26], %31 {strides = array<i32>} : memref<128x128xbf16, #tpu.memory_space<vmem>>, vector<128x128xbf16>,
    } else {
    }
    %c0 = arith.constant 0 : index
    %c0_1 = arith.constant 0 : index
    %3 = vector.load %arg11[%c0, %c0_1] : memref<128x128xbf16, #tpu.memory_space<vmem>>, vector<128x128xbf16>
    %c0_2 = arith.constant 0 : index
    %c0_3 = arith.constant 0 : index
    %4 = vector.load %arg1[%c0_2, %c0_3] : memref<128x128xbf16, #tpu.memory_space<vmem>>, vector<128x128xbf16>
    %cst = arith.constant dense<0.000000e+00> : vector<128x128xf32>
    %5 = tpu.matmul %4, %3, %cst {dimension_numbers = #tpu.dot_dimension_numbers<[1], [0], [0], [1], [0, 0, 1, 1], [], []>} : vector<128x128xbf16>, vector<128x128xbf16>, vector<128x128xf32> -> vector<128x128xf32>
    %6 = arith.truncf %5 : vector<128x128xf32> to vector<128x128xbf16>
    %c0_4 = arith.constant 0 : index
    %c0_5 = arith.constant 0 : index
    %c0_6 = arith.constant 0 : index
    %7 = vector.load %arg4[%c0_4, %c0_5, %c0_6] : memref<1x128x128xbf16, #tpu.memory_space<vmem>>, vector<1x128x128xbf16>
    %8 = vector.shape_cast %7 : vector<1x128x128xbf16> to vector<128x128xbf16>
    %cst_7 = arith.constant dense<0.000000e+00> : vector<128x128xf32>
    %9 = tpu.matmul %6, %8, %cst_7 {dimension_numbers = #tpu.dot_dimension_numbers<[1], [0], [0], [1], [0, 0, 1, 1], [], []>} : vector<128x128xbf16>, vector<128x128xbf16>, vector<128x128xf32> -> vector<128x128xf32>
    %c0_8 = arith.constant 0 : index
    %c0_9 = arith.constant 0 : index
    %c0_10 = arith.constant 0 : index
    %10 = vector.load %arg5[%c0_8, %c0_9, %c0_10] : memref<1x1x128xf32, #tpu.memory_space<vmem>>, vector<1x1x128xf32>
    %11 = vector.shape_cast %10 : vector<1x1x128xf32> to vector<1x128xf32>
    %12 = vector.broadcast %11 : vector<1x128xf32> to vector<128x128xf32>
    %13 = arith.addf %9, %12 : vector<128x128xf32>
    %cst_11 = arith.constant 0.000000e+00 : f32
    %14 = vector.broadcast %cst_11 : f32 to vector<128x128xf32>
    %15 = arith.maximumf %13, %14 : vector<128x128xf32>
    %16 = arith.truncf %15 : vector<128x128xf32> to vector<128x128xbf16>
    %c0_12 = arith.constant 0 : index
    %c0_13 = arith.constant 0 : index
    %c0_14 = arith.constant 0 : index
    %17 = vector.load %arg6[%c0_12, %c0_13, %c0_14] : memref<1x128x128xbf16, #tpu.memory_space<vmem>>, vector<1x128x128xbf16>
    %18 = vector.shape_cast %17 : vector<1x128x128xbf16> to vector<128x128xbf16>
    %cst_15 = arith.constant dense<0.000000e+00> : vector<128x128xf32>
    %19 = tpu.matmul %16, %18, %cst_15 {dimension_numbers = #tpu.dot_dimension_numbers<[1], [0], [0], [1], [0, 0, 1, 1], [], []>} : vector<128x128xbf16>, vector<128x128xbf16>, vector<128x128xf32> -> vector<128x128xf32>
    %c0_16 = arith.constant 0 : index
    %c0_17 = arith.constant 0 : index
    %c0_18 = arith.constant 0 : index
    %20 = vector.load %arg7[%c0_16, %c0_17, %c0_18] : memref<1x1x128xf32, #tpu.memory_space<vmem>>, vector<1x1x128xf32>
    %21 = vector.shape_cast %20 : vector<1x1x128xf32> to vector<1x128xf32>
    %22 = vector.broadcast %21 : vector<1x128xf32> to vector<128x128xf32>
    %23 = arith.addf %19, %22 : vector<128x128xf32>
    %cst_19 = arith.constant 0.000000e+00 : f32
    %24 = vector.broadcast %cst_19 : f32 to vector<128x128xf32>
    %25 = arith.maximumf %23, %24 : vector<128x128xf32>
    %26 = arith.truncf %25 : vector<128x128xf32> to vector<128x128xbf16>
    %c0_20 = arith.constant 0 : index
    %c0_21 = arith.constant 0 : index
    %27 = vector.load %arg11[%c0_20, %c0_21] : memref<128x128xbf16, #tpu.memory_space<vmem>>, vector<128x128xbf16>
    tpu.vector_store %arg11[%c0_20, %c0_21], %26 {strides = array<i32>} : memref<128x128xbf16, #tpu.memory_space<vmem>>, vector<128x128xbf16>,
    %c1_i32 = arith.constant 1 : i32
    %28 = arith.cmpi eq, %arg0, %c1_i32 : i32
    %29 = arith.extui %28 : i1 to i32
    %c0_i32_22 = arith.constant 0 : i32
    %30 = arith.cmpi ne, %29, %c0_i32_22 : i32
    scf.if %30 {
      %c0_23 = arith.constant 0 : index
      %c0_24 = arith.constant 0 : index
      %31 = vector.load %arg3[%c0_23, %c0_24] : memref<8x128xbf16, #tpu.memory_space<vmem>>, vector<8x128xbf16>
      %32 = arith.truncf %25 : vector<128x128xf32> to vector<128x128xbf16>
      %cst_25 = arith.constant dense<0.000000e+00> : vector<8x128xf32>
      %33 = tpu.matmul %31, %32, %cst_25 {dimension_numbers = #tpu.dot_dimension_numbers<[1], [0], [0], [1], [0, 0, 1, 1], [], []>} : vector<8x128xbf16>, vector<128x128xbf16>, vector<8x128xf32> -> vector<8x128xf32>
      %34 = arith.truncf %33 : vector<8x128xf32> to vector<8x128xbf16>
      %c0_26 = arith.constant 0 : index
      %c0_27 = arith.constant 0 : index
      %35 = vector.load %arg8[%c0_26, %c0_27] : memref<128x128xbf16, #tpu.memory_space<vmem>>, vector<128x128xbf16>
      %cst_28 = arith.constant dense<0.000000e+00> : vector<8x128xf32>
      %36 = tpu.matmul %34, %35, %cst_28 {dimension_numbers = #tpu.dot_dimension_numbers<[1], [0], [0], [1], [0, 0, 1, 1], [], []>} : vector<8x128xbf16>, vector<128x128xbf16>, vector<8x128xf32> -> vector<8x128xf32>
      %c0_29 = arith.constant 0 : index
      %c0_30 = arith.constant 0 : index
      %37 = vector.load %arg9[%c0_29, %c0_30] : memref<1x128xf32, #tpu.memory_space<vmem>>, vector<1x128xf32>
      %38 = vector.broadcast %37 : vector<1x128xf32> to vector<8x128xf32>
      %39 = arith.addf %36, %38 : vector<8x128xf32>
      %c0_31 = arith.constant 0 : index
      %c0_32 = arith.constant 0 : index
      %40 = vector.load %arg10[%c0_31, %c0_32] : memref<8x128xf32, #tpu.memory_space<vmem>>, vector<8x128xf32>
      tpu.vector_store %arg10[%c0_31, %c0_32], %39 {strides = array<i32>} : memref<8x128xf32, #tpu.memory_space<vmem>>, vector<8x128xf32>,
    } else {
    }
    return
  }
  func.func @transform_0(%arg0: i32) -> (i32, i32) {
    %c0_i32 = arith.constant 0 : i32
    %c0_i32_0 = arith.constant 0 : i32
    %c0_i32_1 = arith.constant 0 : i32
    return %c0_i32, %c0_i32_0 : i32, i32
  }
  func.func @transform_1(%arg0: i32) -> (i32, i32) {
    %c0_i32 = arith.constant 0 : i32
    %c0_i32_0 = arith.constant 0 : i32
    %c0_i32_1 = arith.constant 0 : i32
    return %c0_i32, %c0_i32_0 : i32, i32
  }
  func.func @transform_2(%arg0: i32) -> (i32, i32) {
    %c0_i32 = arith.constant 0 : i32
    %c0_i32_0 = arith.constant 0 : i32
    %c0_i32_1 = arith.constant 0 : i32
    return %c0_i32, %c0_i32_0 : i32, i32
  }
  func.func @transform_3(%arg0: i32) -> (i32, i32, i32) {
    %c0_i32 = arith.constant 0 : i32
    %c0_i32_0 = arith.constant 0 : i32
    %c0_i32_1 = arith.constant 0 : i32
    return %arg0, %c0_i32, %c0_i32_0 : i32, i32, i32
  }
  func.func @transform_4(%arg0: i32) -> (i32, i32, i32) {
    %c0_i32 = arith.constant 0 : i32
    %c0_i32_0 = arith.constant 0 : i32
    %c0_i32_1 = arith.constant 0 : i32
    return %arg0, %c0_i32, %c0_i32_0 : i32, i32, i32
  }
  func.func @transform_5(%arg0: i32) -> (i32, i32, i32) {
    %c0_i32 = arith.constant 0 : i32
    %c0_i32_0 = arith.constant 0 : i32
    %c0_i32_1 = arith.constant 0 : i32
    return %arg0, %c0_i32, %c0_i32_0 : i32, i32, i32
  }
  func.func @transform_6(%arg0: i32) -> (i32, i32, i32) {
    %c0_i32 = arith.constant 0 : i32
    %c0_i32_0 = arith.constant 0 : i32
    %c0_i32_1 = arith.constant 0 : i32
    return %arg0, %c0_i32, %c0_i32_0 : i32, i32, i32
  }
  func.func @transform_7(%arg0: i32) -> (i32, i32) {
    %c0_i32 = arith.constant 0 : i32
    %c0_i32_0 = arith.constant 0 : i32
    %c0_i32_1 = arith.constant 0 : i32
    return %c0_i32, %c0_i32_0 : i32, i32
  }
  func.func @transform_8(%arg0: i32) -> (i32, i32) {
    %c0_i32 = arith.constant 0 : i32
    %c0_i32_0 = arith.constant 0 : i32
    %c0_i32_1 = arith.constant 0 : i32
    return %c0_i32, %c0_i32_0 : i32, i32
  }
  func.func @transform_9(%arg0: i32) -> (i32, i32) {
    %c0_i32 = arith.constant 0 : i32
    %c0_i32_0 = arith.constant 0 : i32
    %c0_i32_1 = arith.constant 0 : i32
    return %c0_i32, %c0_i32_0 : i32, i32
  }
}

</mosaic_0001>

<llo_original>
// kernel: tpu_custom_call.1
$region0: #{tpu_custom_call.1}
  #allocation0 [shape = 'u32[]', space=smem, size = 0x4, offset = 0x4, fixed_abs, tag = 'smem constant byte address 0x4 - core index']
  #allocation1 [shape = 'u32[144,128]{1,0:T(1,128)}', space=vmem, size = 0x12000, scoped, tag = 'internal scratch']
  #allocation2 [shape = 'bf16[128,128]{1,0:T(8,128)(2,1)}', space=vmem, size = 0x8000, scoped, tag = 'scratch operand']
  %s0 = inlined_call_operand.hbm [shape: bf16[128,128], index: 0, kind: input, shape index: {}]
  %s1 = inlined_call_operand.hbm [shape: bf16[128,128], index: 1, kind: input, shape index: {}]
  %s2 = inlined_call_operand.hbm [shape: bf16[8,128], index: 2, kind: input, shape index: {}]
  %s3 = inlined_call_operand.hbm [shape: bf16[2,128,128], index: 3, kind: input, shape index: {}]
  %s4 = inlined_call_operand.vmem [shape: f32[2,1,128], index: 4, kind: input, shape index: {}]
  %s5 = inlined_call_operand.hbm [shape: bf16[2,128,128], index: 5, kind: input, shape index: {}]
  %s6 = inlined_call_operand.vmem [shape: f32[2,1,128], index: 6, kind: input, shape index: {}]
  %s7 = inlined_call_operand.hbm [shape: bf16[128,128], index: 7, kind: input, shape index: {}]
  %s8 = inlined_call_operand.vmem [shape: f32[1,128], index: 8, kind: input, shape index: {}]
  %s9 = inlined_call_operand.hbm [shape: f32[8,128], index: 9, kind: output, shape index: {}]
  %s10 = sld [smem:[#allocation0]]
  $region101: #{tpu_custom_call.1} parent=0
    _
  %s12 = ssub.s32 1, %s10
  %s13 = scalar_select 0, %s12, %s10
  $region1: #{tpu_custom_call.1} parent=0
    #allocation3 [shape = 'u8[32768]{0}', space=vmem, size = 0x8000, scoped, tag = 'input window, operand 0, single buffered']
    #allocation4 [shape = 's32[2]{0}', space=sflag, size = 0x8, scoped, tag = 'scoped memory for tpu_custom_call.1']
    #allocation5 [shape = 's32[2]{0}', space=sflag, size = 0x8, scoped, tag = 'scoped memory for tpu_custom_call.1']
    #allocation6 [shape = 'u8[32768]{0}', space=vmem, size = 0x8000, scoped, tag = 'input window, operand 1, single buffered']
    #allocation7 [shape = 's32[1]{0}', space=sflag, size = 0x4, scoped, tag = 'scoped memory for tpu_custom_call.1']
    #allocation8 [shape = 'u8[2048]{0}', space=vmem, size = 0x800, scoped, tag = 'input window, operand 2, single buffered']
    #allocation9 [shape = 'u8[65536]{0}', space=vmem, size = 0x10000, scoped, tag = 'input window, operand 3']
    #allocation10 [shape = 's32[2]{0}', space=sflag, size = 0x8, scoped, tag = 'scoped memory for tpu_custom_call.1']
    #allocation11 [shape = 'u8[65536]{0}', space=vmem, size = 0x10000, scoped, tag = 'input window, operand 5']
    #allocation12 [shape = 'u8[32768]{0}', space=vmem, size = 0x8000, scoped, tag = 'input window, operand 7, single buffered']
    #allocation13 [shape = 's32[1]{0}', space=sflag, size = 0x4, scoped, tag = 'scoped memory for tpu_custom_call.1']
    #allocation14 [shape = 'u8[4096]{0}', space=vmem, size = 0x1000, scoped, tag = 'output window, operand 0, single buffered']
    %14 = vsyncpa [#allocation4], 0
    %15 = vsyncpa [#allocation7], 0
    %16 = vsyncpa [#allocation10], 0
    %s17 = scalar_lea.sflag [#allocation10], 1
    %18 = vsyncpa %s17, 0
    %19 = vsyncpa [#allocation13], 0
    %20 = vsyncpa [#allocation5], 0
    loop: start=0, step=1, limit=4
    $region2: #{tpu_custom_call.1} parent=1 // loop_pre_header
      _
    $region3: #{tpu_custom_call.1} parent=1 // loop_header
      %s22 = sphi 0, %s26
      %p23 = scmp.ge.s32.totalorder %s22, 4
      %s30 = sphi 0, %s30
      %s32 = sphi 0, %s30
      %s33 = sphi 0, %s32
      %s47 = sphi 0, %s33
      %s51 = sphi 0, %s51
      %s53 = sphi 0, %s51
      %s54 = sphi 0, %s53
      %s68 = sphi 0, %s54
      %s72 = sphi 0, %s72
      %s74 = sphi 0, %s72
      %s75 = sphi 0, %s74
      %s89 = sphi 0, %s75
      %s95 = sphi 0, %s97
      %s98 = sphi 0, %s95
      %s99 = sphi 0, %s98
      %s115 = sphi 0, %s99
      %s121 = sphi 0, %s123
      %s124 = sphi 0, %s121
      %s125 = sphi 0, %s124
      %s141 = sphi 0, %s125
      %s147 = sphi 0, %s149
      %s150 = sphi 0, %s147
      %s151 = sphi 0, %s150
      %s167 = sphi 0, %s151
      %s173 = sphi 0, %s175
      %s176 = sphi 0, %s173
      %s177 = sphi 0, %s176
      %s193 = sphi 0, %s177
      %s197 = sphi 0, %s197
      %s199 = sphi 0, %s197
      %s200 = sphi 0, %s199
      %s214 = sphi 0, %s200
      %s218 = sphi 0, %s218
      %s220 = sphi 0, %s218
      %s221 = sphi 0, %s220
      %s235 = sphi 0, %s221
      %s239 = sphi 0, %s239
      %s241 = sphi 0, %s239
      %s242 = sphi 0, %s241
      %s256 = sphi 0, %s242
    $region4: #{tpu_custom_call.1} parent=1 // loop_header_branch
      %25 = sbr.rel (%p23) target = $region8
    $region5: #{tpu_custom_call.1} parent=1 // loop_body
      %s27 = ssub.s32 %s22, 1
      %s28 = ssub.s32 %s22, 2
      %s29 = sadd.s32 %s22, 1
      %s31 = sadd.s32 %s30, 1
      %p34 = scmp.eq.s32.totalorder %s22, 1
      %p35 = scmp.ne.s32.totalorder %s30, %s32
      %p36 = scmp.eq.s32.totalorder %s22, 0
      %p37 = por %p35, %p36
      %p38 = scmp.ne.s32.totalorder %s30, %s32
      %p39 = scmp.eq.s32.totalorder %s27, 1
      %p40 = por %p38, %p39
      %p41 = scmp.ne.s32.totalorder %s32, %s33
      %p42 = scmp.eq.s32.totalorder %s27, 0
      %p43 = por %p41, %p42
      %p44 = scmp.ne.s32.totalorder %s32, %s33
      %p45 = scmp.eq.s32.totalorder %s28, 1
      %p46 = por %p44, %p45
      %p48 = scmp.ne.s32.totalorder %s33, %s47
      %p49 = scmp.eq.s32.totalorder %s28, 0
      %p50 = por %p48, %p49
      %s52 = sadd.s32 %s51, 1
      %p55 = scmp.eq.s32.totalorder %s22, 1
      %p56 = scmp.ne.s32.totalorder %s51, %s53
      %p57 = scmp.eq.s32.totalorder %s22, 0
      %p58 = por %p56, %p57
      %p59 = scmp.ne.s32.totalorder %s51, %s53
      %p60 = scmp.eq.s32.totalorder %s27, 1
      %p61 = por %p59, %p60
      %p62 = scmp.ne.s32.totalorder %s53, %s54
      %p63 = scmp.eq.s32.totalorder %s27, 0
      %p64 = por %p62, %p63
      %p65 = scmp.ne.s32.totalorder %s53, %s54
      %p66 = scmp.eq.s32.totalorder %s28, 1
      %p67 = por %p65, %p66
      %p69 = scmp.ne.s32.totalorder %s54, %s68
      %p70 = scmp.eq.s32.totalorder %s28, 0
      %p71 = por %p69, %p70
      %s73 = sadd.s32 %s72, 1
      %p76 = scmp.eq.s32.totalorder %s22, 1
      %p77 = scmp.ne.s32.totalorder %s72, %s74
      %p78 = scmp.eq.s32.totalorder %s22, 0
      %p79 = por %p77, %p78
      %p80 = scmp.ne.s32.totalorder %s72, %s74
      %p81 = scmp.eq.s32.totalorder %s27, 1
      %p82 = por %p80, %p81
      %p83 = scmp.ne.s32.totalorder %s74, %s75
      %p84 = scmp.eq.s32.totalorder %s27, 0
      %p85 = por %p83, %p84
      %p86 = scmp.ne.s32.totalorder %s74, %s75
      %p87 = scmp.eq.s32.totalorder %s28, 1
      %p88 = por %p86, %p87
      %p90 = scmp.ne.s32.totalorder %s75, %s89
      %p91 = scmp.eq.s32.totalorder %s28, 0
      %p92 = por %p90, %p91
      %s93 = ssub.s32 %s22, %s29
      %p94 = scmp.eq.s32.totalorder %s93, 0
      %s96 = sadd.s32 %s95, 1
      %s97 = scalar_select %p94, %s95, %s96
      %p100 = pneg %p94
      %p101 = scmp.eq.s32.totalorder %s22, 1
      %p102 = por %p100, %p101
      %p103 = scmp.ne.s32.totalorder %s95, %s98
      %p104 = scmp.eq.s32.totalorder %s22, 0
      %p105 = por %p103, %p104
      %p106 = scmp.ne.s32.totalorder %s95, %s98
      %p107 = scmp.eq.s32.totalorder %s27, 1
      %p108 = por %p106, %p107
      %p109 = scmp.ne.s32.totalorder %s98, %s99
      %p110 = scmp.eq.s32.totalorder %s27, 0
      %p111 = por %p109, %p110
      %p112 = scmp.ne.s32.totalorder %s98, %s99
      %p113 = scmp.eq.s32.totalorder %s28, 1
      %p114 = por %p112, %p113
      %p116 = scmp.ne.s32.totalorder %s99, %s115
      %p117 = scmp.eq.s32.totalorder %s28, 0
      %p118 = por %p116, %p117
      %s119 = ssub.s32 %s22, %s29
      %p120 = scmp.eq.s32.totalorder %s119, 0
      %s122 = sadd.s32 %s121, 1
      %s123 = scalar_select %p120, %s121, %s122
      %p126 = pneg %p120
      %p127 = scmp.eq.s32.totalorder %s22, 1
      %p128 = por %p126, %p127
      %p129 = scmp.ne.s32.totalorder %s121, %s124
      %p130 = scmp.eq.s32.totalorder %s22, 0
      %p131 = por %p129, %p130
      %p132 = scmp.ne.s32.totalorder %s121, %s124
      %p133 = scmp.eq.s32.totalorder %s27, 1
      %p134 = por %p132, %p133
      %p135 = scmp.ne.s32.totalorder %s124, %s125
      %p136 = scmp.eq.s32.totalorder %s27, 0
      %p137 = por %p135, %p136
      %p138 = scmp.ne.s32.totalorder %s124, %s125
      %p139 = scmp.eq.s32.totalorder %s28, 1
      %p140 = por %p138, %p139
      %p142 = scmp.ne.s32.totalorder %s125, %s141
      %p143 = scmp.eq.s32.totalorder %s28, 0
      %p144 = por %p142, %p143
      %s145 = ssub.s32 %s22, %s29
      %p146 = scmp.eq.s32.totalorder %s145, 0
      %s148 = sadd.s32 %s147, 1
      %s149 = scalar_select %p146, %s147, %s148
      %p152 = pneg %p146
      %p153 = scmp.eq.s32.totalorder %s22, 1
      %p154 = por %p152, %p153
      %p155 = scmp.ne.s32.totalorder %s147, %s150
      %p156 = scmp.eq.s32.totalorder %s22, 0
      %p157 = por %p155, %p156
      %p158 = scmp.ne.s32.totalorder %s147, %s150
      %p159 = scmp.eq.s32.totalorder %s27, 1
      %p160 = por %p158, %p159
      %p161 = scmp.ne.s32.totalorder %s150, %s151
      %p162 = scmp.eq.s32.totalorder %s27, 0
      %p163 = por %p161, %p162
      %p164 = scmp.ne.s32.totalorder %s150, %s151
      %p165 = scmp.eq.s32.totalorder %s28, 1
      %p166 = por %p164, %p165
      %p168 = scmp.ne.s32.totalorder %s151, %s167
      %p169 = scmp.eq.s32.totalorder %s28, 0
      %p170 = por %p168, %p169
      %s171 = ssub.s32 %s22, %s29
      %p172 = scmp.eq.s32.totalorder %s171, 0
      %s174 = sadd.s32 %s173, 1
      %s175 = scalar_select %p172, %s173, %s174
      %p178 = pneg %p172
      %p179 = scmp.eq.s32.totalorder %s22, 1
      %p180 = por %p178, %p179
      %p181 = scmp.ne.s32.totalorder %s173, %s176
      %p182 = scmp.eq.s32.totalorder %s22, 0
      %p183 = por %p181, %p182
      %p184 = scmp.ne.s32.totalorder %s173, %s176
      %p185 = scmp.eq.s32.totalorder %s27, 1
      %p186 = por %p184, %p185
      %p187 = scmp.ne.s32.totalorder %s176, %s177
      %p188 = scmp.eq.s32.totalorder %s27, 0
      %p189 = por %p187, %p188
      %p190 = scmp.ne.s32.totalorder %s176, %s177
      %p191 = scmp.eq.s32.totalorder %s28, 1
      %p192 = por %p190, %p191
      %p194 = scmp.ne.s32.totalorder %s177, %s193
      %p195 = scmp.eq.s32.totalorder %s28, 0
      %p196 = por %p194, %p195
      %s198 = sadd.s32 %s197, 1
      %p201 = scmp.eq.s32.totalorder %s22, 1
      %p202 = scmp.ne.s32.totalorder %s197, %s199
      %p203 = scmp.eq.s32.totalorder %s22, 0
      %p204 = por %p202, %p203
      %p205 = scmp.ne.s32.totalorder %s197, %s199
      %p206 = scmp.eq.s32.totalorder %s27, 1
      %p207 = por %p205, %p206
      %p208 = scmp.ne.s32.totalorder %s199, %s200
      %p209 = scmp.eq.s32.totalorder %s27, 0
      %p210 = por %p208, %p209
      %p211 = scmp.ne.s32.totalorder %s199, %s200
      %p212 = scmp.eq.s32.totalorder %s28, 1
      %p213 = por %p211, %p212
      %p215 = scmp.ne.s32.totalorder %s200, %s214
      %p216 = scmp.eq.s32.totalorder %s28, 0
      %p217 = por %p215, %p216
      %s219 = sadd.s32 %s218, 1
      %p222 = scmp.eq.s32.totalorder %s22, 1
      %p223 = scmp.ne.s32.totalorder %s218, %s220
      %p224 = scmp.eq.s32.totalorder %s22, 0
      %p225 = por %p223, %p224
      %p226 = scmp.ne.s32.totalorder %s218, %s220
      %p227 = scmp.eq.s32.totalorder %s27, 1
      %p228 = por %p226, %p227
      %p229 = scmp.ne.s32.totalorder %s220, %s221
      %p230 = scmp.eq.s32.totalorder %s27, 0
      %p231 = por %p229, %p230
      %p232 = scmp.ne.s32.totalorder %s220, %s221
      %p233 = scmp.eq.s32.totalorder %s28, 1
      %p234 = por %p232, %p233
      %p236 = scmp.ne.s32.totalorder %s221, %s235
      %p237 = scmp.eq.s32.totalorder %s28, 0
      %p238 = por %p236, %p237
      %s240 = sadd.s32 %s239, 1
      %p243 = scmp.eq.s32.totalorder %s22, 1
      %p244 = scmp.ne.s32.totalorder %s239, %s241
      %p245 = scmp.eq.s32.totalorder %s22, 0
      %p246 = por %p244, %p245
      %p247 = scmp.ne.s32.totalorder %s239, %s241
      %p248 = scmp.eq.s32.totalorder %s27, 1
      %p249 = por %p247, %p248
      %p250 = scmp.ne.s32.totalorder %s241, %s242
      %p251 = scmp.eq.s32.totalorder %s27, 0
      %p252 = por %p250, %p251
      %p253 = scmp.ne.s32.totalorder %s241, %s242
      %p254 = scmp.eq.s32.totalorder %s28, 1
      %p255 = por %p253, %p254
      %p257 = scmp.ne.s32.totalorder %s242, %s256
      %p258 = scmp.eq.s32.totalorder %s28, 0
      %p259 = por %p257, %p258
      %p260 = scmp.le.s32.totalorder 1, %s22
      %p261 = scmp.lt.s32.totalorder %s22, 3
      %p262 = pnand %p260, %p261
      %p263 = pneg %p262
      // Predicated region
      $region9: #{tpu_custom_call.1} parent=5 // pred_check
        _
      $region10: #{tpu_custom_call.1} parent=5 // pred_check_branch
        %265 = sbr.rel (%p262) target = $region12
      $region11: #{tpu_custom_call.1} parent=5 // pred_region
        %s266 = ssub.s32 %s22, 1
        // Predicated region
        $region13: #{tpu_custom_call.1} parent=11 // pred_check
          %p267 = pneg %p43
        $region14: #{tpu_custom_call.1} parent=11 // pred_check_branch
          %269 = sbr.rel (%p267) target = $region16
        $region15: #{tpu_custom_call.1} parent=11 // pred_region
          %s271 = ssub.s32 1024, 1024
          %272 = vsyncadd [#allocation4], %s271
          %s273 = sshll.u32 [#allocation3], 4
          %s274 = int_to_ptr.vmem [resolvable:$true] %s273
          %279 = dma.hbm_to_vmem [thread:$0]  %s0, 1024, %s274, [#allocation4], 64, 64, 4
        $region16: #{tpu_custom_call.1} parent=11 // pred_fallthru
          _
        // Predicated region
        $region17: #{tpu_custom_call.1} parent=11 // pred_check
          %p280 = pneg %p64
        $region18: #{tpu_custom_call.1} parent=11 // pred_check_branch
          %282 = sbr.rel (%p280) target = $region20
        $region19: #{tpu_custom_call.1} parent=11 // pred_region
          %s284 = ssub.s32 1024, 1024
          %285 = vsyncadd [#allocation7], %s284
          %s286 = sshll.u32 [#allocation6], 4
          %s287 = int_to_ptr.vmem [resolvable:$true] %s286
          %292 = dma.hbm_to_vmem [thread:$0]  %s1, 1024, %s287, [#allocation7], 64, 64, 4
        $region20: #{tpu_custom_call.1} parent=11 // pred_fallthru
          _
        // Predicated region
        $region21: #{tpu_custom_call.1} parent=11 // pred_check
          %p293 = pneg %p85
        $region22: #{tpu_custom_call.1} parent=11 // pred_check_branch
          %295 = sbr.rel (%p293) target = $region24
        $region23: #{tpu_custom_call.1} parent=11 // pred_region
          %s297 = ssub.s32 64, 64
          %298 = vsyncadd [#allocation7], %s297
          %s300 = sshll.u32 [#allocation8], 4
          %s301 = int_to_ptr.vmem [resolvable:$true] %s300
          %303 = dma.hbm_to_vmem [thread:$0]  %s2, 64, %s301, [#allocation7]
        $region24: #{tpu_custom_call.1} parent=11 // pred_fallthru
          _
        // Predicated region
        $region25: #{tpu_custom_call.1} parent=11 // pred_check
          %p304 = pneg %p210
        $region26: #{tpu_custom_call.1} parent=11 // pred_check_branch
          %306 = sbr.rel (%p304) target = $region28
        $region27: #{tpu_custom_call.1} parent=11 // pred_region
          %s308 = ssub.s32 1024, 1024
          %309 = vsyncadd [#allocation13], %s308
          %s310 = sshll.u32 [#allocation12], 4
          %s311 = int_to_ptr.vmem [resolvable:$true] %s310
          %316 = dma.hbm_to_vmem [thread:$0]  %s7, 1024, %s311, [#allocation13], 64, 64, 4
        $region28: #{tpu_custom_call.1} parent=11 // pred_fallthru
          _
        // Predicated region
        $region29: #{tpu_custom_call.1} parent=11 // pred_check
          %p317 = pneg %p231
        $region30: #{tpu_custom_call.1} parent=11 // pred_check_branch
          %319 = sbr.rel (%p317) target = $region32
        $region31: #{tpu_custom_call.1} parent=11 // pred_region
          _
        $region32: #{tpu_custom_call.1} parent=11 // pred_fallthru
          _
      $region12: #{tpu_custom_call.1} parent=5 // pred_fallthru
        _
      %p320 = scmp.lt.s32.totalorder %s22, 2
      // Predicated region
      $region33: #{tpu_custom_call.1} parent=5 // pred_check
        %p321 = pneg %p320
      $region34: #{tpu_custom_call.1} parent=5 // pred_check_branch
        %323 = sbr.rel (%p321) target = $region36
      $region35: #{tpu_custom_call.1} parent=5 // pred_region
        // Predicated region
        $region37: #{tpu_custom_call.1} parent=35 // pred_check
          %p324 = pneg %p105
        $region38: #{tpu_custom_call.1} parent=35 // pred_check_branch
          %326 = sbr.rel (%p324) target = $region40
        $region39: #{tpu_custom_call.1} parent=35 // pred_region
          %s327 = sand.u32 %s22, 1
          %s328 = scalar_lea.sflag [#allocation10], %s327
          %s329 = sand.u32 %s95, 1
          %s330 = smul.addr %s329, 64
          %s331 = scalar_lea.vmem [#allocation9], %s330
          %s333 = ssub.s32 1024, 1024
          %334 = vsyncadd %s328, %s333
          %s335 = smul.addr %s22, 16
          %s336 = smul.addr %s335, 64
          %s337 = scalar_lea.hbm %s3, %s336
          %s338 = sshll.u32 %s331, 4
          %s339 = int_to_ptr.vmem [resolvable:$true] %s338
          %344 = dma.hbm_to_vmem [thread:$0]  %s337, 1024, %s339, %s328, 64, 64, 4
        $region40: #{tpu_custom_call.1} parent=35 // pred_fallthru
          _
        // Predicated region
        $region41: #{tpu_custom_call.1} parent=35 // pred_check
          %p345 = pneg %p131
        $region42: #{tpu_custom_call.1} parent=35 // pred_check_branch
          %347 = sbr.rel (%p345) target = $region44
        $region43: #{tpu_custom_call.1} parent=35 // pred_region
          %p348 = scmp.lt.s32.totalorder %s22, 1
          %s349 = scalar_select %p348, %s22, 1
          %s350 = scalar_lea.vmem %s4, %s349
        $region44: #{tpu_custom_call.1} parent=35 // pred_fallthru
          _
        // Predicated region
        $region45: #{tpu_custom_call.1} parent=35 // pred_check
          %p351 = pneg %p157
        $region46: #{tpu_custom_call.1} parent=35 // pred_check_branch
          %353 = sbr.rel (%p351) target = $region48
        $region47: #{tpu_custom_call.1} parent=35 // pred_region
          %s354 = sand.u32 %s22, 1
          %s355 = scalar_lea.sflag [#allocation10], %s354
          %s356 = sand.u32 %s147, 1
          %s357 = smul.addr %s356, 64
          %s358 = scalar_lea.vmem [#allocation11], %s357
          %s360 = ssub.s32 1024, 1024
          %361 = vsyncadd %s355, %s360
          %s362 = smul.addr %s22, 16
          %s363 = smul.addr %s362, 64
          %s364 = scalar_lea.hbm %s5, %s363
          %s365 = sshll.u32 %s358, 4
          %s366 = int_to_ptr.vmem [resolvable:$true] %s365
          %371 = dma.hbm_to_vmem [thread:$0]  %s364, 1024, %s366, %s355, 64, 64, 4
        $region48: #{tpu_custom_call.1} parent=35 // pred_fallthru
          _
        // Predicated region
        $region49: #{tpu_custom_call.1} parent=35 // pred_check
          %p372 = pneg %p183
        $region50: #{tpu_custom_call.1} parent=35 // pred_check_branch
          %374 = sbr.rel (%p372) target = $region52
        $region51: #{tpu_custom_call.1} parent=35 // pred_region
          %p375 = scmp.lt.s32.totalorder %s22, 1
          %s376 = scalar_select %p375, %s22, 1
          %s377 = scalar_lea.vmem %s6, %s376
        $region52: #{tpu_custom_call.1} parent=35 // pred_fallthru
          _
      $region36: #{tpu_custom_call.1} parent=5 // pred_fallthru
        _
      %p378 = scmp.le.s32.totalorder 1, %s22
      %p379 = scmp.lt.s32.totalorder %s22, 3
      %p380 = pnand %p378, %p379
      %p381 = pneg %p380
      // Predicated region
      $region53: #{tpu_custom_call.1} parent=5 // pred_check
        _
      $region54: #{tpu_custom_call.1} parent=5 // pred_check_branch
        %383 = sbr.rel (%p380) target = $region56
      $region55: #{tpu_custom_call.1} parent=5 // pred_region
        %s384 = ssub.s32 %s22, 1
        // Predicated region
        $region57: #{tpu_custom_call.1} parent=55 // pred_check
          %p385 = pneg %p43
        $region58: #{tpu_custom_call.1} parent=55 // pred_check_branch
          %387 = sbr.rel (%p385) target = $region60
        $region59: #{tpu_custom_call.1} parent=55 // pred_region
          %388 = dma.done [#allocation4], 1024
        $region60: #{tpu_custom_call.1} parent=55 // pred_fallthru
          _
        // Predicated region
        $region61: #{tpu_custom_call.1} parent=55 // pred_check
          %p389 = pneg %p64
        $region62: #{tpu_custom_call.1} parent=55 // pred_check_branch
          %391 = sbr.rel (%p389) target = $region64
        $region63: #{tpu_custom_call.1} parent=55 // pred_region
          %392 = dma.done [#allocation7], 1024
        $region64: #{tpu_custom_call.1} parent=55 // pred_fallthru
          _
        // Predicated region
        $region65: #{tpu_custom_call.1} parent=55 // pred_check
          %p393 = pneg %p85
        $region66: #{tpu_custom_call.1} parent=55 // pred_check_branch
          %395 = sbr.rel (%p393) target = $region68
        $region67: #{tpu_custom_call.1} parent=55 // pred_region
          %396 = dma.done [#allocation7], 64
        $region68: #{tpu_custom_call.1} parent=55 // pred_fallthru
          _
        %s397 = sand.u32 %s27, 1
        %s398 = scalar_lea.sflag [#allocation10], %s397
        %s399 = sand.u32 %s98, 1
        %s400 = smul.addr %s399, 64
        %s401 = scalar_lea.vmem [#allocation9], %s400
        // Predicated region
        $region69: #{tpu_custom_call.1} parent=55 // pred_check
          %p402 = pneg %p111
        $region70: #{tpu_custom_call.1} parent=55 // pred_check_branch
          %404 = sbr.rel (%p402) target = $region72
        $region71: #{tpu_custom_call.1} parent=55 // pred_region
          %405 = dma.done %s398, 1024
        $region72: #{tpu_custom_call.1} parent=55 // pred_fallthru
          _
        %s406 = sand.u32 %s27, 1
        %s407 = scalar_lea.sflag [#allocation10], %s406
        %s408 = sand.u32 %s150, 1
        %s409 = smul.addr %s408, 64
        %s410 = scalar_lea.vmem [#allocation11], %s409
        // Predicated region
        $region73: #{tpu_custom_call.1} parent=55 // pred_check
          %p411 = pneg %p163
        $region74: #{tpu_custom_call.1} parent=55 // pred_check_branch
          %413 = sbr.rel (%p411) target = $region76
        $region75: #{tpu_custom_call.1} parent=55 // pred_region
          %414 = dma.done %s407, 1024
        $region76: #{tpu_custom_call.1} parent=55 // pred_fallthru
          _
        // Predicated region
        $region77: #{tpu_custom_call.1} parent=55 // pred_check
          %p415 = pneg %p210
        $region78: #{tpu_custom_call.1} parent=55 // pred_check_branch
          %417 = sbr.rel (%p415) target = $region80
        $region79: #{tpu_custom_call.1} parent=55 // pred_region
          %418 = dma.done [#allocation13], 1024
        $region80: #{tpu_custom_call.1} parent=55 // pred_fallthru
          _
        %p419 = pneg %p43
        %p420 = pneg %p40
        %p421 = pneg %p64
        %p422 = pneg %p61
        %p423 = pneg %p85
        %p424 = pneg %p82
        %s425 = sand.u32 %s27, 1
        %s426 = scalar_lea.sflag [#allocation10], %s425
        %s427 = sand.u32 %s98, 1
        %s428 = smul.addr %s427, 64
        %s429 = scalar_lea.vmem [#allocation9], %s428
        %p430 = pneg %p111
        %p431 = pneg %p108
        %p432 = scmp.lt.s32.totalorder %s27, 1
        %s433 = scalar_select %p432, %s27, 1
        %s434 = scalar_lea.vmem %s4, %s433
        %p435 = pneg %p137
        %p436 = pneg %p134
        %s437 = sand.u32 %s27, 1
        %s438 = scalar_lea.sflag [#allocation10], %s437
        %s439 = sand.u32 %s150, 1
        %s440 = smul.addr %s439, 64
        %s441 = scalar_lea.vmem [#allocation11], %s440
        %p442 = pneg %p163
        %p443 = pneg %p160
        %p444 = scmp.lt.s32.totalorder %s27, 1
        %s445 = scalar_select %p444, %s27, 1
        %s446 = scalar_lea.vmem %s6, %s445
        %p447 = pneg %p189
        %p448 = pneg %p186
        %p449 = pneg %p210
        %p450 = pneg %p207
        %p451 = pneg %p231
        %p452 = pneg %p228
        %p453 = pneg %p252
        %p454 = pneg %p249
        %p455 = scmp.lt.s32.totalorder %s27, 1
        %s456 = scalar_select %p455, %s27, 1
        %s457 = scalar_lea.vmem %s4, %s456
        %p458 = scmp.lt.s32.totalorder %s27, 1
        %s459 = scalar_select %p458, %s27, 1
        %s460 = scalar_lea.vmem %s6, %s459
        %p462 = scmp.eq.s32.totalorder %s27, 0
        // Predicated region
        $region81: #{tpu_custom_call.1} parent=55 // pred_check
          %p463 = pneg %p462
        $region82: #{tpu_custom_call.1} parent=55 // pred_check_branch
          %465 = sbr.rel (%p463) target = $region84
        $region83: #{tpu_custom_call.1} parent=55 // pred_region
          %v466 = vld [vmem:[#allocation6] sm:$0xf]
          %v467 = vld [vmem:[#allocation6 + $0x4] sm:$0xf]
          %v468 = vld [vmem:[#allocation6 + $0x8] sm:$0xf]
          %v469 = vld [vmem:[#allocation6 + $0xc] sm:$0xf]
          %v470 = vld [vmem:[#allocation6 + $0x10] sm:$0xf]
          %v471 = vld [vmem:[#allocation6 + $0x14] sm:$0xf]
          %v472 = vld [vmem:[#allocation6 + $0x18] sm:$0xf]
          %v473 = vld [vmem:[#allocation6 + $0x1c] sm:$0xf]
          %v474 = vld [vmem:[#allocation6 + $0x20] sm:$0xf]
          %v475 = vld [vmem:[#allocation6 + $0x24] sm:$0xf]
          %v476 = vld [vmem:[#allocation6 + $0x28] sm:$0xf]
          %v477 = vld [vmem:[#allocation6 + $0x2c] sm:$0xf]
          %v478 = vld [vmem:[#allocation6 + $0x30] sm:$0xf]
          %v479 = vld [vmem:[#allocation6 + $0x34] sm:$0xf]
          %v480 = vld [vmem:[#allocation6 + $0x38] sm:$0xf]
          %v481 = vld [vmem:[#allocation6 + $0x3c] sm:$0xf]
          %482 = vst [vmem:[#allocation2] sm:$0xf] %v466
          %483 = vst [vmem:[#allocation2 + $0x4] sm:$0xf] %v467
          %484 = vst [vmem:[#allocation2 + $0x8] sm:$0xf] %v468
          %485 = vst [vmem:[#allocation2 + $0xc] sm:$0xf] %v469
          %486 = vst [vmem:[#allocation2 + $0x10] sm:$0xf] %v470
          %487 = vst [vmem:[#allocation2 + $0x14] sm:$0xf] %v471
          %488 = vst [vmem:[#allocation2 + $0x18] sm:$0xf] %v472
          %489 = vst [vmem:[#allocation2 + $0x1c] sm:$0xf] %v473
          %490 = vst [vmem:[#allocation2 + $0x20] sm:$0xf] %v474
          %491 = vst [vmem:[#allocation2 + $0x24] sm:$0xf] %v475
          %492 = vst [vmem:[#allocation2 + $0x28] sm:$0xf] %v476
          %493 = vst [vmem:[#allocation2 + $0x2c] sm:$0xf] %v477
          %494 = vst [vmem:[#allocation2 + $0x30] sm:$0xf] %v478
          %495 = vst [vmem:[#allocation2 + $0x34] sm:$0xf] %v479
          %496 = vst [vmem:[#allocation2 + $0x38] sm:$0xf] %v480
          %497 = vst [vmem:[#allocation2 + $0x3c] sm:$0xf] %v481
        $region84: #{tpu_custom_call.1} parent=55 // pred_fallthru
          _
        %v498 = vld [vmem:[#allocation2] sm:$0xf]
        %v499 = vld [vmem:[#allocation2 + $0x4] sm:$0xf]
        %v500 = vld [vmem:[#allocation2 + $0x8] sm:$0xf]
        %v501 = vld [vmem:[#allocation2 + $0xc] sm:$0xf]
        %v502 = vld [vmem:[#allocation2 + $0x10] sm:$0xf]
        %v503 = vld [vmem:[#allocation2 + $0x14] sm:$0xf]
        %v504 = vld [vmem:[#allocation2 + $0x18] sm:$0xf]
        %v505 = vld [vmem:[#allocation2 + $0x1c] sm:$0xf]
        %v506 = vld [vmem:[#allocation2 + $0x20] sm:$0xf]
        %v507 = vld [vmem:[#allocation2 + $0x24] sm:$0xf]
        %v508 = vld [vmem:[#allocation2 + $0x28] sm:$0xf]
        %v509 = vld [vmem:[#allocation2 + $0x2c] sm:$0xf]
        %v510 = vld [vmem:[#allocation2 + $0x30] sm:$0xf]
        %v511 = vld [vmem:[#allocation2 + $0x34] sm:$0xf]
        %v512 = vld [vmem:[#allocation2 + $0x38] sm:$0xf]
        %v513 = vld [vmem:[#allocation2 + $0x3c] sm:$0xf]
        %v514 = vld [vmem:[#allocation3] sm:$0xf]
        %v515 = vld [vmem:[#allocation3 + $0x4] sm:$0xf]
        %v516 = vld [vmem:[#allocation3 + $0x8] sm:$0xf]
        %v517 = vld [vmem:[#allocation3 + $0xc] sm:$0xf]
        %v518 = vld [vmem:[#allocation3 + $0x10] sm:$0xf]
        %v519 = vld [vmem:[#allocation3 + $0x14] sm:$0xf]
        %v520 = vld [vmem:[#allocation3 + $0x18] sm:$0xf]
        %v521 = vld [vmem:[#allocation3 + $0x1c] sm:$0xf]
        %v522 = vld [vmem:[#allocation3 + $0x20] sm:$0xf]
        %v523 = vld [vmem:[#allocation3 + $0x24] sm:$0xf]
        %v524 = vld [vmem:[#allocation3 + $0x28] sm:$0xf]
        %v525 = vld [vmem:[#allocation3 + $0x2c] sm:$0xf]
        %v526 = vld [vmem:[#allocation3 + $0x30] sm:$0xf]
        %v527 = vld [vmem:[#allocation3 + $0x34] sm:$0xf]
        %v528 = vld [vmem:[#allocation3 + $0x38] sm:$0xf]
        %v529 = vld [vmem:[#allocation3 + $0x3c] sm:$0xf]
        %v546 = vunpack.c.l.b16 %v514
        %v547 = vunpack.c.l.b16 %v515
        %v548 = vunpack.c.l.b16 %v516
        %v549 = vunpack.c.l.b16 %v517
        %v550 = vunpack.c.l.b16 %v518
        %v551 = vunpack.c.l.b16 %v519
        %v552 = vunpack.c.l.b16 %v520
        %v553 = vunpack.c.l.b16 %v521
        %v554 = vunpack.c.l.b16 %v522
        %v555 = vunpack.c.l.b16 %v523
        %v556 = vunpack.c.l.b16 %v524
        %v557 = vunpack.c.l.b16 %v525
        %v558 = vunpack.c.l.b16 %v526
        %v559 = vunpack.c.l.b16 %v527
        %v560 = vunpack.c.l.b16 %v528
        %v561 = vunpack.c.l.b16 %v529
        %v562 = vpack.c.b16 %v547, %v546
        %v563 = vpack.c.b16 %v549, %v548
        %v564 = vpack.c.b16 %v551, %v550
        %v565 = vpack.c.b16 %v553, %v552
        %v566 = vpack.c.b16 %v555, %v554
        %v567 = vpack.c.b16 %v557, %v556
        %v568 = vpack.c.b16 %v559, %v558
        %v569 = vpack.c.b16 %v561, %v560
        %v594 = vunpack.c.l.b16 %v498
        %v595 = vunpack.c.l.b16 %v499
        %v596 = vunpack.c.l.b16 %v500
        %v597 = vunpack.c.l.b16 %v501
        %v598 = vunpack.c.l.b16 %v502
        %v599 = vunpack.c.l.b16 %v503
        %v600 = vunpack.c.l.b16 %v504
        %v601 = vunpack.c.l.b16 %v505
        %v602 = vunpack.c.l.b16 %v506
        %v603 = vunpack.c.l.b16 %v507
        %v604 = vunpack.c.l.b16 %v508
        %v605 = vunpack.c.l.b16 %v509
        %v606 = vunpack.c.l.b16 %v510
        %v607 = vunpack.c.l.b16 %v511
        %v608 = vunpack.c.l.b16 %v512
        %v609 = vunpack.c.l.b16 %v513
        %v610 = vpack.c.b16 %v595, %v594
        %v611 = vpack.c.b16 %v597, %v596
        %v612 = vpack.c.b16 %v599, %v598
        %v613 = vpack.c.b16 %v601, %v600
        %v614 = vpack.c.b16 %v603, %v602
        %v615 = vpack.c.b16 %v605, %v604
        %v616 = vpack.c.b16 %v607, %v606
        %v617 = vpack.c.b16 %v609, %v608
        %626 = vmatprep.subr.bf16.mxu0 0
        %627 = vmatpush1.bf16.msra.mxu0 %v617
        %628 = vmatprep.subr.bf16.mxu0 0
        %629 = vmatpush1.bf16.msra.mxu0 %v616
        %630 = vmatprep.subr.bf16.mxu0 0
        %631 = vmatpush1.bf16.msra.mxu0 %v615
        %632 = vmatprep.subr.bf16.mxu0 0
        %633 = vmatpush1.bf16.msra.mxu0 %v614
        %634 = vmatprep.subr.bf16.mxu0 0
        %635 = vmatpush1.bf16.msra.mxu0 %v613
        %636 = vmatprep.subr.bf16.mxu0 0
        %637 = vmatpush1.bf16.msra.mxu0 %v612
        %638 = vmatprep.subr.bf16.mxu0 0
        %639 = vmatpush1.bf16.msra.mxu0 %v611
        %640 = vmatprep.subr.bf16.mxu0 0
        %641 = vmatpush1.bf16.msra.mxu0 %v610
        %642 = vmatprep.subr.bf16.mxu0 0
        %643 = vmatpush2.bf16.msra.mxu0 0
        %644 = vmatprep.subr.bf16.mxu0 0
        %645 = vmatpush2.bf16.msra.mxu0 0
        %646 = vmatprep.subr.bf16.mxu0 0
        %647 = vmatpush2.bf16.msra.mxu0 0
        %648 = vmatprep.subr.bf16.mxu0 0
        %649 = vmatpush2.bf16.msra.mxu0 0
        %650 = vmatprep.subr.bf16.mxu0 0
        %651 = vmatpush2.bf16.msra.mxu0 0
        %652 = vmatprep.subr.bf16.mxu0 0
        %653 = vmatpush2.bf16.msra.mxu0 0
        %654 = vmatprep.subr.bf16.mxu0 0
        %655 = vmatpush2.bf16.msra.mxu0 0
        %656 = vmatprep.subr.bf16.mxu0 0
        %657 = vmatpush2.bf16.msra.mxu0 0
        %658 = vmatprep.mubr.bf16.mxu0 0
        %659 = vmatmul.mubr.bf16.gmra.mxu0 %v562
        %v660 = vpop.f32.mrf.mxu0
        %v661 = vadd.f32 0.0, %v660
        %v662 = vpop.f32.mrf.mxu0
        %v663 = vpop.f32.mrf.mxu0
        %v664 = vadd.f32 0.0, %v663
        %v665 = vpop.f32.mrf.mxu0
        %666 = vmatprep.mubr.bf16.mxu0 0
        %667 = vmatmul.mubr.bf16.gmra.mxu0 %v563
        %v668 = vpop.f32.mrf.mxu0
        %v669 = vadd.f32 0.0, %v668
        %v670 = vpop.f32.mrf.mxu0
        %v671 = vpop.f32.mrf.mxu0
        %v672 = vadd.f32 0.0, %v671
        %v673 = vpop.f32.mrf.mxu0
        %674 = vmatprep.mubr.bf16.mxu0 0
        %675 = vmatmul.mubr.bf16.gmra.mxu0 %v564
        %v676 = vpop.f32.mrf.mxu0
        %v677 = vadd.f32 0.0, %v676
        %v678 = vpop.f32.mrf.mxu0
        %v679 = vpop.f32.mrf.mxu0
        %v680 = vadd.f32 0.0, %v679
        %v681 = vpop.f32.mrf.mxu0
        %682 = vmatprep.mubr.bf16.mxu0 0
        %683 = vmatmul.mubr.bf16.gmra.mxu0 %v565
        %v684 = vpop.f32.mrf.mxu0
        %v685 = vadd.f32 0.0, %v684
        %v686 = vpop.f32.mrf.mxu0
        %v687 = vpop.f32.mrf.mxu0
        %v688 = vadd.f32 0.0, %v687
        %v689 = vpop.f32.mrf.mxu0
        %690 = vmatprep.mubr.bf16.mxu0 0
        %691 = vmatmul.mubr.bf16.gmra.mxu0 %v566
        %v692 = vpop.f32.mrf.mxu0
        %v693 = vadd.f32 0.0, %v692
        %v694 = vpop.f32.mrf.mxu0
        %v695 = vpop.f32.mrf.mxu0
        %v696 = vadd.f32 0.0, %v695
        %v697 = vpop.f32.mrf.mxu0
        %698 = vmatprep.mubr.bf16.mxu0 0
        %699 = vmatmul.mubr.bf16.gmra.mxu0 %v567
        %v700 = vpop.f32.mrf.mxu0
        %v701 = vadd.f32 0.0, %v700
        %v702 = vpop.f32.mrf.mxu0
        %v703 = vpop.f32.mrf.mxu0
        %v704 = vadd.f32 0.0, %v703
        %v705 = vpop.f32.mrf.mxu0
        %706 = vmatprep.mubr.bf16.mxu0 0
        %707 = vmatmul.mubr.bf16.gmra.mxu0 %v568
        %v708 = vpop.f32.mrf.mxu0
        %v709 = vadd.f32 0.0, %v708
        %v710 = vpop.f32.mrf.mxu0
        %v711 = vpop.f32.mrf.mxu0
        %v712 = vadd.f32 0.0, %v711
        %v713 = vpop.f32.mrf.mxu0
        %714 = vmatprep.mubr.bf16.mxu0 0
        %715 = vmatmul.mubr.bf16.gmra.mxu0 %v569
        %v716 = vpop.f32.mrf.mxu0
        %v717 = vadd.f32 0.0, %v716
        %v718 = vpop.f32.mrf.mxu0
        %v719 = vpop.f32.mrf.mxu0
        %v720 = vadd.f32 0.0, %v719
        %v721 = vpop.f32.mrf.mxu0
        %722 = vdwg.mxu0
        %v723 = vpack.c.bf16 %v664, %v661
        %v724 = vpack.c.bf16 %v672, %v669
        %v725 = vpack.c.bf16 %v680, %v677
        %v726 = vpack.c.bf16 %v688, %v685
        %v727 = vpack.c.bf16 %v696, %v693
        %v728 = vpack.c.bf16 %v704, %v701
        %v729 = vpack.c.bf16 %v712, %v709
        %v730 = vpack.c.bf16 %v720, %v717
        %v731 = vld [vmem:[%s401] sm:$0xf]
        %v732 = vld [vmem:[%s401 + $0x4] sm:$0xf]
        %v733 = vld [vmem:[%s401 + $0x8] sm:$0xf]
        %v734 = vld [vmem:[%s401 + $0xc] sm:$0xf]
        %v735 = vld [vmem:[%s401 + $0x10] sm:$0xf]
        %v736 = vld [vmem:[%s401 + $0x14] sm:$0xf]
        %v737 = vld [vmem:[%s401 + $0x18] sm:$0xf]
        %v738 = vld [vmem:[%s401 + $0x1c] sm:$0xf]
        %v739 = vld [vmem:[%s401 + $0x20] sm:$0xf]
        %v740 = vld [vmem:[%s401 + $0x24] sm:$0xf]
        %v741 = vld [vmem:[%s401 + $0x28] sm:$0xf]
        %v742 = vld [vmem:[%s401 + $0x2c] sm:$0xf]
        %v743 = vld [vmem:[%s401 + $0x30] sm:$0xf]
        %v744 = vld [vmem:[%s401 + $0x34] sm:$0xf]
        %v745 = vld [vmem:[%s401 + $0x38] sm:$0xf]
        %v746 = vld [vmem:[%s401 + $0x3c] sm:$0xf]
        %v747 = vld [vmem:[%s457] sm:$0x1]
        %v749 = vlaneseq
        %v750 = vshrl.u32 %v749, 7
        %v751 = vsub.s32 0, %v750
        %v752 = vrot.slane %v747, %v751
        %v770 = vunpack.c.l.b16 %v731
        %v771 = vunpack.c.l.b16 %v732
        %v772 = vunpack.c.l.b16 %v733
        %v773 = vunpack.c.l.b16 %v734
        %v774 = vunpack.c.l.b16 %v735
        %v775 = vunpack.c.l.b16 %v736
        %v776 = vunpack.c.l.b16 %v737
        %v777 = vunpack.c.l.b16 %v738
        %v778 = vunpack.c.l.b16 %v739
        %v779 = vunpack.c.l.b16 %v740
        %v780 = vunpack.c.l.b16 %v741
        %v781 = vunpack.c.l.b16 %v742
        %v782 = vunpack.c.l.b16 %v743
        %v783 = vunpack.c.l.b16 %v744
        %v784 = vunpack.c.l.b16 %v745
        %v785 = vunpack.c.l.b16 %v746
        %v786 = vpack.c.b16 %v771, %v770
        %v787 = vpack.c.b16 %v773, %v772
        %v788 = vpack.c.b16 %v775, %v774
        %v789 = vpack.c.b16 %v777, %v776
        %v790 = vpack.c.b16 %v779, %v778
        %v791 = vpack.c.b16 %v781, %v780
        %v792 = vpack.c.b16 %v783, %v782
        %v793 = vpack.c.b16 %v785, %v784
        %802 = vmatprep.subr.bf16.mxu0 0
        %803 = vmatpush1.bf16.msra.mxu0 %v793
        %804 = vmatprep.subr.bf16.mxu0 0
        %805 = vmatpush1.bf16.msra.mxu0 %v792
        %806 = vmatprep.subr.bf16.mxu0 0
        %807 = vmatpush1.bf16.msra.mxu0 %v791
        %808 = vmatprep.subr.bf16.mxu0 0
        %809 = vmatpush1.bf16.msra.mxu0 %v790
        %810 = vmatprep.subr.bf16.mxu0 0
        %811 = vmatpush1.bf16.msra.mxu0 %v789
        %812 = vmatprep.subr.bf16.mxu0 0
        %813 = vmatpush1.bf16.msra.mxu0 %v788
        %814 = vmatprep.subr.bf16.mxu0 0
        %815 = vmatpush1.bf16.msra.mxu0 %v787
        %816 = vmatprep.subr.bf16.mxu0 0
        %817 = vmatpush1.bf16.msra.mxu0 %v786
        %818 = vmatprep.subr.bf16.mxu0 0
        %819 = vmatpush2.bf16.msra.mxu0 0
        %820 = vmatprep.subr.bf16.mxu0 0
        %821 = vmatpush2.bf16.msra.mxu0 0
        %822 = vmatprep.subr.bf16.mxu0 0
        %823 = vmatpush2.bf16.msra.mxu0 0
        %824 = vmatprep.subr.bf16.mxu0 0
        %825 = vmatpush2.bf16.msra.mxu0 0
        %826 = vmatprep.subr.bf16.mxu0 0
        %827 = vmatpush2.bf16.msra.mxu0 0
        %828 = vmatprep.subr.bf16.mxu0 0
        %829 = vmatpush2.bf16.msra.mxu0 0
        %830 = vmatprep.subr.bf16.mxu0 0
        %831 = vmatpush2.bf16.msra.mxu0 0
        %832 = vmatprep.subr.bf16.mxu0 0
        %833 = vmatpush2.bf16.msra.mxu0 0
        %834 = vmatprep.mubr.bf16.mxu0 0
        %835 = vmatmul.mubr.bf16.gmra.mxu0 %v723
        %v836 = vpop.f32.mrf.mxu0
        %v837 = vadd.f32 %v752, %v836
        %v838 = vpop.f32.mrf.mxu0
        %v839 = vpop.f32.mrf.mxu0
        %v840 = vadd.f32 %v752, %v839
        %v841 = vpop.f32.mrf.mxu0
        %842 = vmatprep.mubr.bf16.mxu0 0
        %843 = vmatmul.mubr.bf16.gmra.mxu0 %v724
        %v844 = vpop.f32.mrf.mxu0
        %v845 = vadd.f32 %v752, %v844
        %v846 = vpop.f32.mrf.mxu0
        %v847 = vpop.f32.mrf.mxu0
        %v848 = vadd.f32 %v752, %v847
        %v849 = vpop.f32.mrf.mxu0
        %850 = vmatprep.mubr.bf16.mxu0 0
        %851 = vmatmul.mubr.bf16.gmra.mxu0 %v725
        %v852 = vpop.f32.mrf.mxu0
        %v853 = vadd.f32 %v752, %v852
        %v854 = vpop.f32.mrf.mxu0
        %v855 = vpop.f32.mrf.mxu0
        %v856 = vadd.f32 %v752, %v855
        %v857 = vpop.f32.mrf.mxu0
        %858 = vmatprep.mubr.bf16.mxu0 0
        %859 = vmatmul.mubr.bf16.gmra.mxu0 %v726
        %v860 = vpop.f32.mrf.mxu0
        %v861 = vadd.f32 %v752, %v860
        %v862 = vpop.f32.mrf.mxu0
        %v863 = vpop.f32.mrf.mxu0
        %v864 = vadd.f32 %v752, %v863
        %v865 = vpop.f32.mrf.mxu0
        %866 = vmatprep.mubr.bf16.mxu0 0
        %867 = vmatmul.mubr.bf16.gmra.mxu0 %v727
        %v868 = vpop.f32.mrf.mxu0
        %v869 = vadd.f32 %v752, %v868
        %v870 = vpop.f32.mrf.mxu0
        %v871 = vpop.f32.mrf.mxu0
        %v872 = vadd.f32 %v752, %v871
        %v873 = vpop.f32.mrf.mxu0
        %874 = vmatprep.mubr.bf16.mxu0 0
        %875 = vmatmul.mubr.bf16.gmra.mxu0 %v728
        %v876 = vpop.f32.mrf.mxu0
        %v877 = vadd.f32 %v752, %v876
        %v878 = vpop.f32.mrf.mxu0
        %v879 = vpop.f32.mrf.mxu0
        %v880 = vadd.f32 %v752, %v879
        %v881 = vpop.f32.mrf.mxu0
        %882 = vmatprep.mubr.bf16.mxu0 0
        %883 = vmatmul.mubr.bf16.gmra.mxu0 %v729
        %v884 = vpop.f32.mrf.mxu0
        %v885 = vadd.f32 %v752, %v884
        %v886 = vpop.f32.mrf.mxu0
        %v887 = vpop.f32.mrf.mxu0
        %v888 = vadd.f32 %v752, %v887
        %v889 = vpop.f32.mrf.mxu0
        %890 = vmatprep.mubr.bf16.mxu0 0
        %891 = vmatmul.mubr.bf16.gmra.mxu0 %v730
        %v892 = vpop.f32.mrf.mxu0
        %v893 = vadd.f32 %v752, %v892
        %v894 = vpop.f32.mrf.mxu0
        %v895 = vpop.f32.mrf.mxu0
        %v896 = vadd.f32 %v752, %v895
        %v897 = vpop.f32.mrf.mxu0
        %898 = vdwg.mxu0
        %v899 = vmax.f32 %v837, 0.0
        %v900 = vmax.f32 %v840, 0.0
        %v901 = vmax.f32 %v845, 0.0
        %v902 = vmax.f32 %v848, 0.0
        %v903 = vmax.f32 %v853, 0.0
        %v904 = vmax.f32 %v856, 0.0
        %v905 = vmax.f32 %v861, 0.0
        %v906 = vmax.f32 %v864, 0.0
        %v907 = vmax.f32 %v869, 0.0
        %v908 = vmax.f32 %v872, 0.0
        %v909 = vmax.f32 %v877, 0.0
        %v910 = vmax.f32 %v880, 0.0
        %v911 = vmax.f32 %v885, 0.0
        %v912 = vmax.f32 %v888, 0.0
        %v913 = vmax.f32 %v893, 0.0
        %v914 = vmax.f32 %v896, 0.0
        %v915 = vpack.c.bf16 %v900, %v899
        %v916 = vpack.c.bf16 %v902, %v901
        %v917 = vpack.c.bf16 %v904, %v903
        %v918 = vpack.c.bf16 %v906, %v905
        %v919 = vpack.c.bf16 %v908, %v907
        %v920 = vpack.c.bf16 %v910, %v909
        %v921 = vpack.c.bf16 %v912, %v911
        %v922 = vpack.c.bf16 %v914, %v913
        %v923 = vld [vmem:[%s410] sm:$0xf]
        %v924 = vld [vmem:[%s410 + $0x4] sm:$0xf]
        %v925 = vld [vmem:[%s410 + $0x8] sm:$0xf]
        %v926 = vld [vmem:[%s410 + $0xc] sm:$0xf]
        %v927 = vld [vmem:[%s410 + $0x10] sm:$0xf]
        %v928 = vld [vmem:[%s410 + $0x14] sm:$0xf]
        %v929 = vld [vmem:[%s410 + $0x18] sm:$0xf]
        %v930 = vld [vmem:[%s410 + $0x1c] sm:$0xf]
        %v931 = vld [vmem:[%s410 + $0x20] sm:$0xf]
        %v932 = vld [vmem:[%s410 + $0x24] sm:$0xf]
        %v933 = vld [vmem:[%s410 + $0x28] sm:$0xf]
        %v934 = vld [vmem:[%s410 + $0x2c] sm:$0xf]
        %v935 = vld [vmem:[%s410 + $0x30] sm:$0xf]
        %v936 = vld [vmem:[%s410 + $0x34] sm:$0xf]
        %v937 = vld [vmem:[%s410 + $0x38] sm:$0xf]
        %v938 = vld [vmem:[%s410 + $0x3c] sm:$0xf]
        %v939 = vld [vmem:[%s460] sm:$0x1]
        %v941 = vlaneseq
        %v942 = vshrl.u32 %v941, 7
        %v943 = vsub.s32 0, %v942
        %v944 = vrot.slane %v939, %v943
        %v962 = vunpack.c.l.b16 %v923
        %v963 = vunpack.c.l.b16 %v924
        %v964 = vunpack.c.l.b16 %v925
        %v965 = vunpack.c.l.b16 %v926
        %v966 = vunpack.c.l.b16 %v927
        %v967 = vunpack.c.l.b16 %v928
        %v968 = vunpack.c.l.b16 %v929
        %v969 = vunpack.c.l.b16 %v930
        %v970 = vunpack.c.l.b16 %v931
        %v971 = vunpack.c.l.b16 %v932
        %v972 = vunpack.c.l.b16 %v933
        %v973 = vunpack.c.l.b16 %v934
        %v974 = vunpack.c.l.b16 %v935
        %v975 = vunpack.c.l.b16 %v936
        %v976 = vunpack.c.l.b16 %v937
        %v977 = vunpack.c.l.b16 %v938
        %v978 = vpack.c.b16 %v963, %v962
        %v979 = vpack.c.b16 %v965, %v964
        %v980 = vpack.c.b16 %v967, %v966
        %v981 = vpack.c.b16 %v969, %v968
        %v982 = vpack.c.b16 %v971, %v970
        %v983 = vpack.c.b16 %v973, %v972
        %v984 = vpack.c.b16 %v975, %v974
        %v985 = vpack.c.b16 %v977, %v976
        %994 = vmatprep.subr.bf16.mxu0 0
        %995 = vmatpush1.bf16.msra.mxu0 %v985
        %996 = vmatprep.subr.bf16.mxu0 0
        %997 = vmatpush1.bf16.msra.mxu0 %v984
        %998 = vmatprep.subr.bf16.mxu0 0
        %999 = vmatpush1.bf16.msra.mxu0 %v983
        %1000 = vmatprep.subr.bf16.mxu0 0
        %1001 = vmatpush1.bf16.msra.mxu0 %v982
        %1002 = vmatprep.subr.bf16.mxu0 0
        %1003 = vmatpush1.bf16.msra.mxu0 %v981
        %1004 = vmatprep.subr.bf16.mxu0 0
        %1005 = vmatpush1.bf16.msra.mxu0 %v980
        %1006 = vmatprep.subr.bf16.mxu0 0
        %1007 = vmatpush1.bf16.msra.mxu0 %v979
        %1008 = vmatprep.subr.bf16.mxu0 0
        %1009 = vmatpush1.bf16.msra.mxu0 %v978
        %1010 = vmatprep.subr.bf16.mxu0 0
        %1011 = vmatpush2.bf16.msra.mxu0 0
        %1012 = vmatprep.subr.bf16.mxu0 0
        %1013 = vmatpush2.bf16.msra.mxu0 0
        %1014 = vmatprep.subr.bf16.mxu0 0
        %1015 = vmatpush2.bf16.msra.mxu0 0
        %1016 = vmatprep.subr.bf16.mxu0 0
        %1017 = vmatpush2.bf16.msra.mxu0 0
        %1018 = vmatprep.subr.bf16.mxu0 0
        %1019 = vmatpush2.bf16.msra.mxu0 0
        %1020 = vmatprep.subr.bf16.mxu0 0
        %1021 = vmatpush2.bf16.msra.mxu0 0
        %1022 = vmatprep.subr.bf16.mxu0 0
        %1023 = vmatpush2.bf16.msra.mxu0 0
        %1024 = vmatprep.subr.bf16.mxu0 0
        %1025 = vmatpush2.bf16.msra.mxu0 0
        %1026 = vmatprep.mubr.bf16.mxu0 0
        %1027 = vmatmul.mubr.bf16.gmra.mxu0 %v915
        %v1028 = vpop.f32.mrf.mxu0
        %v1029 = vadd.f32 %v944, %v1028
        %v1030 = vpop.f32.mrf.mxu0
        %v1031 = vpop.f32.mrf.mxu0
        %v1032 = vadd.f32 %v944, %v1031
        %v1033 = vpop.f32.mrf.mxu0
        %1034 = vmatprep.mubr.bf16.mxu0 0
        %1035 = vmatmul.mubr.bf16.gmra.mxu0 %v916
        %v1036 = vpop.f32.mrf.mxu0
        %v1037 = vadd.f32 %v944, %v1036
        %v1038 = vpop.f32.mrf.mxu0
        %v1039 = vpop.f32.mrf.mxu0
        %v1040 = vadd.f32 %v944, %v1039
        %v1041 = vpop.f32.mrf.mxu0
        %1042 = vmatprep.mubr.bf16.mxu0 0
        %1043 = vmatmul.mubr.bf16.gmra.mxu0 %v917
        %v1044 = vpop.f32.mrf.mxu0
        %v1045 = vadd.f32 %v944, %v1044
        %v1046 = vpop.f32.mrf.mxu0
        %v1047 = vpop.f32.mrf.mxu0
        %v1048 = vadd.f32 %v944, %v1047
        %v1049 = vpop.f32.mrf.mxu0
        %1050 = vmatprep.mubr.bf16.mxu0 0
        %1051 = vmatmul.mubr.bf16.gmra.mxu0 %v918
        %v1052 = vpop.f32.mrf.mxu0
        %v1053 = vadd.f32 %v944, %v1052
        %v1054 = vpop.f32.mrf.mxu0
        %v1055 = vpop.f32.mrf.mxu0
        %v1056 = vadd.f32 %v944, %v1055
        %v1057 = vpop.f32.mrf.mxu0
        %1058 = vmatprep.mubr.bf16.mxu0 0
        %1059 = vmatmul.mubr.bf16.gmra.mxu0 %v919
        %v1060 = vpop.f32.mrf.mxu0
        %v1061 = vadd.f32 %v944, %v1060
        %v1062 = vpop.f32.mrf.mxu0
        %v1063 = vpop.f32.mrf.mxu0
        %v1064 = vadd.f32 %v944, %v1063
        %v1065 = vpop.f32.mrf.mxu0
        %1066 = vmatprep.mubr.bf16.mxu0 0
        %1067 = vmatmul.mubr.bf16.gmra.mxu0 %v920
        %v1068 = vpop.f32.mrf.mxu0
        %v1069 = vadd.f32 %v944, %v1068
        %v1070 = vpop.f32.mrf.mxu0
        %v1071 = vpop.f32.mrf.mxu0
        %v1072 = vadd.f32 %v944, %v1071
        %v1073 = vpop.f32.mrf.mxu0
        %1074 = vmatprep.mubr.bf16.mxu0 0
        %1075 = vmatmul.mubr.bf16.gmra.mxu0 %v921
        %v1076 = vpop.f32.mrf.mxu0
        %v1077 = vadd.f32 %v944, %v1076
        %v1078 = vpop.f32.mrf.mxu0
        %v1079 = vpop.f32.mrf.mxu0
        %v1080 = vadd.f32 %v944, %v1079
        %v1081 = vpop.f32.mrf.mxu0
        %1082 = vmatprep.mubr.bf16.mxu0 0
        %1083 = vmatmul.mubr.bf16.gmra.mxu0 %v922
        %v1084 = vpop.f32.mrf.mxu0
        %v1085 = vadd.f32 %v944, %v1084
        %v1086 = vpop.f32.mrf.mxu0
        %v1087 = vpop.f32.mrf.mxu0
        %v1088 = vadd.f32 %v944, %v1087
        %v1089 = vpop.f32.mrf.mxu0
        %1090 = vdwg.mxu0
        %v1091 = vmax.f32 %v1029, 0.0
        %v1092 = vmax.f32 %v1032, 0.0
        %v1093 = vmax.f32 %v1037, 0.0
        %v1094 = vmax.f32 %v1040, 0.0
        %v1095 = vmax.f32 %v1045, 0.0
        %v1096 = vmax.f32 %v1048, 0.0
        %v1097 = vmax.f32 %v1053, 0.0
        %v1098 = vmax.f32 %v1056, 0.0
        %v1099 = vmax.f32 %v1061, 0.0
        %v1100 = vmax.f32 %v1064, 0.0
        %v1101 = vmax.f32 %v1069, 0.0
        %v1102 = vmax.f32 %v1072, 0.0
        %v1103 = vmax.f32 %v1077, 0.0
        %v1104 = vmax.f32 %v1080, 0.0
        %v1105 = vmax.f32 %v1085, 0.0
        %v1106 = vmax.f32 %v1088, 0.0
        %v1107 = vpack.c.bf16 %v1092, %v1091
        %v1108 = vpack.c.bf16 %v1094, %v1093
        %v1109 = vpack.c.bf16 %v1096, %v1095
        %v1110 = vpack.c.bf16 %v1098, %v1097
        %v1111 = vpack.c.bf16 %v1100, %v1099
        %v1112 = vpack.c.bf16 %v1102, %v1101
        %v1113 = vpack.c.bf16 %v1104, %v1103
        %v1114 = vpack.c.bf16 %v1106, %v1105
        %v1123 = vunpack.c.l.b16 %v1107
        %v1124 = vunpack.c.h.b16 %v1107
        %v1125 = vunpack.c.l.b16 %v1108
        %v1126 = vunpack.c.h.b16 %v1108
        %v1127 = vunpack.c.l.b16 %v1109
        %v1128 = vunpack.c.h.b16 %v1109
        %v1129 = vunpack.c.l.b16 %v1110
        %v1130 = vunpack.c.h.b16 %v1110
        %v1131 = vunpack.c.l.b16 %v1111
        %v1132 = vunpack.c.h.b16 %v1111
        %v1133 = vunpack.c.l.b16 %v1112
        %v1134 = vunpack.c.h.b16 %v1112
        %v1135 = vunpack.c.l.b16 %v1113
        %v1136 = vunpack.c.h.b16 %v1113
        %v1137 = vunpack.c.l.b16 %v1114
        %v1138 = vunpack.c.h.b16 %v1114
        %v1139 = vpack.c.b16 %v1123, %v1123
        %v1140 = vpack.c.b16 %v1124, %v1124
        %v1141 = vpack.c.b16 %v1125, %v1125
        %v1142 = vpack.c.b16 %v1126, %v1126
        %v1143 = vpack.c.b16 %v1127, %v1127
        %v1144 = vpack.c.b16 %v1128, %v1128
        %v1145 = vpack.c.b16 %v1129, %v1129
        %v1146 = vpack.c.b16 %v1130, %v1130
        %v1147 = vpack.c.b16 %v1131, %v1131
        %v1148 = vpack.c.b16 %v1132, %v1132
        %v1149 = vpack.c.b16 %v1133, %v1133
        %v1150 = vpack.c.b16 %v1134, %v1134
        %v1151 = vpack.c.b16 %v1135, %v1135
        %v1152 = vpack.c.b16 %v1136, %v1136
        %v1153 = vpack.c.b16 %v1137, %v1137
        %v1154 = vpack.c.b16 %v1138, %v1138
        %1171 = vst [vmem:[#allocation2] sm:$0xf] %v1139
        %1172 = vst [vmem:[#allocation2 + $0x4] sm:$0xf] %v1140
        %1173 = vst [vmem:[#allocation2 + $0x8] sm:$0xf] %v1141
        %1174 = vst [vmem:[#allocation2 + $0xc] sm:$0xf] %v1142
        %1175 = vst [vmem:[#allocation2 + $0x10] sm:$0xf] %v1143
        %1176 = vst [vmem:[#allocation2 + $0x14] sm:$0xf] %v1144
        %1177 = vst [vmem:[#allocation2 + $0x18] sm:$0xf] %v1145
        %1178 = vst [vmem:[#allocation2 + $0x1c] sm:$0xf] %v1146
        %1179 = vst [vmem:[#allocation2 + $0x20] sm:$0xf] %v1147
        %1180 = vst [vmem:[#allocation2 + $0x24] sm:$0xf] %v1148
        %1181 = vst [vmem:[#allocation2 + $0x28] sm:$0xf] %v1149
        %1182 = vst [vmem:[#allocation2 + $0x2c] sm:$0xf] %v1150
        %1183 = vst [vmem:[#allocation2 + $0x30] sm:$0xf] %v1151
        %1184 = vst [vmem:[#allocation2 + $0x34] sm:$0xf] %v1152
        %1185 = vst [vmem:[#allocation2 + $0x38] sm:$0xf] %v1153
        %1186 = vst [vmem:[#allocation2 + $0x3c] sm:$0xf] %v1154
        %p1187 = scmp.eq.s32.totalorder %s27, 1
        // Predicated region
        $region85: #{tpu_custom_call.1} parent=55 // pred_check
          %p1188 = pneg %p1187
        $region86: #{tpu_custom_call.1} parent=55 // pred_check_branch
          %1190 = sbr.rel (%p1188) target = $region88
        $region87: #{tpu_custom_call.1} parent=55 // pred_region
          %v1191 = vld [vmem:[#allocation8] sm:$0xf]
          %1192 = vmatprep.subr.bf16.mxu0 0
          %1193 = vmatpush1.bf16.msra.mxu0 %v1114
          %1194 = vmatprep.subr.bf16.mxu0 0
          %1195 = vmatpush1.bf16.msra.mxu0 %v1113
          %1196 = vmatprep.subr.bf16.mxu0 0
          %1197 = vmatpush1.bf16.msra.mxu0 %v1112
          %1198 = vmatprep.subr.bf16.mxu0 0
          %1199 = vmatpush1.bf16.msra.mxu0 %v1111
          %1200 = vmatprep.subr.bf16.mxu0 0
          %1201 = vmatpush1.bf16.msra.mxu0 %v1110
          %1202 = vmatprep.subr.bf16.mxu0 0
          %1203 = vmatpush1.bf16.msra.mxu0 %v1109
          %1204 = vmatprep.subr.bf16.mxu0 0
          %1205 = vmatpush1.bf16.msra.mxu0 %v1108
          %1206 = vmatprep.subr.bf16.mxu0 0
          %1207 = vmatpush1.bf16.msra.mxu0 %v1107
          %1208 = vmatprep.subr.bf16.mxu0 0
          %1209 = vmatpush2.bf16.msra.mxu0 0
          %1210 = vmatprep.subr.bf16.mxu0 0
          %1211 = vmatpush2.bf16.msra.mxu0 0
          %1212 = vmatprep.subr.bf16.mxu0 0
          %1213 = vmatpush2.bf16.msra.mxu0 0
          %1214 = vmatprep.subr.bf16.mxu0 0
          %1215 = vmatpush2.bf16.msra.mxu0 0
          %1216 = vmatprep.subr.bf16.mxu0 0
          %1217 = vmatpush2.bf16.msra.mxu0 0
          %1218 = vmatprep.subr.bf16.mxu0 0
          %1219 = vmatpush2.bf16.msra.mxu0 0
          %1220 = vmatprep.subr.bf16.mxu0 0
          %1221 = vmatpush2.bf16.msra.mxu0 0
          %1222 = vmatprep.subr.bf16.mxu0 0
          %1223 = vmatpush2.bf16.msra.mxu0 0
          %1224 = vmatprep.mubr.bf16.mxu0 0
          %1225 = vmatmul.mubr.bf16.gmra.mxu0 %v1191
          %v1226 = vpop.f32.mrf.mxu0
          %v1227 = vadd.f32 0.0, %v1226
          %v1228 = vpop.f32.mrf.mxu0
          %v1229 = vpop.f32.mrf.mxu0
          %v1230 = vpop.f32.mrf.mxu0
          %1231 = vdwg.mxu0
          %v1232 = vpack.c.bf16 %v1227, %v1227
          %v1233 = vld [vmem:[#allocation12] sm:$0xf]
          %v1234 = vld [vmem:[#allocation12 + $0x4] sm:$0xf]
          %v1235 = vld [vmem:[#allocation12 + $0x8] sm:$0xf]
          %v1236 = vld [vmem:[#allocation12 + $0xc] sm:$0xf]
          %v1237 = vld [vmem:[#allocation12 + $0x10] sm:$0xf]
          %v1238 = vld [vmem:[#allocation12 + $0x14] sm:$0xf]
          %v1239 = vld [vmem:[#allocation12 + $0x18] sm:$0xf]
          %v1240 = vld [vmem:[#allocation12 + $0x1c] sm:$0xf]
          %v1241 = vld [vmem:[#allocation12 + $0x20] sm:$0xf]
          %v1242 = vld [vmem:[#allocation12 + $0x24] sm:$0xf]
          %v1243 = vld [vmem:[#allocation12 + $0x28] sm:$0xf]
          %v1244 = vld [vmem:[#allocation12 + $0x2c] sm:$0xf]
          %v1245 = vld [vmem:[#allocation12 + $0x30] sm:$0xf]
          %v1246 = vld [vmem:[#allocation12 + $0x34] sm:$0xf]
          %v1247 = vld [vmem:[#allocation12 + $0x38] sm:$0xf]
          %v1248 = vld [vmem:[#allocation12 + $0x3c] sm:$0xf]
          %v1249 = vld [vmem:[%s8] sm:$0x1]
          %v1251 = vlaneseq
          %v1252 = vshrl.u32 %v1251, 7
          %v1253 = vsub.s32 0, %v1252
          %v1254 = vrot.slane %v1249, %v1253
          %v1272 = vunpack.c.l.b16 %v1233
          %v1273 = vunpack.c.l.b16 %v1234
          %v1274 = vunpack.c.l.b16 %v1235
          %v1275 = vunpack.c.l.b16 %v1236
          %v1276 = vunpack.c.l.b16 %v1237
          %v1277 = vunpack.c.l.b16 %v1238
          %v1278 = vunpack.c.l.b16 %v1239
          %v1279 = vunpack.c.l.b16 %v1240
          %v1280 = vunpack.c.l.b16 %v1241
          %v1281 = vunpack.c.l.b16 %v1242
          %v1282 = vunpack.c.l.b16 %v1243
          %v1283 = vunpack.c.l.b16 %v1244
          %v1284 = vunpack.c.l.b16 %v1245
          %v1285 = vunpack.c.l.b16 %v1246
          %v1286 = vunpack.c.l.b16 %v1247
          %v1287 = vunpack.c.l.b16 %v1248
          %v1288 = vpack.c.b16 %v1273, %v1272
          %v1289 = vpack.c.b16 %v1275, %v1274
          %v1290 = vpack.c.b16 %v1277, %v1276
          %v1291 = vpack.c.b16 %v1279, %v1278
          %v1292 = vpack.c.b16 %v1281, %v1280
          %v1293 = vpack.c.b16 %v1283, %v1282
          %v1294 = vpack.c.b16 %v1285, %v1284
          %v1295 = vpack.c.b16 %v1287, %v1286
          %1304 = vmatprep.subr.bf16.mxu0 0
          %1305 = vmatpush1.bf16.msra.mxu0 %v1295
          %1306 = vmatprep.subr.bf16.mxu0 0
          %1307 = vmatpush1.bf16.msra.mxu0 %v1294
          %1308 = vmatprep.subr.bf16.mxu0 0
          %1309 = vmatpush1.bf16.msra.mxu0 %v1293
          %1310 = vmatprep.subr.bf16.mxu0 0
          %1311 = vmatpush1.bf16.msra.mxu0 %v1292
          %1312 = vmatprep.subr.bf16.mxu0 0
          %1313 = vmatpush1.bf16.msra.mxu0 %v1291
          %1314 = vmatprep.subr.bf16.mxu0 0
          %1315 = vmatpush1.bf16.msra.mxu0 %v1290
          %1316 = vmatprep.subr.bf16.mxu0 0
          %1317 = vmatpush1.bf16.msra.mxu0 %v1289
          %1318 = vmatprep.subr.bf16.mxu0 0
          %1319 = vmatpush1.bf16.msra.mxu0 %v1288
          %1320 = vmatprep.subr.bf16.mxu0 0
          %1321 = vmatpush2.bf16.msra.mxu0 0
          %1322 = vmatprep.subr.bf16.mxu0 0
          %1323 = vmatpush2.bf16.msra.mxu0 0
          %1324 = vmatprep.subr.bf16.mxu0 0
          %1325 = vmatpush2.bf16.msra.mxu0 0
          %1326 = vmatprep.subr.bf16.mxu0 0
          %1327 = vmatpush2.bf16.msra.mxu0 0
          %1328 = vmatprep.subr.bf16.mxu0 0
          %1329 = vmatpush2.bf16.msra.mxu0 0
          %1330 = vmatprep.subr.bf16.mxu0 0
          %1331 = vmatpush2.bf16.msra.mxu0 0
          %1332 = vmatprep.subr.bf16.mxu0 0
          %1333 = vmatpush2.bf16.msra.mxu0 0
          %1334 = vmatprep.subr.bf16.mxu0 0
          %1335 = vmatpush2.bf16.msra.mxu0 0
          %1336 = vmatprep.mubr.bf16.mxu0 0
          %1337 = vmatmul.mubr.bf16.gmra.mxu0 %v1232
          %v1338 = vpop.f32.mrf.mxu0
          %v1339 = vadd.f32 %v1254, %v1338
          %v1340 = vpop.f32.mrf.mxu0
          %v1341 = vpop.f32.mrf.mxu0
          %v1342 = vpop.f32.mrf.mxu0
          %1343 = vdwg.mxu0
          %1344 = vst [vmem:[#allocation14] sm:$0xff] %v1339
        $region88: #{tpu_custom_call.1} parent=55 // pred_fallthru
          _
        // Predicated region
        $region89: #{tpu_custom_call.1} parent=55 // pred_check
          %p1345 = pneg %p249
        $region90: #{tpu_custom_call.1} parent=55 // pred_check_branch
          %1347 = sbr.rel (%p1345) target = $region92
        $region91: #{tpu_custom_call.1} parent=55 // pred_region
          %s1349 = ssub.s32 128, 128
          %1350 = vsyncadd [#allocation5], %s1349
          %s1352 = sshll.u32 [#allocation14], 4
          %s1353 = int_to_ptr.vmem [resolvable:$true] %s1352
          %1355 = dma.vmem_to_hbm [thread:$0]  %s1353, 128, %s9, [#allocation5]
        $region92: #{tpu_custom_call.1} parent=55 // pred_fallthru
          _
        // Predicated region
        $region93: #{tpu_custom_call.1} parent=55 // pred_check
          %p1356 = pneg %p249
        $region94: #{tpu_custom_call.1} parent=55 // pred_check_branch
          %1358 = sbr.rel (%p1356) target = $region96
        $region95: #{tpu_custom_call.1} parent=55 // pred_region
          %1359 = dma.done [#allocation5], 128
        $region96: #{tpu_custom_call.1} parent=55 // pred_fallthru
          _
      $region56: #{tpu_custom_call.1} parent=5 // pred_fallthru
        _
      %p1360 = scmp.le.s32.totalorder 2, %s22
      // Predicated region
      $region97: #{tpu_custom_call.1} parent=5 // pred_check
        %p1361 = pneg %p1360
      $region98: #{tpu_custom_call.1} parent=5 // pred_check_branch
        %1363 = sbr.rel (%p1361) target = $region100
      $region99: #{tpu_custom_call.1} parent=5 // pred_region
        %s1364 = ssub.s32 %s22, 2
      $region100: #{tpu_custom_call.1} parent=5 // pred_fallthru
        _
    $region6: #{tpu_custom_call.1} parent=1 // loop_footer
      %s26 = sadd.s32 1, %s22
    $region7: #{tpu_custom_call.1} parent=1 // loop_footer_branch
      %21 = sbr.rel target = $region3
    $region8: #{tpu_custom_call.1} parent=1 // loop_exit
      _
    %1365 = vsyncpa [#allocation4], 1
    %s1366 = scalar_lea.sflag [#allocation4], 1
    %1367 = vsyncpa %s1366, 1
    %1368 = vsyncpa [#allocation7], 1
    %1369 = vsyncpa [#allocation10], 1
    %s1370 = scalar_lea.sflag [#allocation10], 1
    %1371 = vsyncpa %s1370, 1
    %1372 = vsyncpa [#allocation13], 1
    %1373 = vsyncpa [#allocation5], 1
    %s1374 = scalar_lea.sflag [#allocation5], 1
    %1375 = vsyncpa %s1374, 1

// kernel: tpu_custom_call.1
$region0: #{tpu_custom_call.1}
  #allocation0 [shape = 'u32[]', space=smem, size = 0x4, offset = 0x4, fixed_abs, tag = 'smem constant byte address 0x4 - core index']
  #allocation1 [shape = 'u32[144,128]{1,0:T(1,128)}', space=vmem, size = 0x12000, scoped, tag = 'internal scratch']
  #allocation2 [shape = 'bf16[128,128]{1,0:T(8,128)(2,1)}', space=vmem, size = 0x8000, scoped, tag = 'scratch operand']
  %s0 = inlined_call_operand.hbm [shape: bf16[128,128], index: 0, kind: input, shape index: {}]
  %s1 = inlined_call_operand.hbm [shape: bf16[128,128], index: 1, kind: input, shape index: {}]
  %s2 = inlined_call_operand.hbm [shape: bf16[8,128], index: 2, kind: input, shape index: {}]
  %s3 = inlined_call_operand.hbm [shape: bf16[2,128,128], index: 3, kind: input, shape index: {}]
  %s4 = inlined_call_operand.vmem [shape: f32[2,1,128], index: 4, kind: input, shape index: {}]
  %s5 = inlined_call_operand.hbm [shape: bf16[2,128,128], index: 5, kind: input, shape index: {}]
  %s6 = inlined_call_operand.vmem [shape: f32[2,1,128], index: 6, kind: input, shape index: {}]
  %s7 = inlined_call_operand.hbm [shape: bf16[128,128], index: 7, kind: input, shape index: {}]
  %s8 = inlined_call_operand.vmem [shape: f32[1,128], index: 8, kind: input, shape index: {}]
  %s9 = inlined_call_operand.hbm [shape: f32[8,128], index: 9, kind: output, shape index: {}]
  %s10 = sld [smem:[#allocation0]]
  $region101: #{tpu_custom_call.1} parent=0
    _
  %s12 = ssub.s32 1, %s10
  %s13 = scalar_select 0, %s12, %s10
  $region1: #{tpu_custom_call.1} parent=0
    #allocation3 [shape = 'u8[32768]{0}', space=vmem, size = 0x8000, scoped, tag = 'input window, operand 0, single buffered']
    #allocation4 [shape = 's32[2]{0}', space=sflag, size = 0x8, scoped, tag = 'scoped memory for tpu_custom_call.1']
    #allocation5 [shape = 's32[2]{0}', space=sflag, size = 0x8, scoped, tag = 'scoped memory for tpu_custom_call.1']
    #allocation6 [shape = 'u8[32768]{0}', space=vmem, size = 0x8000, scoped, tag = 'input window, operand 1, single buffered']
    #allocation7 [shape = 's32[1]{0}', space=sflag, size = 0x4, scoped, tag = 'scoped memory for tpu_custom_call.1']
    #allocation8 [shape = 'u8[2048]{0}', space=vmem, size = 0x800, scoped, tag = 'input window, operand 2, single buffered']
    #allocation9 [shape = 'u8[65536]{0}', space=vmem, size = 0x10000, scoped, tag = 'input window, operand 3']
    #allocation10 [shape = 's32[2]{0}', space=sflag, size = 0x8, scoped, tag = 'scoped memory for tpu_custom_call.1']
    #allocation11 [shape = 'u8[65536]{0}', space=vmem, size = 0x10000, scoped, tag = 'input window, operand 5']
    #allocation12 [shape = 'u8[32768]{0}', space=vmem, size = 0x8000, scoped, tag = 'input window, operand 7, single buffered']
    #allocation13 [shape = 's32[1]{0}', space=sflag, size = 0x4, scoped, tag = 'scoped memory for tpu_custom_call.1']
    #allocation14 [shape = 'u8[4096]{0}', space=vmem, size = 0x1000, scoped, tag = 'output window, operand 0, single buffered']
    %14 = vsyncpa [#allocation4], 0
    %15 = vsyncpa [#allocation7], 0
    %16 = vsyncpa [#allocation10], 0
    %s17 = scalar_lea.sflag [#allocation10], 1
    %18 = vsyncpa %s17, 0
    %19 = vsyncpa [#allocation13], 0
    %20 = vsyncpa [#allocation5], 0
    loop: start=0, step=1, limit=4
    $region2: #{tpu_custom_call.1} parent=1 // loop_pre_header
      _
    $region3: #{tpu_custom_call.1} parent=1 // loop_header
      %s22 = sphi 0, %s26
      %p23 = scmp.ge.s32.totalorder %s22, 4
      %s30 = sphi 0, %s30
      %s32 = sphi 0, %s30
      %s33 = sphi 0, %s32
      %s47 = sphi 0, %s33
      %s51 = sphi 0, %s51
      %s53 = sphi 0, %s51
      %s54 = sphi 0, %s53
      %s68 = sphi 0, %s54
      %s72 = sphi 0, %s72
      %s74 = sphi 0, %s72
      %s75 = sphi 0, %s74
      %s89 = sphi 0, %s75
      %s95 = sphi 0, %s97
      %s98 = sphi 0, %s95
      %s99 = sphi 0, %s98
      %s115 = sphi 0, %s99
      %s121 = sphi 0, %s123
      %s124 = sphi 0, %s121
      %s125 = sphi 0, %s124
      %s141 = sphi 0, %s125
      %s147 = sphi 0, %s149
      %s150 = sphi 0, %s147
      %s151 = sphi 0, %s150
      %s167 = sphi 0, %s151
      %s173 = sphi 0, %s175
      %s176 = sphi 0, %s173
      %s177 = sphi 0, %s176
      %s193 = sphi 0, %s177
      %s197 = sphi 0, %s197
      %s199 = sphi 0, %s197
      %s200 = sphi 0, %s199
      %s214 = sphi 0, %s200
      %s218 = sphi 0, %s218
      %s220 = sphi 0, %s218
      %s221 = sphi 0, %s220
      %s235 = sphi 0, %s221
      %s239 = sphi 0, %s239
      %s241 = sphi 0, %s239
      %s242 = sphi 0, %s241
      %s256 = sphi 0, %s242
    $region4: #{tpu_custom_call.1} parent=1 // loop_header_branch
      %25 = sbr.rel (%p23) target = $region8
    $region5: #{tpu_custom_call.1} parent=1 // loop_body
      %s27 = ssub.s32 %s22, 1
      %s28 = ssub.s32 %s22, 2
      %s29 = sadd.s32 %s22, 1
      %s31 = sadd.s32 %s30, 1
      %p34 = scmp.eq.s32.totalorder %s22, 1
      %p35 = scmp.ne.s32.totalorder %s30, %s32
      %p36 = scmp.eq.s32.totalorder %s22, 0
      %p37 = por %p35, %p36
      %p38 = scmp.ne.s32.totalorder %s30, %s32
      %p39 = scmp.eq.s32.totalorder %s27, 1
      %p40 = por %p38, %p39
      %p41 = scmp.ne.s32.totalorder %s32, %s33
      %p42 = scmp.eq.s32.totalorder %s27, 0
      %p43 = por %p41, %p42
      %p44 = scmp.ne.s32.totalorder %s32, %s33
      %p45 = scmp.eq.s32.totalorder %s28, 1
      %p46 = por %p44, %p45
      %p48 = scmp.ne.s32.totalorder %s33, %s47
      %p49 = scmp.eq.s32.totalorder %s28, 0
      %p50 = por %p48, %p49
      %s52 = sadd.s32 %s51, 1
      %p55 = scmp.eq.s32.totalorder %s22, 1
      %p56 = scmp.ne.s32.totalorder %s51, %s53
      %p57 = scmp.eq.s32.totalorder %s22, 0
      %p58 = por %p56, %p57
      %p59 = scmp.ne.s32.totalorder %s51, %s53
      %p60 = scmp.eq.s32.totalorder %s27, 1
      %p61 = por %p59, %p60
      %p62 = scmp.ne.s32.totalorder %s53, %s54
      %p63 = scmp.eq.s32.totalorder %s27, 0
      %p64 = por %p62, %p63
      %p65 = scmp.ne.s32.totalorder %s53, %s54
      %p66 = scmp.eq.s32.totalorder %s28, 1
      %p67 = por %p65, %p66
      %p69 = scmp.ne.s32.totalorder %s54, %s68
      %p70 = scmp.eq.s32.totalorder %s28, 0
      %p71 = por %p69, %p70
      %s73 = sadd.s32 %s72, 1
      %p76 = scmp.eq.s32.totalorder %s22, 1
      %p77 = scmp.ne.s32.totalorder %s72, %s74
      %p78 = scmp.eq.s32.totalorder %s22, 0
      %p79 = por %p77, %p78
      %p80 = scmp.ne.s32.totalorder %s72, %s74
      %p81 = scmp.eq.s32.totalorder %s27, 1
      %p82 = por %p80, %p81
      %p83 = scmp.ne.s32.totalorder %s74, %s75
      %p84 = scmp.eq.s32.totalorder %s27, 0
      %p85 = por %p83, %p84
      %p86 = scmp.ne.s32.totalorder %s74, %s75
      %p87 = scmp.eq.s32.totalorder %s28, 1
      %p88 = por %p86, %p87
      %p90 = scmp.ne.s32.totalorder %s75, %s89
      %p91 = scmp.eq.s32.totalorder %s28, 0
      %p92 = por %p90, %p91
      %s93 = ssub.s32 %s22, %s29
      %p94 = scmp.eq.s32.totalorder %s93, 0
      %s96 = sadd.s32 %s95, 1
      %s97 = scalar_select %p94, %s95, %s96
      %p100 = pneg %p94
      %p101 = scmp.eq.s32.totalorder %s22, 1
      %p102 = por %p100, %p101
      %p103 = scmp.ne.s32.totalorder %s95, %s98
      %p104 = scmp.eq.s32.totalorder %s22, 0
      %p105 = por %p103, %p104
      %p106 = scmp.ne.s32.totalorder %s95, %s98
      %p107 = scmp.eq.s32.totalorder %s27, 1
      %p108 = por %p106, %p107
      %p109 = scmp.ne.s32.totalorder %s98, %s99
      %p110 = scmp.eq.s32.totalorder %s27, 0
      %p111 = por %p109, %p110
      %p112 = scmp.ne.s32.totalorder %s98, %s99
      %p113 = scmp.eq.s32.totalorder %s28, 1
      %p114 = por %p112, %p113
      %p116 = scmp.ne.s32.totalorder %s99, %s115
      %p117 = scmp.eq.s32.totalorder %s28, 0
      %p118 = por %p116, %p117
      %s119 = ssub.s32 %s22, %s29
      %p120 = scmp.eq.s32.totalorder %s119, 0
      %s122 = sadd.s32 %s121, 1
      %s123 = scalar_select %p120, %s121, %s122
      %p126 = pneg %p120
      %p127 = scmp.eq.s32.totalorder %s22, 1
      %p128 = por %p126, %p127
      %p129 = scmp.ne.s32.totalorder %s121, %s124
      %p130 = scmp.eq.s32.totalorder %s22, 0
      %p131 = por %p129, %p130
      %p132 = scmp.ne.s32.totalorder %s121, %s124
      %p133 = scmp.eq.s32.totalorder %s27, 1
      %p134 = por %p132, %p133
      %p135 = scmp.ne.s32.totalorder %s124, %s125
      %p136 = scmp.eq.s32.totalorder %s27, 0
      %p137 = por %p135, %p136
      %p138 = scmp.ne.s32.totalorder %s124, %s125
      %p139 = scmp.eq.s32.totalorder %s28, 1
      %p140 = por %p138, %p139
      %p142 = scmp.ne.s32.totalorder %s125, %s141
      %p143 = scmp.eq.s32.totalorder %s28, 0
      %p144 = por %p142, %p143
      %s145 = ssub.s32 %s22, %s29
      %p146 = scmp.eq.s32.totalorder %s145, 0
      %s148 = sadd.s32 %s147, 1
      %s149 = scalar_select %p146, %s147, %s148
      %p152 = pneg %p146
      %p153 = scmp.eq.s32.totalorder %s22, 1
      %p154 = por %p152, %p153
      %p155 = scmp.ne.s32.totalorder %s147, %s150
      %p156 = scmp.eq.s32.totalorder %s22, 0
      %p157 = por %p155, %p156
      %p158 = scmp.ne.s32.totalorder %s147, %s150
      %p159 = scmp.eq.s32.totalorder %s27, 1
      %p160 = por %p158, %p159
      %p161 = scmp.ne.s32.totalorder %s150, %s151
      %p162 = scmp.eq.s32.totalorder %s27, 0
      %p163 = por %p161, %p162
      %p164 = scmp.ne.s32.totalorder %s150, %s151
      %p165 = scmp.eq.s32.totalorder %s28, 1
      %p166 = por %p164, %p165
      %p168 = scmp.ne.s32.totalorder %s151, %s167
      %p169 = scmp.eq.s32.totalorder %s28, 0
      %p170 = por %p168, %p169
      %s171 = ssub.s32 %s22, %s29
      %p172 = scmp.eq.s32.totalorder %s171, 0
      %s174 = sadd.s32 %s173, 1
      %s175 = scalar_select %p172, %s173, %s174
      %p178 = pneg %p172
      %p179 = scmp.eq.s32.totalorder %s22, 1
      %p180 = por %p178, %p179
      %p181 = scmp.ne.s32.totalorder %s173, %s176
      %p182 = scmp.eq.s32.totalorder %s22, 0
      %p183 = por %p181, %p182
      %p184 = scmp.ne.s32.totalorder %s173, %s176
      %p185 = scmp.eq.s32.totalorder %s27, 1
      %p186 = por %p184, %p185
      %p187 = scmp.ne.s32.totalorder %s176, %s177
      %p188 = scmp.eq.s32.totalorder %s27, 0
      %p189 = por %p187, %p188
      %p190 = scmp.ne.s32.totalorder %s176, %s177
      %p191 = scmp.eq.s32.totalorder %s28, 1
      %p192 = por %p190, %p191
      %p194 = scmp.ne.s32.totalorder %s177, %s193
      %p195 = scmp.eq.s32.totalorder %s28, 0
      %p196 = por %p194, %p195
      %s198 = sadd.s32 %s197, 1
      %p201 = scmp.eq.s32.totalorder %s22, 1
      %p202 = scmp.ne.s32.totalorder %s197, %s199
      %p203 = scmp.eq.s32.totalorder %s22, 0
      %p204 = por %p202, %p203
      %p205 = scmp.ne.s32.totalorder %s197, %s199
      %p206 = scmp.eq.s32.totalorder %s27, 1
      %p207 = por %p205, %p206
      %p208 = scmp.ne.s32.totalorder %s199, %s200
      %p209 = scmp.eq.s32.totalorder %s27, 0
      %p210 = por %p208, %p209
      %p211 = scmp.ne.s32.totalorder %s199, %s200
      %p212 = scmp.eq.s32.totalorder %s28, 1
      %p213 = por %p211, %p212
      %p215 = scmp.ne.s32.totalorder %s200, %s214
      %p216 = scmp.eq.s32.totalorder %s28, 0
      %p217 = por %p215, %p216
      %s219 = sadd.s32 %s218, 1
      %p222 = scmp.eq.s32.totalorder %s22, 1
      %p223 = scmp.ne.s32.totalorder %s218, %s220
      %p224 = scmp.eq.s32.totalorder %s22, 0
      %p225 = por %p223, %p224
      %p226 = scmp.ne.s32.totalorder %s218, %s220
      %p227 = scmp.eq.s32.totalorder %s27, 1
      %p228 = por %p226, %p227
      %p229 = scmp.ne.s32.totalorder %s220, %s221
      %p230 = scmp.eq.s32.totalorder %s27, 0
      %p231 = por %p229, %p230
      %p232 = scmp.ne.s32.totalorder %s220, %s221
      %p233 = scmp.eq.s32.totalorder %s28, 1
      %p234 = por %p232, %p233
      %p236 = scmp.ne.s32.totalorder %s221, %s235
      %p237 = scmp.eq.s32.totalorder %s28, 0
      %p238 = por %p236, %p237
      %s240 = sadd.s32 %s239, 1
      %p243 = scmp.eq.s32.totalorder %s22, 1
      %p244 = scmp.ne.s32.totalorder %s239, %s241
      %p245 = scmp.eq.s32.totalorder %s22, 0
      %p246 = por %p244, %p245
      %p247 = scmp.ne.s32.totalorder %s239, %s241
      %p248 = scmp.eq.s32.totalorder %s27, 1
      %p249 = por %p247, %p248
      %p250 = scmp.ne.s32.totalorder %s241, %s242
      %p251 = scmp.eq.s32.totalorder %s27, 0
      %p252 = por %p250, %p251
      %p253 = scmp.ne.s32.totalorder %s241, %s242
      %p254 = scmp.eq.s32.totalorder %s28, 1
      %p255 = por %p253, %p254
      %p257 = scmp.ne.s32.totalorder %s242, %s256
      %p258 = scmp.eq.s32.totalorder %s28, 0
      %p259 = por %p257, %p258
      %p260 = scmp.le.s32.totalorder 1, %s22
      %p261 = scmp.lt.s32.totalorder %s22, 3
      %p262 = pnand %p260, %p261
      %p263 = pneg %p262
      // Predicated region
      $region9: #{tpu_custom_call.1} parent=5 // pred_check
        _
      $region10: #{tpu_custom_call.1} parent=5 // pred_check_branch
        %265 = sbr.rel (%p262) target = $region12
      $region11: #{tpu_custom_call.1} parent=5 // pred_region
        %s266 = ssub.s32 %s22, 1
        // Predicated region
        $region13: #{tpu_custom_call.1} parent=11 // pred_check
          %p267 = pneg %p43
        $region14: #{tpu_custom_call.1} parent=11 // pred_check_branch
          %269 = sbr.rel (%p267) target = $region16
        $region15: #{tpu_custom_call.1} parent=11 // pred_region
          %s271 = ssub.s32 1024, 1024
          %272 = vsyncadd [#allocation4], %s271
          %s273 = sshll.u32 [#allocation3], 4
          %s274 = int_to_ptr.vmem [resolvable:$true] %s273
          %279 = dma.hbm_to_vmem [thread:$0]  %s0, 1024, %s274, [#allocation4], 64, 64, 4
        $region16: #{tpu_custom_call.1} parent=11 // pred_fallthru
          _
        // Predicated region
        $region17: #{tpu_custom_call.1} parent=11 // pred_check
          %p280 = pneg %p64
        $region18: #{tpu_custom_call.1} parent=11 // pred_check_branch
          %282 = sbr.rel (%p280) target = $region20
        $region19: #{tpu_custom_call.1} parent=11 // pred_region
          %s284 = ssub.s32 1024, 1024
          %285 = vsyncadd [#allocation7], %s284
          %s286 = sshll.u32 [#allocation6], 4
          %s287 = int_to_ptr.vmem [resolvable:$true] %s286
          %292 = dma.hbm_to_vmem [thread:$0]  %s1, 1024, %s287, [#allocation7], 64, 64, 4
        $region20: #{tpu_custom_call.1} parent=11 // pred_fallthru
          _
        // Predicated region
        $region21: #{tpu_custom_call.1} parent=11 // pred_check
          %p293 = pneg %p85
        $region22: #{tpu_custom_call.1} parent=11 // pred_check_branch
          %295 = sbr.rel (%p293) target = $region24
        $region23: #{tpu_custom_call.1} parent=11 // pred_region
          %s297 = ssub.s32 64, 64
          %298 = vsyncadd [#allocation7], %s297
          %s300 = sshll.u32 [#allocation8], 4
          %s301 = int_to_ptr.vmem [resolvable:$true] %s300
          %303 = dma.hbm_to_vmem [thread:$0]  %s2, 64, %s301, [#allocation7]
        $region24: #{tpu_custom_call.1} parent=11 // pred_fallthru
          _
        // Predicated region
        $region25: #{tpu_custom_call.1} parent=11 // pred_check
          %p304 = pneg %p210
        $region26: #{tpu_custom_call.1} parent=11 // pred_check_branch
          %306 = sbr.rel (%p304) target = $region28
        $region27: #{tpu_custom_call.1} parent=11 // pred_region
          %s308 = ssub.s32 1024, 1024
          %309 = vsyncadd [#allocation13], %s308
          %s310 = sshll.u32 [#allocation12], 4
          %s311 = int_to_ptr.vmem [resolvable:$true] %s310
          %316 = dma.hbm_to_vmem [thread:$0]  %s7, 1024, %s311, [#allocation13], 64, 64, 4
        $region28: #{tpu_custom_call.1} parent=11 // pred_fallthru
          _
        // Predicated region
        $region29: #{tpu_custom_call.1} parent=11 // pred_check
          %p317 = pneg %p231
        $region30: #{tpu_custom_call.1} parent=11 // pred_check_branch
          %319 = sbr.rel (%p317) target = $region32
        $region31: #{tpu_custom_call.1} parent=11 // pred_region
          _
        $region32: #{tpu_custom_call.1} parent=11 // pred_fallthru
          _
      $region12: #{tpu_custom_call.1} parent=5 // pred_fallthru
        _
      %p320 = scmp.lt.s32.totalorder %s22, 2
      // Predicated region
      $region33: #{tpu_custom_call.1} parent=5 // pred_check
        %p321 = pneg %p320
      $region34: #{tpu_custom_call.1} parent=5 // pred_check_branch
        %323 = sbr.rel (%p321) target = $region36
      $region35: #{tpu_custom_call.1} parent=5 // pred_region
        // Predicated region
        $region37: #{tpu_custom_call.1} parent=35 // pred_check
          %p324 = pneg %p105
        $region38: #{tpu_custom_call.1} parent=35 // pred_check_branch
          %326 = sbr.rel (%p324) target = $region40
        $region39: #{tpu_custom_call.1} parent=35 // pred_region
          %s327 = sand.u32 %s22, 1
          %s328 = scalar_lea.sflag [#allocation10], %s327
          %s329 = sand.u32 %s95, 1
          %s330 = smul.addr %s329, 64
          %s331 = scalar_lea.vmem [#allocation9], %s330
          %s333 = ssub.s32 1024, 1024
          %334 = vsyncadd %s328, %s333
          %s335 = smul.addr %s22, 16
          %s336 = smul.addr %s335, 64
          %s337 = scalar_lea.hbm %s3, %s336
          %s338 = sshll.u32 %s331, 4
          %s339 = int_to_ptr.vmem [resolvable:$true] %s338
          %344 = dma.hbm_to_vmem [thread:$0]  %s337, 1024, %s339, %s328, 64, 64, 4
        $region40: #{tpu_custom_call.1} parent=35 // pred_fallthru
          _
        // Predicated region
        $region41: #{tpu_custom_call.1} parent=35 // pred_check
          %p345 = pneg %p131
        $region42: #{tpu_custom_call.1} parent=35 // pred_check_branch
          %347 = sbr.rel (%p345) target = $region44
        $region43: #{tpu_custom_call.1} parent=35 // pred_region
          %p348 = scmp.lt.s32.totalorder %s22, 1
          %s349 = scalar_select %p348, %s22, 1
          %s350 = scalar_lea.vmem %s4, %s349
        $region44: #{tpu_custom_call.1} parent=35 // pred_fallthru
          _
        // Predicated region
        $region45: #{tpu_custom_call.1} parent=35 // pred_check
          %p351 = pneg %p157
        $region46: #{tpu_custom_call.1} parent=35 // pred_check_branch
          %353 = sbr.rel (%p351) target = $region48
        $region47: #{tpu_custom_call.1} parent=35 // pred_region
          %s354 = sand.u32 %s22, 1
          %s355 = scalar_lea.sflag [#allocation10], %s354
          %s356 = sand.u32 %s147, 1
          %s357 = smul.addr %s356, 64
          %s358 = scalar_lea.vmem [#allocation11], %s357
          %s360 = ssub.s32 1024, 1024
          %361 = vsyncadd %s355, %s360
          %s362 = smul.addr %s22, 16
          %s363 = smul.addr %s362, 64
          %s364 = scalar_lea.hbm %s5, %s363
          %s365 = sshll.u32 %s358, 4
          %s366 = int_to_ptr.vmem [resolvable:$true] %s365
          %371 = dma.hbm_to_vmem [thread:$0]  %s364, 1024, %s366, %s355, 64, 64, 4
        $region48: #{tpu_custom_call.1} parent=35 // pred_fallthru
          _
        // Predicated region
        $region49: #{tpu_custom_call.1} parent=35 // pred_check
          %p372 = pneg %p183
        $region50: #{tpu_custom_call.1} parent=35 // pred_check_branch
          %374 = sbr.rel (%p372) target = $region52
        $region51: #{tpu_custom_call.1} parent=35 // pred_region
          %p375 = scmp.lt.s32.totalorder %s22, 1
          %s376 = scalar_select %p375, %s22, 1
          %s377 = scalar_lea.vmem %s6, %s376
        $region52: #{tpu_custom_call.1} parent=35 // pred_fallthru
          _
      $region36: #{tpu_custom_call.1} parent=5 // pred_fallthru
        _
      %p378 = scmp.le.s32.totalorder 1, %s22
      %p379 = scmp.lt.s32.totalorder %s22, 3
      %p380 = pnand %p378, %p379
      %p381 = pneg %p380
      // Predicated region
      $region53: #{tpu_custom_call.1} parent=5 // pred_check
        _
      $region54: #{tpu_custom_call.1} parent=5 // pred_check_branch
        %383 = sbr.rel (%p380) target = $region56
      $region55: #{tpu_custom_call.1} parent=5 // pred_region
        %s384 = ssub.s32 %s22, 1
        // Predicated region
        $region57: #{tpu_custom_call.1} parent=55 // pred_check
          %p385 = pneg %p43
        $region58: #{tpu_custom_call.1} parent=55 // pred_check_branch
          %387 = sbr.rel (%p385) target = $region60
        $region59: #{tpu_custom_call.1} parent=55 // pred_region
          %388 = dma.done [#allocation4], 1024
        $region60: #{tpu_custom_call.1} parent=55 // pred_fallthru
          _
        // Predicated region
        $region61: #{tpu_custom_call.1} parent=55 // pred_check
          %p389 = pneg %p64
        $region62: #{tpu_custom_call.1} parent=55 // pred_check_branch
          %391 = sbr.rel (%p389) target = $region64
        $region63: #{tpu_custom_call.1} parent=55 // pred_region
          %392 = dma.done [#allocation7], 1024
        $region64: #{tpu_custom_call.1} parent=55 // pred_fallthru
          _
        // Predicated region
        $region65: #{tpu_custom_call.1} parent=55 // pred_check
          %p393 = pneg %p85
        $region66: #{tpu_custom_call.1} parent=55 // pred_check_branch
          %395 = sbr.rel (%p393) target = $region68
        $region67: #{tpu_custom_call.1} parent=55 // pred_region
          %396 = dma.done [#allocation7], 64
        $region68: #{tpu_custom_call.1} parent=55 // pred_fallthru
          _
        %s397 = sand.u32 %s27, 1
        %s398 = scalar_lea.sflag [#allocation10], %s397
        %s399 = sand.u32 %s98, 1
        %s400 = smul.addr %s399, 64
        %s401 = scalar_lea.vmem [#allocation9], %s400
        // Predicated region
        $region69: #{tpu_custom_call.1} parent=55 // pred_check
          %p402 = pneg %p111
        $region70: #{tpu_custom_call.1} parent=55 // pred_check_branch
          %404 = sbr.rel (%p402) target = $region72
        $region71: #{tpu_custom_call.1} parent=55 // pred_region
          %405 = dma.done %s398, 1024
        $region72: #{tpu_custom_call.1} parent=55 // pred_fallthru
          _
        %s406 = sand.u32 %s27, 1
        %s407 = scalar_lea.sflag [#allocation10], %s406
        %s408 = sand.u32 %s150, 1
        %s409 = smul.addr %s408, 64
        %s410 = scalar_lea.vmem [#allocation11], %s409
        // Predicated region
        $region73: #{tpu_custom_call.1} parent=55 // pred_check
          %p411 = pneg %p163
        $region74: #{tpu_custom_call.1} parent=55 // pred_check_branch
          %413 = sbr.rel (%p411) target = $region76
        $region75: #{tpu_custom_call.1} parent=55 // pred_region
          %414 = dma.done %s407, 1024
        $region76: #{tpu_custom_call.1} parent=55 // pred_fallthru
          _
        // Predicated region
        $region77: #{tpu_custom_call.1} parent=55 // pred_check
          %p415 = pneg %p210
        $region78: #{tpu_custom_call.1} parent=55 // pred_check_branch
          %417 = sbr.rel (%p415) target = $region80
        $region79: #{tpu_custom_call.1} parent=55 // pred_region
          %418 = dma.done [#allocation13], 1024
        $region80: #{tpu_custom_call.1} parent=55 // pred_fallthru
          _
        %p419 = pneg %p43
        %p420 = pneg %p40
        %p421 = pneg %p64
        %p422 = pneg %p61
        %p423 = pneg %p85
        %p424 = pneg %p82
        %s425 = sand.u32 %s27, 1
        %s426 = scalar_lea.sflag [#allocation10], %s425
        %s427 = sand.u32 %s98, 1
        %s428 = smul.addr %s427, 64
        %s429 = scalar_lea.vmem [#allocation9], %s428
        %p430 = pneg %p111
        %p431 = pneg %p108
        %p432 = scmp.lt.s32.totalorder %s27, 1
        %s433 = scalar_select %p432, %s27, 1
        %s434 = scalar_lea.vmem %s4, %s433
        %p435 = pneg %p137
        %p436 = pneg %p134
        %s437 = sand.u32 %s27, 1
        %s438 = scalar_lea.sflag [#allocation10], %s437
        %s439 = sand.u32 %s150, 1
        %s440 = smul.addr %s439, 64
        %s441 = scalar_lea.vmem [#allocation11], %s440
        %p442 = pneg %p163
        %p443 = pneg %p160
        %p444 = scmp.lt.s32.totalorder %s27, 1
        %s445 = scalar_select %p444, %s27, 1
        %s446 = scalar_lea.vmem %s6, %s445
        %p447 = pneg %p189
        %p448 = pneg %p186
        %p449 = pneg %p210
        %p450 = pneg %p207
        %p451 = pneg %p231
        %p452 = pneg %p228
        %p453 = pneg %p252
        %p454 = pneg %p249
        %p455 = scmp.lt.s32.totalorder %s27, 1
        %s456 = scalar_select %p455, %s27, 1
        %s457 = scalar_lea.vmem %s4, %s456
        %p458 = scmp.lt.s32.totalorder %s27, 1
        %s459 = scalar_select %p458, %s27, 1
        %s460 = scalar_lea.vmem %s6, %s459
        %p462 = scmp.eq.s32.totalorder %s27, 0
        // Predicated region
        $region81: #{tpu_custom_call.1} parent=55 // pred_check
          %p463 = pneg %p462
        $region82: #{tpu_custom_call.1} parent=55 // pred_check_branch
          %465 = sbr.rel (%p463) target = $region84
        $region83: #{tpu_custom_call.1} parent=55 // pred_region
          %v466 = vld [vmem:[#allocation6] sm:$0xf]
          %v467 = vld [vmem:[#allocation6 + $0x4] sm:$0xf]
          %v468 = vld [vmem:[#allocation6 + $0x8] sm:$0xf]
          %v469 = vld [vmem:[#allocation6 + $0xc] sm:$0xf]
          %v470 = vld [vmem:[#allocation6 + $0x10] sm:$0xf]
          %v471 = vld [vmem:[#allocation6 + $0x14] sm:$0xf]
          %v472 = vld [vmem:[#allocation6 + $0x18] sm:$0xf]
          %v473 = vld [vmem:[#allocation6 + $0x1c] sm:$0xf]
          %v474 = vld [vmem:[#allocation6 + $0x20] sm:$0xf]
          %v475 = vld [vmem:[#allocation6 + $0x24] sm:$0xf]
          %v476 = vld [vmem:[#allocation6 + $0x28] sm:$0xf]
          %v477 = vld [vmem:[#allocation6 + $0x2c] sm:$0xf]
          %v478 = vld [vmem:[#allocation6 + $0x30] sm:$0xf]
          %v479 = vld [vmem:[#allocation6 + $0x34] sm:$0xf]
          %v480 = vld [vmem:[#allocation6 + $0x38] sm:$0xf]
          %v481 = vld [vmem:[#allocation6 + $0x3c] sm:$0xf]
          %482 = vst [vmem:[#allocation2] sm:$0xf] %v466
          %483 = vst [vmem:[#allocation2 + $0x4] sm:$0xf] %v467
          %484 = vst [vmem:[#allocation2 + $0x8] sm:$0xf] %v468
          %485 = vst [vmem:[#allocation2 + $0xc] sm:$0xf] %v469
          %486 = vst [vmem:[#allocation2 + $0x10] sm:$0xf] %v470
          %487 = vst [vmem:[#allocation2 + $0x14] sm:$0xf] %v471
          %488 = vst [vmem:[#allocation2 + $0x18] sm:$0xf] %v472
          %489 = vst [vmem:[#allocation2 + $0x1c] sm:$0xf] %v473
          %490 = vst [vmem:[#allocation2 + $0x20] sm:$0xf] %v474
          %491 = vst [vmem:[#allocation2 + $0x24] sm:$0xf] %v475
          %492 = vst [vmem:[#allocation2 + $0x28] sm:$0xf] %v476
          %493 = vst [vmem:[#allocation2 + $0x2c] sm:$0xf] %v477
          %494 = vst [vmem:[#allocation2 + $0x30] sm:$0xf] %v478
          %495 = vst [vmem:[#allocation2 + $0x34] sm:$0xf] %v479
          %496 = vst [vmem:[#allocation2 + $0x38] sm:$0xf] %v480
          %497 = vst [vmem:[#allocation2 + $0x3c] sm:$0xf] %v481
        $region84: #{tpu_custom_call.1} parent=55 // pred_fallthru
          _
        %v498 = vld [vmem:[#allocation2] sm:$0xf]
        %v499 = vld [vmem:[#allocation2 + $0x4] sm:$0xf]
        %v500 = vld [vmem:[#allocation2 + $0x8] sm:$0xf]
        %v501 = vld [vmem:[#allocation2 + $0xc] sm:$0xf]
        %v502 = vld [vmem:[#allocation2 + $0x10] sm:$0xf]
        %v503 = vld [vmem:[#allocation2 + $0x14] sm:$0xf]
        %v504 = vld [vmem:[#allocation2 + $0x18] sm:$0xf]
        %v505 = vld [vmem:[#allocation2 + $0x1c] sm:$0xf]
        %v506 = vld [vmem:[#allocation2 + $0x20] sm:$0xf]
        %v507 = vld [vmem:[#allocation2 + $0x24] sm:$0xf]
        %v508 = vld [vmem:[#allocation2 + $0x28] sm:$0xf]
        %v509 = vld [vmem:[#allocation2 + $0x2c] sm:$0xf]
        %v510 = vld [vmem:[#allocation2 + $0x30] sm:$0xf]
        %v511 = vld [vmem:[#allocation2 + $0x34] sm:$0xf]
        %v512 = vld [vmem:[#allocation2 + $0x38] sm:$0xf]
        %v513 = vld [vmem:[#allocation2 + $0x3c] sm:$0xf]
        %v514 = vld [vmem:[#allocation3] sm:$0xf]
        %v515 = vld [vmem:[#allocation3 + $0x4] sm:$0xf]
        %v516 = vld [vmem:[#allocation3 + $0x8] sm:$0xf]
        %v517 = vld [vmem:[#allocation3 + $0xc] sm:$0xf]
        %v518 = vld [vmem:[#allocation3 + $0x10] sm:$0xf]
        %v519 = vld [vmem:[#allocation3 + $0x14] sm:$0xf]
        %v520 = vld [vmem:[#allocation3 + $0x18] sm:$0xf]
        %v521 = vld [vmem:[#allocation3 + $0x1c] sm:$0xf]
        %v522 = vld [vmem:[#allocation3 + $0x20] sm:$0xf]
        %v523 = vld [vmem:[#allocation3 + $0x24] sm:$0xf]
        %v524 = vld [vmem:[#allocation3 + $0x28] sm:$0xf]
        %v525 = vld [vmem:[#allocation3 + $0x2c] sm:$0xf]
        %v526 = vld [vmem:[#allocation3 + $0x30] sm:$0xf]
        %v527 = vld [vmem:[#allocation3 + $0x34] sm:$0xf]
        %v528 = vld [vmem:[#allocation3 + $0x38] sm:$0xf]
        %v529 = vld [vmem:[#allocation3 + $0x3c] sm:$0xf]
        %v546 = vunpack.c.l.b16 %v514
        %v547 = vunpack.c.l.b16 %v515
        %v548 = vunpack.c.l.b16 %v516
        %v549 = vunpack.c.l.b16 %v517
        %v550 = vunpack.c.l.b16 %v518
        %v551 = vunpack.c.l.b16 %v519
        %v552 = vunpack.c.l.b16 %v520
        %v553 = vunpack.c.l.b16 %v521
        %v554 = vunpack.c.l.b16 %v522
        %v555 = vunpack.c.l.b16 %v523
        %v556 = vunpack.c.l.b16 %v524
        %v557 = vunpack.c.l.b16 %v525
        %v558 = vunpack.c.l.b16 %v526
        %v559 = vunpack.c.l.b16 %v527
        %v560 = vunpack.c.l.b16 %v528
        %v561 = vunpack.c.l.b16 %v529
        %v562 = vpack.c.b16 %v547, %v546
        %v563 = vpack.c.b16 %v549, %v548
        %v564 = vpack.c.b16 %v551, %v550
        %v565 = vpack.c.b16 %v553, %v552
        %v566 = vpack.c.b16 %v555, %v554
        %v567 = vpack.c.b16 %v557, %v556
        %v568 = vpack.c.b16 %v559, %v558
        %v569 = vpack.c.b16 %v561, %v560
        %v594 = vunpack.c.l.b16 %v498
        %v595 = vunpack.c.l.b16 %v499
        %v596 = vunpack.c.l.b16 %v500
        %v597 = vunpack.c.l.b16 %v501
        %v598 = vunpack.c.l.b16 %v502
        %v599 = vunpack.c.l.b16 %v503
        %v600 = vunpack.c.l.b16 %v504
        %v601 = vunpack.c.l.b16 %v505
        %v602 = vunpack.c.l.b16 %v506
        %v603 = vunpack.c.l.b16 %v507
        %v604 = vunpack.c.l.b16 %v508
        %v605 = vunpack.c.l.b16 %v509
        %v606 = vunpack.c.l.b16 %v510
        %v607 = vunpack.c.l.b16 %v511
        %v608 = vunpack.c.l.b16 %v512
        %v609 = vunpack.c.l.b16 %v513
        %v610 = vpack.c.b16 %v595, %v594
        %v611 = vpack.c.b16 %v597, %v596
        %v612 = vpack.c.b16 %v599, %v598
        %v613 = vpack.c.b16 %v601, %v600
        %v614 = vpack.c.b16 %v603, %v602
        %v615 = vpack.c.b16 %v605, %v604
        %v616 = vpack.c.b16 %v607, %v606
        %v617 = vpack.c.b16 %v609, %v608
        %626 = vmatprep.subr.bf16.mxu0 0
        %627 = vmatpush1.bf16.msra.mxu0 %v617
        %628 = vmatprep.subr.bf16.mxu0 0
        %629 = vmatpush1.bf16.msra.mxu0 %v616
        %630 = vmatprep.subr.bf16.mxu0 0
        %631 = vmatpush1.bf16.msra.mxu0 %v615
        %632 = vmatprep.subr.bf16.mxu0 0
        %633 = vmatpush1.bf16.msra.mxu0 %v614
        %634 = vmatprep.subr.bf16.mxu0 0
        %635 = vmatpush1.bf16.msra.mxu0 %v613
        %636 = vmatprep.subr.bf16.mxu0 0
        %637 = vmatpush1.bf16.msra.mxu0 %v612
        %638 = vmatprep.subr.bf16.mxu0 0
        %639 = vmatpush1.bf16.msra.mxu0 %v611
        %640 = vmatprep.subr.bf16.mxu0 0
        %641 = vmatpush1.bf16.msra.mxu0 %v610
        %642 = vmatprep.subr.bf16.mxu0 0
        %643 = vmatpush2.bf16.msra.mxu0 0
        %644 = vmatprep.subr.bf16.mxu0 0
        %645 = vmatpush2.bf16.msra.mxu0 0
        %646 = vmatprep.subr.bf16.mxu0 0
        %647 = vmatpush2.bf16.msra.mxu0 0
        %648 = vmatprep.subr.bf16.mxu0 0
        %649 = vmatpush2.bf16.msra.mxu0 0
        %650 = vmatprep.subr.bf16.mxu0 0
        %651 = vmatpush2.bf16.msra.mxu0 0
        %652 = vmatprep.subr.bf16.mxu0 0
        %653 = vmatpush2.bf16.msra.mxu0 0
        %654 = vmatprep.subr.bf16.mxu0 0
        %655 = vmatpush2.bf16.msra.mxu0 0
        %656 = vmatprep.subr.bf16.mxu0 0
        %657 = vmatpush2.bf16.msra.mxu0 0
        %658 = vmatprep.mubr.bf16.mxu0 0
        %659 = vmatmul.mubr.bf16.gmra.mxu0 %v562
        %v660 = vpop.f32.mrf.mxu0
        %v661 = vadd.f32 0.0, %v660
        %v662 = vpop.f32.mrf.mxu0
        %v663 = vpop.f32.mrf.mxu0
        %v664 = vadd.f32 0.0, %v663
        %v665 = vpop.f32.mrf.mxu0
        %666 = vmatprep.mubr.bf16.mxu0 0
        %667 = vmatmul.mubr.bf16.gmra.mxu0 %v563
        %v668 = vpop.f32.mrf.mxu0
        %v669 = vadd.f32 0.0, %v668
        %v670 = vpop.f32.mrf.mxu0
        %v671 = vpop.f32.mrf.mxu0
        %v672 = vadd.f32 0.0, %v671
        %v673 = vpop.f32.mrf.mxu0
        %674 = vmatprep.mubr.bf16.mxu0 0
        %675 = vmatmul.mubr.bf16.gmra.mxu0 %v564
        %v676 = vpop.f32.mrf.mxu0
        %v677 = vadd.f32 0.0, %v676
        %v678 = vpop.f32.mrf.mxu0
        %v679 = vpop.f32.mrf.mxu0
        %v680 = vadd.f32 0.0, %v679
        %v681 = vpop.f32.mrf.mxu0
        %682 = vmatprep.mubr.bf16.mxu0 0
        %683 = vmatmul.mubr.bf16.gmra.mxu0 %v565
        %v684 = vpop.f32.mrf.mxu0
        %v685 = vadd.f32 0.0, %v684
        %v686 = vpop.f32.mrf.mxu0
        %v687 = vpop.f32.mrf.mxu0
        %v688 = vadd.f32 0.0, %v687
        %v689 = vpop.f32.mrf.mxu0
        %690 = vmatprep.mubr.bf16.mxu0 0
        %691 = vmatmul.mubr.bf16.gmra.mxu0 %v566
        %v692 = vpop.f32.mrf.mxu0
        %v693 = vadd.f32 0.0, %v692
        %v694 = vpop.f32.mrf.mxu0
        %v695 = vpop.f32.mrf.mxu0
        %v696 = vadd.f32 0.0, %v695
        %v697 = vpop.f32.mrf.mxu0
        %698 = vmatprep.mubr.bf16.mxu0 0
        %699 = vmatmul.mubr.bf16.gmra.mxu0 %v567
        %v700 = vpop.f32.mrf.mxu0
        %v701 = vadd.f32 0.0, %v700
        %v702 = vpop.f32.mrf.mxu0
        %v703 = vpop.f32.mrf.mxu0
        %v704 = vadd.f32 0.0, %v703
        %v705 = vpop.f32.mrf.mxu0
        %706 = vmatprep.mubr.bf16.mxu0 0
        %707 = vmatmul.mubr.bf16.gmra.mxu0 %v568
        %v708 = vpop.f32.mrf.mxu0
        %v709 = vadd.f32 0.0, %v708
        %v710 = vpop.f32.mrf.mxu0
        %v711 = vpop.f32.mrf.mxu0
        %v712 = vadd.f32 0.0, %v711
        %v713 = vpop.f32.mrf.mxu0
        %714 = vmatprep.mubr.bf16.mxu0 0
        %715 = vmatmul.mubr.bf16.gmra.mxu0 %v569
        %v716 = vpop.f32.mrf.mxu0
        %v717 = vadd.f32 0.0, %v716
        %v718 = vpop.f32.mrf.mxu0
        %v719 = vpop.f32.mrf.mxu0
        %v720 = vadd.f32 0.0, %v719
        %v721 = vpop.f32.mrf.mxu0
        %722 = vdwg.mxu0
        %v723 = vpack.c.bf16 %v664, %v661
        %v724 = vpack.c.bf16 %v672, %v669
        %v725 = vpack.c.bf16 %v680, %v677
        %v726 = vpack.c.bf16 %v688, %v685
        %v727 = vpack.c.bf16 %v696, %v693
        %v728 = vpack.c.bf16 %v704, %v701
        %v729 = vpack.c.bf16 %v712, %v709
        %v730 = vpack.c.bf16 %v720, %v717
        %v731 = vld [vmem:[%s401] sm:$0xf]
        %v732 = vld [vmem:[%s401 + $0x4] sm:$0xf]
        %v733 = vld [vmem:[%s401 + $0x8] sm:$0xf]
        %v734 = vld [vmem:[%s401 + $0xc] sm:$0xf]
        %v735 = vld [vmem:[%s401 + $0x10] sm:$0xf]
        %v736 = vld [vmem:[%s401 + $0x14] sm:$0xf]
        %v737 = vld [vmem:[%s401 + $0x18] sm:$0xf]
        %v738 = vld [vmem:[%s401 + $0x1c] sm:$0xf]
        %v739 = vld [vmem:[%s401 + $0x20] sm:$0xf]
        %v740 = vld [vmem:[%s401 + $0x24] sm:$0xf]
        %v741 = vld [vmem:[%s401 + $0x28] sm:$0xf]
        %v742 = vld [vmem:[%s401 + $0x2c] sm:$0xf]
        %v743 = vld [vmem:[%s401 + $0x30] sm:$0xf]
        %v744 = vld [vmem:[%s401 + $0x34] sm:$0xf]
        %v745 = vld [vmem:[%s401 + $0x38] sm:$0xf]
        %v746 = vld [vmem:[%s401 + $0x3c] sm:$0xf]
        %v747 = vld [vmem:[%s457] sm:$0x1]
        %v749 = vlaneseq
        %v750 = vshrl.u32 %v749, 7
        %v751 = vsub.s32 0, %v750
        %v752 = vrot.slane %v747, %v751
        %v770 = vunpack.c.l.b16 %v731
        %v771 = vunpack.c.l.b16 %v732
        %v772 = vunpack.c.l.b16 %v733
        %v773 = vunpack.c.l.b16 %v734
        %v774 = vunpack.c.l.b16 %v735
        %v775 = vunpack.c.l.b16 %v736
        %v776 = vunpack.c.l.b16 %v737
        %v777 = vunpack.c.l.b16 %v738
        %v778 = vunpack.c.l.b16 %v739
        %v779 = vunpack.c.l.b16 %v740
        %v780 = vunpack.c.l.b16 %v741
        %v781 = vunpack.c.l.b16 %v742
        %v782 = vunpack.c.l.b16 %v743
        %v783 = vunpack.c.l.b16 %v744
        %v784 = vunpack.c.l.b16 %v745
        %v785 = vunpack.c.l.b16 %v746
        %v786 = vpack.c.b16 %v771, %v770
        %v787 = vpack.c.b16 %v773, %v772
        %v788 = vpack.c.b16 %v775, %v774
        %v789 = vpack.c.b16 %v777, %v776
        %v790 = vpack.c.b16 %v779, %v778
        %v791 = vpack.c.b16 %v781, %v780
        %v792 = vpack.c.b16 %v783, %v782
        %v793 = vpack.c.b16 %v785, %v784
        %802 = vmatprep.subr.bf16.mxu0 0
        %803 = vmatpush1.bf16.msra.mxu0 %v793
        %804 = vmatprep.subr.bf16.mxu0 0
        %805 = vmatpush1.bf16.msra.mxu0 %v792
        %806 = vmatprep.subr.bf16.mxu0 0
        %807 = vmatpush1.bf16.msra.mxu0 %v791
        %808 = vmatprep.subr.bf16.mxu0 0
        %809 = vmatpush1.bf16.msra.mxu0 %v790
        %810 = vmatprep.subr.bf16.mxu0 0
        %811 = vmatpush1.bf16.msra.mxu0 %v789
        %812 = vmatprep.subr.bf16.mxu0 0
        %813 = vmatpush1.bf16.msra.mxu0 %v788
        %814 = vmatprep.subr.bf16.mxu0 0
        %815 = vmatpush1.bf16.msra.mxu0 %v787
        %816 = vmatprep.subr.bf16.mxu0 0
        %817 = vmatpush1.bf16.msra.mxu0 %v786
        %818 = vmatprep.subr.bf16.mxu0 0
        %819 = vmatpush2.bf16.msra.mxu0 0
        %820 = vmatprep.subr.bf16.mxu0 0
        %821 = vmatpush2.bf16.msra.mxu0 0
        %822 = vmatprep.subr.bf16.mxu0 0
        %823 = vmatpush2.bf16.msra.mxu0 0
        %824 = vmatprep.subr.bf16.mxu0 0
        %825 = vmatpush2.bf16.msra.mxu0 0
        %826 = vmatprep.subr.bf16.mxu0 0
        %827 = vmatpush2.bf16.msra.mxu0 0
        %828 = vmatprep.subr.bf16.mxu0 0
        %829 = vmatpush2.bf16.msra.mxu0 0
        %830 = vmatprep.subr.bf16.mxu0 0
        %831 = vmatpush2.bf16.msra.mxu0 0
        %832 = vmatprep.subr.bf16.mxu0 0
        %833 = vmatpush2.bf16.msra.mxu0 0
        %834 = vmatprep.mubr.bf16.mxu0 0
        %835 = vmatmul.mubr.bf16.gmra.mxu0 %v723
        %v836 = vpop.f32.mrf.mxu0
        %v837 = vadd.f32 %v752, %v836
        %v838 = vpop.f32.mrf.mxu0
        %v839 = vpop.f32.mrf.mxu0
        %v840 = vadd.f32 %v752, %v839
        %v841 = vpop.f32.mrf.mxu0
        %842 = vmatprep.mubr.bf16.mxu0 0
        %843 = vmatmul.mubr.bf16.gmra.mxu0 %v724
        %v844 = vpop.f32.mrf.mxu0
        %v845 = vadd.f32 %v752, %v844
        %v846 = vpop.f32.mrf.mxu0
        %v847 = vpop.f32.mrf.mxu0
        %v848 = vadd.f32 %v752, %v847
        %v849 = vpop.f32.mrf.mxu0
        %850 = vmatprep.mubr.bf16.mxu0 0
        %851 = vmatmul.mubr.bf16.gmra.mxu0 %v725
        %v852 = vpop.f32.mrf.mxu0
        %v853 = vadd.f32 %v752, %v852
        %v854 = vpop.f32.mrf.mxu0
        %v855 = vpop.f32.mrf.mxu0
        %v856 = vadd.f32 %v752, %v855
        %v857 = vpop.f32.mrf.mxu0
        %858 = vmatprep.mubr.bf16.mxu0 0
        %859 = vmatmul.mubr.bf16.gmra.mxu0 %v726
        %v860 = vpop.f32.mrf.mxu0
        %v861 = vadd.f32 %v752, %v860
        %v862 = vpop.f32.mrf.mxu0
        %v863 = vpop.f32.mrf.mxu0
        %v864 = vadd.f32 %v752, %v863
        %v865 = vpop.f32.mrf.mxu0
        %866 = vmatprep.mubr.bf16.mxu0 0
        %867 = vmatmul.mubr.bf16.gmra.mxu0 %v727
        %v868 = vpop.f32.mrf.mxu0
        %v869 = vadd.f32 %v752, %v868
        %v870 = vpop.f32.mrf.mxu0
        %v871 = vpop.f32.mrf.mxu0
        %v872 = vadd.f32 %v752, %v871
        %v873 = vpop.f32.mrf.mxu0
        %874 = vmatprep.mubr.bf16.mxu0 0
        %875 = vmatmul.mubr.bf16.gmra.mxu0 %v728
        %v876 = vpop.f32.mrf.mxu0
        %v877 = vadd.f32 %v752, %v876
        %v878 = vpop.f32.mrf.mxu0
        %v879 = vpop.f32.mrf.mxu0
        %v880 = vadd.f32 %v752, %v879
        %v881 = vpop.f32.mrf.mxu0
        %882 = vmatprep.mubr.bf16.mxu0 0
        %883 = vmatmul.mubr.bf16.gmra.mxu0 %v729
        %v884 = vpop.f32.mrf.mxu0
        %v885 = vadd.f32 %v752, %v884
        %v886 = vpop.f32.mrf.mxu0
        %v887 = vpop.f32.mrf.mxu0
        %v888 = vadd.f32 %v752, %v887
        %v889 = vpop.f32.mrf.mxu0
        %890 = vmatprep.mubr.bf16.mxu0 0
        %891 = vmatmul.mubr.bf16.gmra.mxu0 %v730
        %v892 = vpop.f32.mrf.mxu0
        %v893 = vadd.f32 %v752, %v892
        %v894 = vpop.f32.mrf.mxu0
        %v895 = vpop.f32.mrf.mxu0
        %v896 = vadd.f32 %v752, %v895
        %v897 = vpop.f32.mrf.mxu0
        %898 = vdwg.mxu0
        %v899 = vmax.f32 %v837, 0.0
        %v900 = vmax.f32 %v840, 0.0
        %v901 = vmax.f32 %v845, 0.0
        %v902 = vmax.f32 %v848, 0.0
        %v903 = vmax.f32 %v853, 0.0
        %v904 = vmax.f32 %v856, 0.0
        %v905 = vmax.f32 %v861, 0.0
        %v906 = vmax.f32 %v864, 0.0
        %v907 = vmax.f32 %v869, 0.0
        %v908 = vmax.f32 %v872, 0.0
        %v909 = vmax.f32 %v877, 0.0
        %v910 = vmax.f32 %v880, 0.0
        %v911 = vmax.f32 %v885, 0.0
        %v912 = vmax.f32 %v888, 0.0
        %v913 = vmax.f32 %v893, 0.0
        %v914 = vmax.f32 %v896, 0.0
        %v915 = vpack.c.bf16 %v900, %v899
        %v916 = vpack.c.bf16 %v902, %v901
        %v917 = vpack.c.bf16 %v904, %v903
        %v918 = vpack.c.bf16 %v906, %v905
        %v919 = vpack.c.bf16 %v908, %v907
        %v920 = vpack.c.bf16 %v910, %v909
        %v921 = vpack.c.bf16 %v912, %v911
        %v922 = vpack.c.bf16 %v914, %v913
        %v923 = vld [vmem:[%s410] sm:$0xf]
        %v924 = vld [vmem:[%s410 + $0x4] sm:$0xf]
        %v925 = vld [vmem:[%s410 + $0x8] sm:$0xf]
        %v926 = vld [vmem:[%s410 + $0xc] sm:$0xf]
        %v927 = vld [vmem:[%s410 + $0x10] sm:$0xf]
        %v928 = vld [vmem:[%s410 + $0x14] sm:$0xf]
        %v929 = vld [vmem:[%s410 + $0x18] sm:$0xf]
        %v930 = vld [vmem:[%s410 + $0x1c] sm:$0xf]
        %v931 = vld [vmem:[%s410 + $0x20] sm:$0xf]
        %v932 = vld [vmem:[%s410 + $0x24] sm:$0xf]
        %v933 = vld [vmem:[%s410 + $0x28] sm:$0xf]
        %v934 = vld [vmem:[%s410 + $0x2c] sm:$0xf]
        %v935 = vld [vmem:[%s410 + $0x30] sm:$0xf]
        %v936 = vld [vmem:[%s410 + $0x34] sm:$0xf]
        %v937 = vld [vmem:[%s410 + $0x38] sm:$0xf]
        %v938 = vld [vmem:[%s410 + $0x3c] sm:$0xf]
        %v939 = vld [vmem:[%s460] sm:$0x1]
        %v941 = vlaneseq
        %v942 = vshrl.u32 %v941, 7
        %v943 = vsub.s32 0, %v942
        %v944 = vrot.slane %v939, %v943
        %v962 = vunpack.c.l.b16 %v923
        %v963 = vunpack.c.l.b16 %v924
        %v964 = vunpack.c.l.b16 %v925
        %v965 = vunpack.c.l.b16 %v926
        %v966 = vunpack.c.l.b16 %v927
        %v967 = vunpack.c.l.b16 %v928
        %v968 = vunpack.c.l.b16 %v929
        %v969 = vunpack.c.l.b16 %v930
        %v970 = vunpack.c.l.b16 %v931
        %v971 = vunpack.c.l.b16 %v932
        %v972 = vunpack.c.l.b16 %v933
        %v973 = vunpack.c.l.b16 %v934
        %v974 = vunpack.c.l.b16 %v935
        %v975 = vunpack.c.l.b16 %v936
        %v976 = vunpack.c.l.b16 %v937
        %v977 = vunpack.c.l.b16 %v938
        %v978 = vpack.c.b16 %v963, %v962
        %v979 = vpack.c.b16 %v965, %v964
        %v980 = vpack.c.b16 %v967, %v966
        %v981 = vpack.c.b16 %v969, %v968
        %v982 = vpack.c.b16 %v971, %v970
        %v983 = vpack.c.b16 %v973, %v972
        %v984 = vpack.c.b16 %v975, %v974
        %v985 = vpack.c.b16 %v977, %v976
        %994 = vmatprep.subr.bf16.mxu0 0
        %995 = vmatpush1.bf16.msra.mxu0 %v985
        %996 = vmatprep.subr.bf16.mxu0 0
        %997 = vmatpush1.bf16.msra.mxu0 %v984
        %998 = vmatprep.subr.bf16.mxu0 0
        %999 = vmatpush1.bf16.msra.mxu0 %v983
        %1000 = vmatprep.subr.bf16.mxu0 0
        %1001 = vmatpush1.bf16.msra.mxu0 %v982
        %1002 = vmatprep.subr.bf16.mxu0 0
        %1003 = vmatpush1.bf16.msra.mxu0 %v981
        %1004 = vmatprep.subr.bf16.mxu0 0
        %1005 = vmatpush1.bf16.msra.mxu0 %v980
        %1006 = vmatprep.subr.bf16.mxu0 0
        %1007 = vmatpush1.bf16.msra.mxu0 %v979
        %1008 = vmatprep.subr.bf16.mxu0 0
        %1009 = vmatpush1.bf16.msra.mxu0 %v978
        %1010 = vmatprep.subr.bf16.mxu0 0
        %1011 = vmatpush2.bf16.msra.mxu0 0
        %1012 = vmatprep.subr.bf16.mxu0 0
        %1013 = vmatpush2.bf16.msra.mxu0 0
        %1014 = vmatprep.subr.bf16.mxu0 0
        %1015 = vmatpush2.bf16.msra.mxu0 0
        %1016 = vmatprep.subr.bf16.mxu0 0
        %1017 = vmatpush2.bf16.msra.mxu0 0
        %1018 = vmatprep.subr.bf16.mxu0 0
        %1019 = vmatpush2.bf16.msra.mxu0 0
        %1020 = vmatprep.subr.bf16.mxu0 0
        %1021 = vmatpush2.bf16.msra.mxu0 0
        %1022 = vmatprep.subr.bf16.mxu0 0
        %1023 = vmatpush2.bf16.msra.mxu0 0
        %1024 = vmatprep.subr.bf16.mxu0 0
        %1025 = vmatpush2.bf16.msra.mxu0 0
        %1026 = vmatprep.mubr.bf16.mxu0 0
        %1027 = vmatmul.mubr.bf16.gmra.mxu0 %v915
        %v1028 = vpop.f32.mrf.mxu0
        %v1029 = vadd.f32 %v944, %v1028
        %v1030 = vpop.f32.mrf.mxu0
        %v1031 = vpop.f32.mrf.mxu0
        %v1032 = vadd.f32 %v944, %v1031
        %v1033 = vpop.f32.mrf.mxu0
        %1034 = vmatprep.mubr.bf16.mxu0 0
        %1035 = vmatmul.mubr.bf16.gmra.mxu0 %v916
        %v1036 = vpop.f32.mrf.mxu0
        %v1037 = vadd.f32 %v944, %v1036
        %v1038 = vpop.f32.mrf.mxu0
        %v1039 = vpop.f32.mrf.mxu0
        %v1040 = vadd.f32 %v944, %v1039
        %v1041 = vpop.f32.mrf.mxu0
        %1042 = vmatprep.mubr.bf16.mxu0 0
        %1043 = vmatmul.mubr.bf16.gmra.mxu0 %v917
        %v1044 = vpop.f32.mrf.mxu0
        %v1045 = vadd.f32 %v944, %v1044
        %v1046 = vpop.f32.mrf.mxu0
        %v1047 = vpop.f32.mrf.mxu0
        %v1048 = vadd.f32 %v944, %v1047
        %v1049 = vpop.f32.mrf.mxu0
        %1050 = vmatprep.mubr.bf16.mxu0 0
        %1051 = vmatmul.mubr.bf16.gmra.mxu0 %v918
        %v1052 = vpop.f32.mrf.mxu0
        %v1053 = vadd.f32 %v944, %v1052
        %v1054 = vpop.f32.mrf.mxu0
        %v1055 = vpop.f32.mrf.mxu0
        %v1056 = vadd.f32 %v944, %v1055
        %v1057 = vpop.f32.mrf.mxu0
        %1058 = vmatprep.mubr.bf16.mxu0 0
        %1059 = vmatmul.mubr.bf16.gmra.mxu0 %v919
        %v1060 = vpop.f32.mrf.mxu0
        %v1061 = vadd.f32 %v944, %v1060
        %v1062 = vpop.f32.mrf.mxu0
        %v1063 = vpop.f32.mrf.mxu0
        %v1064 = vadd.f32 %v944, %v1063
        %v1065 = vpop.f32.mrf.mxu0
        %1066 = vmatprep.mubr.bf16.mxu0 0
        %1067 = vmatmul.mubr.bf16.gmra.mxu0 %v920
        %v1068 = vpop.f32.mrf.mxu0
        %v1069 = vadd.f32 %v944, %v1068
        %v1070 = vpop.f32.mrf.mxu0
        %v1071 = vpop.f32.mrf.mxu0
        %v1072 = vadd.f32 %v944, %v1071
        %v1073 = vpop.f32.mrf.mxu0
        %1074 = vmatprep.mubr.bf16.mxu0 0
        %1075 = vmatmul.mubr.bf16.gmra.mxu0 %v921
        %v1076 = vpop.f32.mrf.mxu0
        %v1077 = vadd.f32 %v944, %v1076
        %v1078 = vpop.f32.mrf.mxu0
        %v1079 = vpop.f32.mrf.mxu0
        %v1080 = vadd.f32 %v944, %v1079
        %v1081 = vpop.f32.mrf.mxu0
        %1082 = vmatprep.mubr.bf16.mxu0 0
        %1083 = vmatmul.mubr.bf16.gmra.mxu0 %v922
        %v1084 = vpop.f32.mrf.mxu0
        %v1085 = vadd.f32 %v944, %v1084
        %v1086 = vpop.f32.mrf.mxu0
        %v1087 = vpop.f32.mrf.mxu0
        %v1088 = vadd.f32 %v944, %v1087
        %v1089 = vpop.f32.mrf.mxu0
        %1090 = vdwg.mxu0
        %v1091 = vmax.f32 %v1029, 0.0
        %v1092 = vmax.f32 %v1032, 0.0
        %v1093 = vmax.f32 %v1037, 0.0
        %v1094 = vmax.f32 %v1040, 0.0
        %v1095 = vmax.f32 %v1045, 0.0
        %v1096 = vmax.f32 %v1048, 0.0
        %v1097 = vmax.f32 %v1053, 0.0
        %v1098 = vmax.f32 %v1056, 0.0
        %v1099 = vmax.f32 %v1061, 0.0
        %v1100 = vmax.f32 %v1064, 0.0
        %v1101 = vmax.f32 %v1069, 0.0
        %v1102 = vmax.f32 %v1072, 0.0
        %v1103 = vmax.f32 %v1077, 0.0
        %v1104 = vmax.f32 %v1080, 0.0
        %v1105 = vmax.f32 %v1085, 0.0
        %v1106 = vmax.f32 %v1088, 0.0
        %v1107 = vpack.c.bf16 %v1092, %v1091
        %v1108 = vpack.c.bf16 %v1094, %v1093
        %v1109 = vpack.c.bf16 %v1096, %v1095
        %v1110 = vpack.c.bf16 %v1098, %v1097
        %v1111 = vpack.c.bf16 %v1100, %v1099
        %v1112 = vpack.c.bf16 %v1102, %v1101
        %v1113 = vpack.c.bf16 %v1104, %v1103
        %v1114 = vpack.c.bf16 %v1106, %v1105
        %v1123 = vunpack.c.l.b16 %v1107
        %v1124 = vunpack.c.h.b16 %v1107
        %v1125 = vunpack.c.l.b16 %v1108
        %v1126 = vunpack.c.h.b16 %v1108
        %v1127 = vunpack.c.l.b16 %v1109
        %v1128 = vunpack.c.h.b16 %v1109
        %v1129 = vunpack.c.l.b16 %v1110
        %v1130 = vunpack.c.h.b16 %v1110
        %v1131 = vunpack.c.l.b16 %v1111
        %v1132 = vunpack.c.h.b16 %v1111
        %v1133 = vunpack.c.l.b16 %v1112
        %v1134 = vunpack.c.h.b16 %v1112
        %v1135 = vunpack.c.l.b16 %v1113
        %v1136 = vunpack.c.h.b16 %v1113
        %v1137 = vunpack.c.l.b16 %v1114
        %v1138 = vunpack.c.h.b16 %v1114
        %v1139 = vpack.c.b16 %v1123, %v1123
        %v1140 = vpack.c.b16 %v1124, %v1124
        %v1141 = vpack.c.b16 %v1125, %v1125
        %v1142 = vpack.c.b16 %v1126, %v1126
        %v1143 = vpack.c.b16 %v1127, %v1127
        %v1144 = vpack.c.b16 %v1128, %v1128
        %v1145 = vpack.c.b16 %v1129, %v1129
        %v1146 = vpack.c.b16 %v1130, %v1130
        %v1147 = vpack.c.b16 %v1131, %v1131
        %v1148 = vpack.c.b16 %v1132, %v1132
        %v1149 = vpack.c.b16 %v1133, %v1133
        %v1150 = vpack.c.b16 %v1134, %v1134
        %v1151 = vpack.c.b16 %v1135, %v1135
        %v1152 = vpack.c.b16 %v1136, %v1136
        %v1153 = vpack.c.b16 %v1137, %v1137
        %v1154 = vpack.c.b16 %v1138, %v1138
        %1171 = vst [vmem:[#allocation2] sm:$0xf] %v1139
        %1172 = vst [vmem:[#allocation2 + $0x4] sm:$0xf] %v1140
        %1173 = vst [vmem:[#allocation2 + $0x8] sm:$0xf] %v1141
        %1174 = vst [vmem:[#allocation2 + $0xc] sm:$0xf] %v1142
        %1175 = vst [vmem:[#allocation2 + $0x10] sm:$0xf] %v1143
        %1176 = vst [vmem:[#allocation2 + $0x14] sm:$0xf] %v1144
        %1177 = vst [vmem:[#allocation2 + $0x18] sm:$0xf] %v1145
        %1178 = vst [vmem:[#allocation2 + $0x1c] sm:$0xf] %v1146
        %1179 = vst [vmem:[#allocation2 + $0x20] sm:$0xf] %v1147
        %1180 = vst [vmem:[#allocation2 + $0x24] sm:$0xf] %v1148
        %1181 = vst [vmem:[#allocation2 + $0x28] sm:$0xf] %v1149
        %1182 = vst [vmem:[#allocation2 + $0x2c] sm:$0xf] %v1150
        %1183 = vst [vmem:[#allocation2 + $0x30] sm:$0xf] %v1151
        %1184 = vst [vmem:[#allocation2 + $0x34] sm:$0xf] %v1152
        %1185 = vst [vmem:[#allocation2 + $0x38] sm:$0xf] %v1153
        %1186 = vst [vmem:[#allocation2 + $0x3c] sm:$0xf] %v1154
        %p1187 = scmp.eq.s32.totalorder %s27, 1
        // Predicated region
        $region85: #{tpu_custom_call.1} parent=55 // pred_check
          %p1188 = pneg %p1187
        $region86: #{tpu_custom_call.1} parent=55 // pred_check_branch
          %1190 = sbr.rel (%p1188) target = $region88
        $region87: #{tpu_custom_call.1} parent=55 // pred_region
          %v1191 = vld [vmem:[#allocation8] sm:$0xf]
          %1192 = vmatprep.subr.bf16.mxu0 0
          %1193 = vmatpush1.bf16.msra.mxu0 %v1114
          %1194 = vmatprep.subr.bf16.mxu0 0
          %1195 = vmatpush1.bf16.msra.mxu0 %v1113
          %1196 = vmatprep.subr.bf16.mxu0 0
          %1197 = vmatpush1.bf16.msra.mxu0 %v1112
          %1198 = vmatprep.subr.bf16.mxu0 0
          %1199 = vmatpush1.bf16.msra.mxu0 %v1111
          %1200 = vmatprep.subr.bf16.mxu0 0
          %1201 = vmatpush1.bf16.msra.mxu0 %v1110
          %1202 = vmatprep.subr.bf16.mxu0 0
          %1203 = vmatpush1.bf16.msra.mxu0 %v1109
          %1204 = vmatprep.subr.bf16.mxu0 0
          %1205 = vmatpush1.bf16.msra.mxu0 %v1108
          %1206 = vmatprep.subr.bf16.mxu0 0
          %1207 = vmatpush1.bf16.msra.mxu0 %v1107
          %1208 = vmatprep.subr.bf16.mxu0 0
          %1209 = vmatpush2.bf16.msra.mxu0 0
          %1210 = vmatprep.subr.bf16.mxu0 0
          %1211 = vmatpush2.bf16.msra.mxu0 0
          %1212 = vmatprep.subr.bf16.mxu0 0
          %1213 = vmatpush2.bf16.msra.mxu0 0
          %1214 = vmatprep.subr.bf16.mxu0 0
          %1215 = vmatpush2.bf16.msra.mxu0 0
          %1216 = vmatprep.subr.bf16.mxu0 0
          %1217 = vmatpush2.bf16.msra.mxu0 0
          %1218 = vmatprep.subr.bf16.mxu0 0
          %1219 = vmatpush2.bf16.msra.mxu0 0
          %1220 = vmatprep.subr.bf16.mxu0 0
          %1221 = vmatpush2.bf16.msra.mxu0 0
          %1222 = vmatprep.subr.bf16.mxu0 0
          %1223 = vmatpush2.bf16.msra.mxu0 0
          %1224 = vmatprep.mubr.bf16.mxu0 0
          %1225 = vmatmul.mubr.bf16.gmra.mxu0 %v1191
          %v1226 = vpop.f32.mrf.mxu0
          %v1227 = vadd.f32 0.0, %v1226
          %v1228 = vpop.f32.mrf.mxu0
          %v1229 = vpop.f32.mrf.mxu0
          %v1230 = vpop.f32.mrf.mxu0
          %1231 = vdwg.mxu0
          %v1232 = vpack.c.bf16 %v1227, %v1227
          %v1233 = vld [vmem:[#allocation12] sm:$0xf]
          %v1234 = vld [vmem:[#allocation12 + $0x4] sm:$0xf]
          %v1235 = vld [vmem:[#allocation12 + $0x8] sm:$0xf]
          %v1236 = vld [vmem:[#allocation12 + $0xc] sm:$0xf]
          %v1237 = vld [vmem:[#allocation12 + $0x10] sm:$0xf]
          %v1238 = vld [vmem:[#allocation12 + $0x14] sm:$0xf]
          %v1239 = vld [vmem:[#allocation12 + $0x18] sm:$0xf]
          %v1240 = vld [vmem:[#allocation12 + $0x1c] sm:$0xf]
          %v1241 = vld [vmem:[#allocation12 + $0x20] sm:$0xf]
          %v1242 = vld [vmem:[#allocation12 + $0x24] sm:$0xf]
          %v1243 = vld [vmem:[#allocation12 + $0x28] sm:$0xf]
          %v1244 = vld [vmem:[#allocation12 + $0x2c] sm:$0xf]
          %v1245 = vld [vmem:[#allocation12 + $0x30] sm:$0xf]
          %v1246 = vld [vmem:[#allocation12 + $0x34] sm:$0xf]
          %v1247 = vld [vmem:[#allocation12 + $0x38] sm:$0xf]
          %v1248 = vld [vmem:[#allocation12 + $0x3c] sm:$0xf]
          %v1249 = vld [vmem:[%s8] sm:$0x1]
          %v1251 = vlaneseq
          %v1252 = vshrl.u32 %v1251, 7
          %v1253 = vsub.s32 0, %v1252
          %v1254 = vrot.slane %v1249, %v1253
          %v1272 = vunpack.c.l.b16 %v1233
          %v1273 = vunpack.c.l.b16 %v1234
          %v1274 = vunpack.c.l.b16 %v1235
          %v1275 = vunpack.c.l.b16 %v1236
          %v1276 = vunpack.c.l.b16 %v1237
          %v1277 = vunpack.c.l.b16 %v1238
          %v1278 = vunpack.c.l.b16 %v1239
          %v1279 = vunpack.c.l.b16 %v1240
          %v1280 = vunpack.c.l.b16 %v1241
          %v1281 = vunpack.c.l.b16 %v1242
          %v1282 = vunpack.c.l.b16 %v1243
          %v1283 = vunpack.c.l.b16 %v1244
          %v1284 = vunpack.c.l.b16 %v1245
          %v1285 = vunpack.c.l.b16 %v1246
          %v1286 = vunpack.c.l.b16 %v1247
          %v1287 = vunpack.c.l.b16 %v1248
          %v1288 = vpack.c.b16 %v1273, %v1272
          %v1289 = vpack.c.b16 %v1275, %v1274
          %v1290 = vpack.c.b16 %v1277, %v1276
          %v1291 = vpack.c.b16 %v1279, %v1278
          %v1292 = vpack.c.b16 %v1281, %v1280
          %v1293 = vpack.c.b16 %v1283, %v1282
          %v1294 = vpack.c.b16 %v1285, %v1284
          %v1295 = vpack.c.b16 %v1287, %v1286
          %1304 = vmatprep.subr.bf16.mxu0 0
          %1305 = vmatpush1.bf16.msra.mxu0 %v1295
          %1306 = vmatprep.subr.bf16.mxu0 0
          %1307 = vmatpush1.bf16.msra.mxu0 %v1294
          %1308 = vmatprep.subr.bf16.mxu0 0
          %1309 = vmatpush1.bf16.msra.mxu0 %v1293
          %1310 = vmatprep.subr.bf16.mxu0 0
          %1311 = vmatpush1.bf16.msra.mxu0 %v1292
          %1312 = vmatprep.subr.bf16.mxu0 0
          %1313 = vmatpush1.bf16.msra.mxu0 %v1291
          %1314 = vmatprep.subr.bf16.mxu0 0
          %1315 = vmatpush1.bf16.msra.mxu0 %v1290
          %1316 = vmatprep.subr.bf16.mxu0 0
          %1317 = vmatpush1.bf16.msra.mxu0 %v1289
          %1318 = vmatprep.subr.bf16.mxu0 0
          %1319 = vmatpush1.bf16.msra.mxu0 %v1288
          %1320 = vmatprep.subr.bf16.mxu0 0
          %1321 = vmatpush2.bf16.msra.mxu0 0
          %1322 = vmatprep.subr.bf16.mxu0 0
          %1323 = vmatpush2.bf16.msra.mxu0 0
          %1324 = vmatprep.subr.bf16.mxu0 0
          %1325 = vmatpush2.bf16.msra.mxu0 0
          %1326 = vmatprep.subr.bf16.mxu0 0
          %1327 = vmatpush2.bf16.msra.mxu0 0
          %1328 = vmatprep.subr.bf16.mxu0 0
          %1329 = vmatpush2.bf16.msra.mxu0 0
          %1330 = vmatprep.subr.bf16.mxu0 0
          %1331 = vmatpush2.bf16.msra.mxu0 0
          %1332 = vmatprep.subr.bf16.mxu0 0
          %1333 = vmatpush2.bf16.msra.mxu0 0
          %1334 = vmatprep.subr.bf16.mxu0 0
          %1335 = vmatpush2.bf16.msra.mxu0 0
          %1336 = vmatprep.mubr.bf16.mxu0 0
          %1337 = vmatmul.mubr.bf16.gmra.mxu0 %v1232
          %v1338 = vpop.f32.mrf.mxu0
          %v1339 = vadd.f32 %v1254, %v1338
          %v1340 = vpop.f32.mrf.mxu0
          %v1341 = vpop.f32.mrf.mxu0
          %v1342 = vpop.f32.mrf.mxu0
          %1343 = vdwg.mxu0
          %1344 = vst [vmem:[#allocation14] sm:$0xff] %v1339
        $region88: #{tpu_custom_call.1} parent=55 // pred_fallthru
          _
        // Predicated region
        $region89: #{tpu_custom_call.1} parent=55 // pred_check
          %p1345 = pneg %p249
        $region90: #{tpu_custom_call.1} parent=55 // pred_check_branch
          %1347 = sbr.rel (%p1345) target = $region92
        $region91: #{tpu_custom_call.1} parent=55 // pred_region
          %s1349 = ssub.s32 128, 128
          %1350 = vsyncadd [#allocation5], %s1349
          %s1352 = sshll.u32 [#allocation14], 4
          %s1353 = int_to_ptr.vmem [resolvable:$true] %s1352
          %1355 = dma.vmem_to_hbm [thread:$0]  %s1353, 128, %s9, [#allocation5]
        $region92: #{tpu_custom_call.1} parent=55 // pred_fallthru
          _
        // Predicated region
        $region93: #{tpu_custom_call.1} parent=55 // pred_check
          %p1356 = pneg %p249
        $region94: #{tpu_custom_call.1} parent=55 // pred_check_branch
          %1358 = sbr.rel (%p1356) target = $region96
        $region95: #{tpu_custom_call.1} parent=55 // pred_region
          %1359 = dma.done [#allocation5], 128
        $region96: #{tpu_custom_call.1} parent=55 // pred_fallthru
          _
      $region56: #{tpu_custom_call.1} parent=5 // pred_fallthru
        _
      %p1360 = scmp.le.s32.totalorder 2, %s22
      // Predicated region
      $region97: #{tpu_custom_call.1} parent=5 // pred_check
        %p1361 = pneg %p1360
      $region98: #{tpu_custom_call.1} parent=5 // pred_check_branch
        %1363 = sbr.rel (%p1361) target = $region100
      $region99: #{tpu_custom_call.1} parent=5 // pred_region
        %s1364 = ssub.s32 %s22, 2
      $region100: #{tpu_custom_call.1} parent=5 // pred_fallthru
        _
    $region6: #{tpu_custom_call.1} parent=1 // loop_footer
      %s26 = sadd.s32 1, %s22
    $region7: #{tpu_custom_call.1} parent=1 // loop_footer_branch
      %21 = sbr.rel target = $region3
    $region8: #{tpu_custom_call.1} parent=1 // loop_exit
      _
    %1365 = vsyncpa [#allocation4], 1
    %s1366 = scalar_lea.sflag [#allocation4], 1
    %1367 = vsyncpa %s1366, 1
    %1368 = vsyncpa [#allocation7], 1
    %1369 = vsyncpa [#allocation10], 1
    %s1370 = scalar_lea.sflag [#allocation10], 1
    %1371 = vsyncpa %s1370, 1
    %1372 = vsyncpa [#allocation13], 1
    %1373 = vsyncpa [#allocation5], 1
    %s1374 = scalar_lea.sflag [#allocation5], 1
    %1375 = vsyncpa %s1374, 1

</llo_original>
